<compile_context>
chip_gen: v7x
topology: tpu7x:2x2x1
jax: 0.10.0
libtpu: 0.0.40
codegen_flags: <defaults>
</compile_context>

<pallas_src>
import functools

import jax
import jax.numpy as jnp
import numpy as np
from jax.experimental import pallas as pl
from jax.experimental.pallas import tpu as pltpu


# ---------------------------------------------------------------------------
# Fused kernel.  Per grid step (= one lane block of L = n_img * H*W pixels):
#   x_ref    : (Cin, L)            input pixels (+ folded batch) on lanes
#   ws_ref   : (c1+3sp, Cin)       fused 1x1 stem weights, rows =
#                                  [branch1 | 3x3-stem(b2) | 3x3-stem(b4) | 5x5-stem(b3)]
#   w24_ref  : (9, co2+co4, 2sp)   per-tap block-diagonal weight of both 3x3s
#   w3_ref   : (25, co3, sp)       per-tap weight of the 5x5
#   bias_ref : (c1+3sp+co2+co4+co3, 1)   all biases, same ordering
#   mask_ref : (9*2sp + 25*sp, L)  pre-expanded 0/1 "same"-padding masks
#   o_ref    : (ct, L)             concatenated branch outputs (lane-dense)
# ---------------------------------------------------------------------------
def _inception_kernel(x_ref, ws_ref, w24_ref, w3_ref, bias_ref, mask_ref,
                      o_ref, *, W, c1, sp, co2, co3, co4):
    L = x_ref.shape[-1]
    n_stem = c1 + 3 * sp

    # ---- all four 1x1 stems as ONE small-K matmul + bias + ReLU -----------
    stems = jnp.dot(ws_ref[...], x_ref[...],
                    preferred_element_type=jnp.float32)
    stems = jnp.maximum(stems + bias_ref[0:n_stem, :], 0.0)      # (n_stem, L)

    # branch 1 is finished -> store now (lane-dense, sublane-aligned rows)
    o_ref[0:c1, :] = stems[0:c1, :].astype(o_ref.dtype)

    s24 = stems[c1:c1 + 2 * sp, :]        # stacked stems of both 3x3 branches
    s3 = stems[c1 + 2 * sp:n_stem, :]     # stem of the 5x5 branch

    def conv_acc(s, w_ref, K, mask_row0, rows):
        """KxK 'same' conv: per-tap roll + mask + MXU accumulation in f32."""
        pad = K // 2
        acc = jnp.zeros((w_ref.shape[1], L), jnp.float32)
        for t in range(K * K):                                  # static unroll
            dh, dw = t // K - pad, t % K - pad
            d = dh * W + dw                                     # flat offset
            if d == 0:
                tap = s                                         # centre tap
            else:
                # tap offset +d  ->  single roll by (-d) % L (jnp.roll conv.);
                # the pre-expanded 0/1 mask zeroes the wrapped halo pixels
                # (also across folded image boundaries).
                tap = (pltpu.roll(s, (-d) % L, axis=1) *
                       mask_ref[mask_row0 + t * rows:
                                mask_row0 + (t + 1) * rows, :])
            acc = acc + jnp.dot(w_ref[t], tap,
                                preferred_element_type=jnp.float32)
        return acc

    # fused 3x3 branches (2 & 4): one roll / mask / matmul per tap for both
    y24 = conv_acc(s24, w24_ref, 3, 0, 2 * sp)
    y24 = jnp.maximum(y24 + bias_ref[n_stem:n_stem + co2 + co4, :], 0.0)
    o_ref[c1:c1 + co2, :] = y24[0:co2, :].astype(o_ref.dtype)            # x2
    o_ref[c1 + co2 + co3:c1 + co2 + co3 + co4, :] = \
        y24[co2:co2 + co4, :].astype(o_ref.dtype)                        # x4

    # 5x5 branch
    y3 = conv_acc(s3, w3_ref, 5, 9 * 2 * sp, sp)
    y3 = jnp.maximum(y3 + bias_ref[n_stem + co2 + co4:, :], 0.0)
    o_ref[c1 + co2:c1 + co2 + co3, :] = y3.astype(o_ref.dtype)           # x3


# ---------------------------------------------------------------------------
# Weight / bias / mask re-layout helpers (tiny XLA ops in the wrapper).
# ---------------------------------------------------------------------------
def _stem_weight(w_hwio, rows):
    """(1,1,Cin,Cout) HWIO -> (rows, Cin) with zero rows past Cout."""
    cin, cout = w_hwio.shape[2], w_hwio.shape[3]
    w = w_hwio.reshape(cin, cout).T
    return jnp.pad(w, ((0, rows - cout), (0, 0)))


def _pad1d(b, rows):
    return jnp.pad(b, (0, rows - b.shape[0]))


def _per_tap_weight(w_hwio, sp):
    """(K,K,Cs,Cout) HWIO -> (K*K, Cout, sp): one (Cout, sp) block per tap."""
    K, _, cs, cout = w_hwio.shape
    wt = jnp.transpose(w_hwio, (0, 1, 3, 2)).reshape(K * K, cout, cs)
    return jnp.pad(wt, ((0, 0), (0, 0), (0, sp - cs)))


def _fused_3x3_weight(w2_hwio, w4_hwio, sp):
    """Block-diagonal per-tap weight fusing both 3x3 branches:
    (9, co2+co4, 2*sp) mapping stacked stems [s2; s4] -> stacked [y2; y4]."""
    a = _per_tap_weight(w2_hwio, sp)                      # (9, co2, sp)
    b = _per_tap_weight(w4_hwio, sp)                      # (9, co4, sp)
    top = jnp.concatenate([a, jnp.zeros_like(a)], axis=2)
    bot = jnp.concatenate([jnp.zeros_like(b), b], axis=2)
    return jnp.concatenate([top, bot], axis=1)            # (9, co2+co4, 2sp)


def _tap_valid(H, W, K):
    """(K*K, H*W) float 0/1 masks implementing 'same' zero padding."""
    pad = K // 2
    hh = np.repeat(np.arange(H), W)
    ww = np.tile(np.arange(W), H)
    rows = []
    for kh in range(K):
        for kw in range(K):
            dh, dw = kh - pad, kw - pad
            rows.append(((hh + dh >= 0) & (hh + dh < H) &
                         (ww + dw >= 0) & (ww + dw < W)).astype(np.float32))
    return np.stack(rows)                                 # (K*K, HW)


def _grid_groups(batch):
    """Lane-block count: 1 on single-TensorCore chips (fold the whole batch
    into one grid step), one block per image on multi-core chips (v7x etc.)."""
    kind = ""
    try:
        kind = jax.devices()[0].device_kind.lower()
    except Exception:
        pass
    single_tc = any(t in kind for t in
                    ("v5 lite", "v5lite", "v5e", "v6 lite", "v6lite", "v6e"))
    g = 1 if single_tc else max(1, batch)
    while batch % g:                 # g must divide the batch
        g -= 1
    return g


# ---------------------------------------------------------------------------
# InceptionBlock forward (NCHW in / NCHW out, matching the PyTorch module).
# ---------------------------------------------------------------------------
def inception_block(x_nchw, p):
    N, Cin, H, W = x_nchw.shape
    HW = H * W
    assert HW % 128 == 0, "flattened pixel axis must be lane-dense (mult of 128)"
    SP = 8                           # spatial-branch stems zero-padded to 8 rows

    c1 = p["b1"].shape[0]
    co2, co3, co4 = p["b2_2"].shape[0], p["b3_2"].shape[0], p["b4_2"].shape[0]
    ct = c1 + co2 + co3 + co4

    # packed constants -------------------------------------------------------
    ws = jnp.concatenate([_stem_weight(p["w1"], c1),
                          _stem_weight(p["w2_1"], SP),
                          _stem_weight(p["w4_1"], SP),
                          _stem_weight(p["w3_1"], SP)], axis=0)   # (c1+3SP, Cin)
    bias_all = jnp.concatenate([
        _pad1d(p["b1"], c1), _pad1d(p["b2_1"], SP),
        _pad1d(p["b4_1"], SP), _pad1d(p["b3_1"], SP),             # stem biases
        p["b2_2"], p["b4_2"],                                     # fused 3x3 out
        p["b3_2"],                                                # 5x5 out
    ])[:, None]

    w24 = _fused_3x3_weight(p["w2_2"], p["w4_2"], SP)             # (9, co2+co4, 2SP)
    w3 = _per_tap_weight(p["w3_2"], SP)                           # (25, co3, SP)

    # grid: fold batch into lanes; split into G parallel lane blocks ---------
    G = _grid_groups(N)
    L = (N * HW) // G
    assert L % 128 == 0 and L % HW == 0

    # pre-expanded 0/1 boundary masks: one row per (tap, input channel)
    m24 = np.repeat(_tap_valid(H, W, 3), 2 * SP, axis=0)          # (144, HW)
    m5 = np.repeat(_tap_valid(H, W, 5), SP, axis=0)               # (200, HW)
    masks = jnp.asarray(np.tile(np.concatenate([m24, m5], axis=0),
                                (1, L // HW)))                    # (344, L)

    # channels-first, pixels (and folded batch) on the lane axis
    x2d = jnp.transpose(x_nchw, (1, 0, 2, 3)).reshape(Cin, N * HW)

    kernel = functools.partial(_inception_kernel, W=W, c1=c1, sp=SP,
                               co2=co2, co3=co3, co4=co4)
    out2d = pl.pallas_call(
        kernel,
        out_shape=jax.ShapeDtypeStruct((ct, N * HW), x_nchw.dtype),
        grid=(G,),
        in_specs=[
            pl.BlockSpec((Cin, L), lambda g: (0, g)),
            pl.BlockSpec(ws.shape, lambda g: (0, 0)),
            pl.BlockSpec(w24.shape, lambda g: (0, 0, 0)),
            pl.BlockSpec(w3.shape, lambda g: (0, 0, 0)),
            pl.BlockSpec(bias_all.shape, lambda g: (0, 0)),
            pl.BlockSpec(masks.shape, lambda g: (0, 0)),
        ],
        out_specs=pl.BlockSpec((ct, L), lambda g: (0, g)),
        compiler_params=pltpu.CompilerParams(
            dimension_semantics=("parallel",)),
    )(x2d, ws, w24, w3, bias_all, masks)

    # Dropout: identity (eval mode).  (ct, N*HW) -> NCHW (tiny wrapper transpose).
    return jnp.transpose(out2d.reshape(ct, N, H, W), (1, 0, 2, 3))


# ---------------------------------------------------------------------------
# Pure-JAX reference (for correctness check only).
# ---------------------------------------------------------------------------
def _ref_conv_relu(x, w_hwio, b, pad):
    y = jax.lax.conv_general_dilated(
        x, w_hwio, window_strides=(1, 1),
        padding=[(pad, pad), (pad, pad)],
        dimension_numbers=("NHWC", "HWIO", "NHWC"),
        precision=jax.lax.Precision.HIGHEST)
    return jax.nn.relu(y + b)


def ref_inception(x_nchw, p):
    x = jnp.transpose(x_nchw, (0, 2, 3, 1))
    x1 = _ref_conv_relu(x, p["w1"], p["b1"], 0)
    x2 = _ref_conv_relu(x, p["w2_1"], p["b2_1"], 0)
    x2 = _ref_conv_relu(x2, p["w2_2"], p["b2_2"], 1)
    x3 = _ref_conv_relu(x, p["w3_1"], p["b3_1"], 0)
    x3 = _ref_conv_relu(x3, p["w3_2"], p["b3_2"], 2)
    x4 = _ref_conv_relu(x, p["w4_1"], p["b4_1"], 0)
    x4 = _ref_conv_relu(x4, p["w4_2"], p["b4_2"], 1)
    out = jnp.concatenate([x1, x2, x3, x4], axis=-1)
    return jnp.transpose(out, (0, 3, 1, 2))


def init_params(key, in_ch, oc1, oc2, oc3, oc4):
    shapes = {
        "w1":   (1, 1, in_ch, oc1),      "b1":   (oc1,),
        "w2_1": (1, 1, in_ch, oc2[0]),   "b2_1": (oc2[0],),
        "w2_2": (3, 3, oc2[0], oc2[1]),  "b2_2": (oc2[1],),
        "w3_1": (1, 1, in_ch, oc3[0]),   "b3_1": (oc3[0],),
        "w3_2": (5, 5, oc3[0], oc3[1]),  "b3_2": (oc3[1],),
        "w4_1": (1, 1, in_ch, oc4[0]),   "b4_1": (oc4[0],),
        "w4_2": (3, 3, oc4[0], oc4[1]),  "b4_2": (oc4[1],),
    }
    keys = jax.random.split(key, len(shapes))
    return {name: 0.1 * jax.random.normal(k, shape, jnp.float32)
            for k, (name, shape) in zip(keys, shapes.items())}


if __name__ == "__main__":
    key = jax.random.PRNGKey(0)
    kx, kp = jax.random.split(key)

    # in_channels=4, out1=8, out2=(4,8), out3=(4,8), out4=(4,8) -> 32 out ch.
    x = jax.random.normal(kx, (2, 4, 16, 16), jnp.float32)   # NCHW like PyTorch
    params = init_params(kp, in_ch=4, oc1=8, oc2=(4, 8), oc3=(4, 8), oc4=(4, 8))

    fwd = jax.jit(inception_block)
    out = jax.block_until_ready(fwd(x, params))

    assert out.shape == (2, 32, 16, 16), out.shape
    ref = ref_inception(x, params)
    max_err = float(jnp.max(jnp.abs(out - ref)))
    assert max_err < 1e-3, f"mismatch vs reference: {max_err}"

    print("KERNEL_OK")
</pallas_src>

<mosaic_0001>
module attributes {stable_mosaic.version = 11 : i64} {
  func.func @_inception_kernel(%arg0: i32, %arg1: memref<4x256xf32, #tpu.memory_space<vmem>>, %arg2: memref<32x4xf32, #tpu.memory_space<vmem>>, %arg3: memref<9x16x16xf32, #tpu.memory_space<vmem>>, %arg4: memref<25x8x8xf32, #tpu.memory_space<vmem>>, %arg5: memref<56x1xf32, #tpu.memory_space<vmem>>, %arg6: memref<344x256xf32, #tpu.memory_space<vmem>>, %arg7: memref<32x256xf32, #tpu.memory_space<vmem>>) attributes {dimension_semantics = [#tpu.dimension_semantics<parallel>], iteration_bounds = array<i64: 2>, scalar_prefetch = 0 : i64, scratch_operands = 0 : i64, tpu.core_type = #tpu.core_type<tc>, window_params = [{transform_indices = @transform_0, window_bounds = array<i64: 4, 256>}, {pipeline_mode = #tpu.pipeline_mode<synchronous>, transform_indices = @transform_1, window_bounds = array<i64: 32, 4>}, {pipeline_mode = #tpu.pipeline_mode<synchronous>, transform_indices = @transform_2, window_bounds = array<i64: 9, 16, 16>}, {pipeline_mode = #tpu.pipeline_mode<synchronous>, transform_indices = @transform_3, window_bounds = array<i64: 25, 8, 8>}, {pipeline_mode = #tpu.pipeline_mode<synchronous>, transform_indices = @transform_4, window_bounds = array<i64: 56, 1>}, {pipeline_mode = #tpu.pipeline_mode<synchronous>, transform_indices = @transform_5, window_bounds = array<i64: 344, 256>}, {transform_indices = @transform_6, window_bounds = array<i64: 32, 256>}]} {
    %c0 = arith.constant 0 : index
    %c0_0 = arith.constant 0 : index
    %0 = vector.load %arg2[%c0, %c0_0] : memref<32x4xf32, #tpu.memory_space<vmem>>, vector<32x4xf32>
    %c0_1 = arith.constant 0 : index
    %c0_2 = arith.constant 0 : index
    %1 = vector.load %arg1[%c0_1, %c0_2] : memref<4x256xf32, #tpu.memory_space<vmem>>, vector<4x256xf32>
    %cst = arith.constant dense<0.000000e+00> : vector<32x256xf32>
    %2 = tpu.matmul %0, %1, %cst {dimension_numbers = #tpu.dot_dimension_numbers<[1], [0], [0], [1], [0, 0, 1, 1], [], []>} : vector<32x4xf32>, vector<4x256xf32>, vector<32x256xf32> -> vector<32x256xf32>
    %c0_3 = arith.constant 0 : index
    %c0_4 = arith.constant 0 : index
    %3 = vector.load %arg5[%c0_3, %c0_4] : memref<56x1xf32, #tpu.memory_space<vmem>>, vector<32x1xf32>
    %4 = vector.broadcast %3 : vector<32x1xf32> to vector<32x256xf32>
    %5 = arith.addf %2, %4 : vector<32x256xf32>
    %cst_5 = arith.constant 0.000000e+00 : f32
    %6 = vector.broadcast %cst_5 : f32 to vector<32x256xf32>
    %7 = arith.maximumf %5, %6 : vector<32x256xf32>
    %8 = vector.extract_strided_slice %7 {offsets = [0, 0], sizes = [8, 256], strides = [1, 1]} : vector<32x256xf32> to vector<8x256xf32>
    %c0_6 = arith.constant 0 : index
    %c0_7 = arith.constant 0 : index
    %9 = vector.load %arg7[%c0_6, %c0_7] : memref<32x256xf32, #tpu.memory_space<vmem>>, vector<8x256xf32>
    tpu.vector_store %arg7[%c0_6, %c0_7], %8 {strides = array<i32>} : memref<32x256xf32, #tpu.memory_space<vmem>>, vector<8x256xf32>,
    %10 = vector.extract_strided_slice %7 {offsets = [8, 0], sizes = [16, 256], strides = [1, 1]} : vector<32x256xf32> to vector<16x256xf32>
    %11 = vector.extract_strided_slice %7 {offsets = [24, 0], sizes = [8, 256], strides = [1, 1]} : vector<32x256xf32> to vector<8x256xf32>
    %cst_8 = arith.constant 0.000000e+00 : f32
    %12 = vector.broadcast %cst_8 : f32 to vector<16x256xf32>
    %c17_i32 = arith.constant 17 : i32
    %13 = tpu.dynamic_rotate %10 by %c17_i32 dim 1 : vector<16x256xf32>, i32 -> vector<16x256xf32>
    %c0_9 = arith.constant 0 : index
    %c0_10 = arith.constant 0 : index
    %14 = vector.load %arg6[%c0_9, %c0_10] : memref<344x256xf32, #tpu.memory_space<vmem>>, vector<16x256xf32>
    %15 = arith.mulf %13, %14 : vector<16x256xf32>
    %c0_11 = arith.constant 0 : index
    %c0_12 = arith.constant 0 : index
    %c0_13 = arith.constant 0 : index
    %16 = vector.load %arg3[%c0_11, %c0_12, %c0_13] : memref<9x16x16xf32, #tpu.memory_space<vmem>>, vector<1x16x16xf32>
    %17 = vector.shape_cast %16 : vector<1x16x16xf32> to vector<16x16xf32>
    %cst_14 = arith.constant dense<0.000000e+00> : vector<16x256xf32>
    %18 = tpu.matmul %17, %15, %cst_14 {dimension_numbers = #tpu.dot_dimension_numbers<[1], [0], [0], [1], [0, 0, 1, 1], [], []>} : vector<16x16xf32>, vector<16x256xf32>, vector<16x256xf32> -> vector<16x256xf32>
    %19 = arith.addf %12, %18 : vector<16x256xf32>
    %c16_i32 = arith.constant 16 : i32
    %20 = tpu.dynamic_rotate %10 by %c16_i32 dim 1 : vector<16x256xf32>, i32 -> vector<16x256xf32>
    %c16 = arith.constant 16 : index
    %c0_15 = arith.constant 0 : index
    %21 = vector.load %arg6[%c16, %c0_15] : memref<344x256xf32, #tpu.memory_space<vmem>>, vector<16x256xf32>
    %22 = arith.mulf %20, %21 : vector<16x256xf32>
    %c1 = arith.constant 1 : index
    %c0_16 = arith.constant 0 : index
    %c0_17 = arith.constant 0 : index
    %23 = vector.load %arg3[%c1, %c0_16, %c0_17] : memref<9x16x16xf32, #tpu.memory_space<vmem>>, vector<1x16x16xf32>
    %24 = vector.shape_cast %23 : vector<1x16x16xf32> to vector<16x16xf32>
    %cst_18 = arith.constant dense<0.000000e+00> : vector<16x256xf32>
    %25 = tpu.matmul %24, %22, %cst_18 {dimension_numbers = #tpu.dot_dimension_numbers<[1], [0], [0], [1], [0, 0, 1, 1], [], []>} : vector<16x16xf32>, vector<16x256xf32>, vector<16x256xf32> -> vector<16x256xf32>
    %26 = arith.addf %19, %25 : vector<16x256xf32>
    %c15_i32 = arith.constant 15 : i32
    %27 = tpu.dynamic_rotate %10 by %c15_i32 dim 1 : vector<16x256xf32>, i32 -> vector<16x256xf32>
    %c32 = arith.constant 32 : index
    %c0_19 = arith.constant 0 : index
    %28 = vector.load %arg6[%c32, %c0_19] : memref<344x256xf32, #tpu.memory_space<vmem>>, vector<16x256xf32>
    %29 = arith.mulf %27, %28 : vector<16x256xf32>
    %c2 = arith.constant 2 : index
    %c0_20 = arith.constant 0 : index
    %c0_21 = arith.constant 0 : index
    %30 = vector.load %arg3[%c2, %c0_20, %c0_21] : memref<9x16x16xf32, #tpu.memory_space<vmem>>, vector<1x16x16xf32>
    %31 = vector.shape_cast %30 : vector<1x16x16xf32> to vector<16x16xf32>
    %cst_22 = arith.constant dense<0.000000e+00> : vector<16x256xf32>
    %32 = tpu.matmul %31, %29, %cst_22 {dimension_numbers = #tpu.dot_dimension_numbers<[1], [0], [0], [1], [0, 0, 1, 1], [], []>} : vector<16x16xf32>, vector<16x256xf32>, vector<16x256xf32> -> vector<16x256xf32>
    %33 = arith.addf %26, %32 : vector<16x256xf32>
    %c1_i32 = arith.constant 1 : i32
    %34 = tpu.dynamic_rotate %10 by %c1_i32 dim 1 : vector<16x256xf32>, i32 -> vector<16x256xf32>
    %c48 = arith.constant 48 : index
    %c0_23 = arith.constant 0 : index
    %35 = vector.load %arg6[%c48, %c0_23] : memref<344x256xf32, #tpu.memory_space<vmem>>, vector<16x256xf32>
    %36 = arith.mulf %34, %35 : vector<16x256xf32>
    %c3 = arith.constant 3 : index
    %c0_24 = arith.constant 0 : index
    %c0_25 = arith.constant 0 : index
    %37 = vector.load %arg3[%c3, %c0_24, %c0_25] : memref<9x16x16xf32, #tpu.memory_space<vmem>>, vector<1x16x16xf32>
    %38 = vector.shape_cast %37 : vector<1x16x16xf32> to vector<16x16xf32>
    %cst_26 = arith.constant dense<0.000000e+00> : vector<16x256xf32>
    %39 = tpu.matmul %38, %36, %cst_26 {dimension_numbers = #tpu.dot_dimension_numbers<[1], [0], [0], [1], [0, 0, 1, 1], [], []>} : vector<16x16xf32>, vector<16x256xf32>, vector<16x256xf32> -> vector<16x256xf32>
    %40 = arith.addf %33, %39 : vector<16x256xf32>
    %c4 = arith.constant 4 : index
    %c0_27 = arith.constant 0 : index
    %c0_28 = arith.constant 0 : index
    %41 = vector.load %arg3[%c4, %c0_27, %c0_28] : memref<9x16x16xf32, #tpu.memory_space<vmem>>, vector<1x16x16xf32>
    %42 = vector.shape_cast %41 : vector<1x16x16xf32> to vector<16x16xf32>
    %cst_29 = arith.constant dense<0.000000e+00> : vector<16x256xf32>
    %43 = tpu.matmul %42, %10, %cst_29 {dimension_numbers = #tpu.dot_dimension_numbers<[1], [0], [0], [1], [0, 0, 1, 1], [], []>} : vector<16x16xf32>, vector<16x256xf32>, vector<16x256xf32> -> vector<16x256xf32>
    %44 = arith.addf %40, %43 : vector<16x256xf32>
    %c255_i32 = arith.constant 255 : i32
    %45 = tpu.dynamic_rotate %10 by %c255_i32 dim 1 : vector<16x256xf32>, i32 -> vector<16x256xf32>
    %c80 = arith.constant 80 : index
    %c0_30 = arith.constant 0 : index
    %46 = vector.load %arg6[%c80, %c0_30] : memref<344x256xf32, #tpu.memory_space<vmem>>, vector<16x256xf32>
    %47 = arith.mulf %45, %46 : vector<16x256xf32>
    %c5 = arith.constant 5 : index
    %c0_31 = arith.constant 0 : index
    %c0_32 = arith.constant 0 : index
    %48 = vector.load %arg3[%c5, %c0_31, %c0_32] : memref<9x16x16xf32, #tpu.memory_space<vmem>>, vector<1x16x16xf32>
    %49 = vector.shape_cast %48 : vector<1x16x16xf32> to vector<16x16xf32>
    %cst_33 = arith.constant dense<0.000000e+00> : vector<16x256xf32>
    %50 = tpu.matmul %49, %47, %cst_33 {dimension_numbers = #tpu.dot_dimension_numbers<[1], [0], [0], [1], [0, 0, 1, 1], [], []>} : vector<16x16xf32>, vector<16x256xf32>, vector<16x256xf32> -> vector<16x256xf32>
    %51 = arith.addf %44, %50 : vector<16x256xf32>
    %c241_i32 = arith.constant 241 : i32
    %52 = tpu.dynamic_rotate %10 by %c241_i32 dim 1 : vector<16x256xf32>, i32 -> vector<16x256xf32>
    %c96 = arith.constant 96 : index
    %c0_34 = arith.constant 0 : index
    %53 = vector.load %arg6[%c96, %c0_34] : memref<344x256xf32, #tpu.memory_space<vmem>>, vector<16x256xf32>
    %54 = arith.mulf %52, %53 : vector<16x256xf32>
    %c6 = arith.constant 6 : index
    %c0_35 = arith.constant 0 : index
    %c0_36 = arith.constant 0 : index
    %55 = vector.load %arg3[%c6, %c0_35, %c0_36] : memref<9x16x16xf32, #tpu.memory_space<vmem>>, vector<1x16x16xf32>
    %56 = vector.shape_cast %55 : vector<1x16x16xf32> to vector<16x16xf32>
    %cst_37 = arith.constant dense<0.000000e+00> : vector<16x256xf32>
    %57 = tpu.matmul %56, %54, %cst_37 {dimension_numbers = #tpu.dot_dimension_numbers<[1], [0], [0], [1], [0, 0, 1, 1], [], []>} : vector<16x16xf32>, vector<16x256xf32>, vector<16x256xf32> -> vector<16x256xf32>
    %58 = arith.addf %51, %57 : vector<16x256xf32>
    %c240_i32 = arith.constant 240 : i32
    %59 = tpu.dynamic_rotate %10 by %c240_i32 dim 1 : vector<16x256xf32>, i32 -> vector<16x256xf32>
    %c112 = arith.constant 112 : index
    %c0_38 = arith.constant 0 : index
    %60 = vector.load %arg6[%c112, %c0_38] : memref<344x256xf32, #tpu.memory_space<vmem>>, vector<16x256xf32>
    %61 = arith.mulf %59, %60 : vector<16x256xf32>
    %c7 = arith.constant 7 : index
    %c0_39 = arith.constant 0 : index
    %c0_40 = arith.constant 0 : index
    %62 = vector.load %arg3[%c7, %c0_39, %c0_40] : memref<9x16x16xf32, #tpu.memory_space<vmem>>, vector<1x16x16xf32>
    %63 = vector.shape_cast %62 : vector<1x16x16xf32> to vector<16x16xf32>
    %cst_41 = arith.constant dense<0.000000e+00> : vector<16x256xf32>
    %64 = tpu.matmul %63, %61, %cst_41 {dimension_numbers = #tpu.dot_dimension_numbers<[1], [0], [0], [1], [0, 0, 1, 1], [], []>} : vector<16x16xf32>, vector<16x256xf32>, vector<16x256xf32> -> vector<16x256xf32>
    %65 = arith.addf %58, %64 : vector<16x256xf32>
    %c239_i32 = arith.constant 239 : i32
    %66 = tpu.dynamic_rotate %10 by %c239_i32 dim 1 : vector<16x256xf32>, i32 -> vector<16x256xf32>
    %c128 = arith.constant 128 : index
    %c0_42 = arith.constant 0 : index
    %67 = vector.load %arg6[%c128, %c0_42] : memref<344x256xf32, #tpu.memory_space<vmem>>, vector<16x256xf32>
    %68 = arith.mulf %66, %67 : vector<16x256xf32>
    %c8 = arith.constant 8 : index
    %c0_43 = arith.constant 0 : index
    %c0_44 = arith.constant 0 : index
    %69 = vector.load %arg3[%c8, %c0_43, %c0_44] : memref<9x16x16xf32, #tpu.memory_space<vmem>>, vector<1x16x16xf32>
    %70 = vector.shape_cast %69 : vector<1x16x16xf32> to vector<16x16xf32>
    %cst_45 = arith.constant dense<0.000000e+00> : vector<16x256xf32>
    %71 = tpu.matmul %70, %68, %cst_45 {dimension_numbers = #tpu.dot_dimension_numbers<[1], [0], [0], [1], [0, 0, 1, 1], [], []>} : vector<16x16xf32>, vector<16x256xf32>, vector<16x256xf32> -> vector<16x256xf32>
    %72 = arith.addf %65, %71 : vector<16x256xf32>
    %c32_46 = arith.constant 32 : index
    %c0_47 = arith.constant 0 : index
    %73 = vector.load %arg5[%c32_46, %c0_47] : memref<56x1xf32, #tpu.memory_space<vmem>>, vector<16x1xf32>
    %74 = vector.broadcast %73 : vector<16x1xf32> to vector<16x256xf32>
    %75 = arith.addf %72, %74 : vector<16x256xf32>
    %cst_48 = arith.constant 0.000000e+00 : f32
    %76 = vector.broadcast %cst_48 : f32 to vector<16x256xf32>
    %77 = arith.maximumf %75, %76 : vector<16x256xf32>
    %78 = vector.extract_strided_slice %77 {offsets = [0, 0], sizes = [8, 256], strides = [1, 1]} : vector<16x256xf32> to vector<8x256xf32>
    %c8_49 = arith.constant 8 : index
    %c0_50 = arith.constant 0 : index
    %79 = vector.load %arg7[%c8_49, %c0_50] : memref<32x256xf32, #tpu.memory_space<vmem>>, vector<8x256xf32>
    tpu.vector_store %arg7[%c8_49, %c0_50], %78 {strides = array<i32>} : memref<32x256xf32, #tpu.memory_space<vmem>>, vector<8x256xf32>,
    %80 = vector.extract_strided_slice %77 {offsets = [8, 0], sizes = [8, 256], strides = [1, 1]} : vector<16x256xf32> to vector<8x256xf32>
    %c24 = arith.constant 24 : index
    %c0_51 = arith.constant 0 : index
    %81 = vector.load %arg7[%c24, %c0_51] : memref<32x256xf32, #tpu.memory_space<vmem>>, vector<8x256xf32>
    tpu.vector_store %arg7[%c24, %c0_51], %80 {strides = array<i32>} : memref<32x256xf32, #tpu.memory_space<vmem>>, vector<8x256xf32>,
    %cst_52 = arith.constant 0.000000e+00 : f32
    %82 = vector.broadcast %cst_52 : f32 to vector<8x256xf32>
    %c34_i32 = arith.constant 34 : i32
    %83 = tpu.dynamic_rotate %11 by %c34_i32 dim 1 : vector<8x256xf32>, i32 -> vector<8x256xf32>
    %c144 = arith.constant 144 : index
    %c0_53 = arith.constant 0 : index
    %84 = vector.load %arg6[%c144, %c0_53] : memref<344x256xf32, #tpu.memory_space<vmem>>, vector<8x256xf32>
    %85 = arith.mulf %83, %84 : vector<8x256xf32>
    %c0_54 = arith.constant 0 : index
    %c0_55 = arith.constant 0 : index
    %c0_56 = arith.constant 0 : index
    %86 = vector.load %arg4[%c0_54, %c0_55, %c0_56] : memref<25x8x8xf32, #tpu.memory_space<vmem>>, vector<1x8x8xf32>
    %87 = vector.shape_cast %86 : vector<1x8x8xf32> to vector<8x8xf32>
    %cst_57 = arith.constant dense<0.000000e+00> : vector<8x256xf32>
    %88 = tpu.matmul %87, %85, %cst_57 {dimension_numbers = #tpu.dot_dimension_numbers<[1], [0], [0], [1], [0, 0, 1, 1], [], []>} : vector<8x8xf32>, vector<8x256xf32>, vector<8x256xf32> -> vector<8x256xf32>
    %89 = arith.addf %82, %88 : vector<8x256xf32>
    %c33_i32 = arith.constant 33 : i32
    %90 = tpu.dynamic_rotate %11 by %c33_i32 dim 1 : vector<8x256xf32>, i32 -> vector<8x256xf32>
    %c152 = arith.constant 152 : index
    %c0_58 = arith.constant 0 : index
    %91 = vector.load %arg6[%c152, %c0_58] : memref<344x256xf32, #tpu.memory_space<vmem>>, vector<8x256xf32>
    %92 = arith.mulf %90, %91 : vector<8x256xf32>
    %c1_59 = arith.constant 1 : index
    %c0_60 = arith.constant 0 : index
    %c0_61 = arith.constant 0 : index
    %93 = vector.load %arg4[%c1_59, %c0_60, %c0_61] : memref<25x8x8xf32, #tpu.memory_space<vmem>>, vector<1x8x8xf32>
    %94 = vector.shape_cast %93 : vector<1x8x8xf32> to vector<8x8xf32>
    %cst_62 = arith.constant dense<0.000000e+00> : vector<8x256xf32>
    %95 = tpu.matmul %94, %92, %cst_62 {dimension_numbers = #tpu.dot_dimension_numbers<[1], [0], [0], [1], [0, 0, 1, 1], [], []>} : vector<8x8xf32>, vector<8x256xf32>, vector<8x256xf32> -> vector<8x256xf32>
    %96 = arith.addf %89, %95 : vector<8x256xf32>
    %c32_i32 = arith.constant 32 : i32
    %97 = tpu.dynamic_rotate %11 by %c32_i32 dim 1 : vector<8x256xf32>, i32 -> vector<8x256xf32>
    %c160 = arith.constant 160 : index
    %c0_63 = arith.constant 0 : index
    %98 = vector.load %arg6[%c160, %c0_63] : memref<344x256xf32, #tpu.memory_space<vmem>>, vector<8x256xf32>
    %99 = arith.mulf %97, %98 : vector<8x256xf32>
    %c2_64 = arith.constant 2 : index
    %c0_65 = arith.constant 0 : index
    %c0_66 = arith.constant 0 : index
    %100 = vector.load %arg4[%c2_64, %c0_65, %c0_66] : memref<25x8x8xf32, #tpu.memory_space<vmem>>, vector<1x8x8xf32>
    %101 = vector.shape_cast %100 : vector<1x8x8xf32> to vector<8x8xf32>
    %cst_67 = arith.constant dense<0.000000e+00> : vector<8x256xf32>
    %102 = tpu.matmul %101, %99, %cst_67 {dimension_numbers = #tpu.dot_dimension_numbers<[1], [0], [0], [1], [0, 0, 1, 1], [], []>} : vector<8x8xf32>, vector<8x256xf32>, vector<8x256xf32> -> vector<8x256xf32>
    %103 = arith.addf %96, %102 : vector<8x256xf32>
    %c31_i32 = arith.constant 31 : i32
    %104 = tpu.dynamic_rotate %11 by %c31_i32 dim 1 : vector<8x256xf32>, i32 -> vector<8x256xf32>
    %c168 = arith.constant 168 : index
    %c0_68 = arith.constant 0 : index
    %105 = vector.load %arg6[%c168, %c0_68] : memref<344x256xf32, #tpu.memory_space<vmem>>, vector<8x256xf32>
    %106 = arith.mulf %104, %105 : vector<8x256xf32>
    %c3_69 = arith.constant 3 : index
    %c0_70 = arith.constant 0 : index
    %c0_71 = arith.constant 0 : index
    %107 = vector.load %arg4[%c3_69, %c0_70, %c0_71] : memref<25x8x8xf32, #tpu.memory_space<vmem>>, vector<1x8x8xf32>
    %108 = vector.shape_cast %107 : vector<1x8x8xf32> to vector<8x8xf32>
    %cst_72 = arith.constant dense<0.000000e+00> : vector<8x256xf32>
    %109 = tpu.matmul %108, %106, %cst_72 {dimension_numbers = #tpu.dot_dimension_numbers<[1], [0], [0], [1], [0, 0, 1, 1], [], []>} : vector<8x8xf32>, vector<8x256xf32>, vector<8x256xf32> -> vector<8x256xf32>
    %110 = arith.addf %103, %109 : vector<8x256xf32>
    %c30_i32 = arith.constant 30 : i32
    %111 = tpu.dynamic_rotate %11 by %c30_i32 dim 1 : vector<8x256xf32>, i32 -> vector<8x256xf32>
    %c176 = arith.constant 176 : index
    %c0_73 = arith.constant 0 : index
    %112 = vector.load %arg6[%c176, %c0_73] : memref<344x256xf32, #tpu.memory_space<vmem>>, vector<8x256xf32>
    %113 = arith.mulf %111, %112 : vector<8x256xf32>
    %c4_74 = arith.constant 4 : index
    %c0_75 = arith.constant 0 : index
    %c0_76 = arith.constant 0 : index
    %114 = vector.load %arg4[%c4_74, %c0_75, %c0_76] : memref<25x8x8xf32, #tpu.memory_space<vmem>>, vector<1x8x8xf32>
    %115 = vector.shape_cast %114 : vector<1x8x8xf32> to vector<8x8xf32>
    %cst_77 = arith.constant dense<0.000000e+00> : vector<8x256xf32>
    %116 = tpu.matmul %115, %113, %cst_77 {dimension_numbers = #tpu.dot_dimension_numbers<[1], [0], [0], [1], [0, 0, 1, 1], [], []>} : vector<8x8xf32>, vector<8x256xf32>, vector<8x256xf32> -> vector<8x256xf32>
    %117 = arith.addf %110, %116 : vector<8x256xf32>
    %c18_i32 = arith.constant 18 : i32
    %118 = tpu.dynamic_rotate %11 by %c18_i32 dim 1 : vector<8x256xf32>, i32 -> vector<8x256xf32>
    %c184 = arith.constant 184 : index
    %c0_78 = arith.constant 0 : index
    %119 = vector.load %arg6[%c184, %c0_78] : memref<344x256xf32, #tpu.memory_space<vmem>>, vector<8x256xf32>
    %120 = arith.mulf %118, %119 : vector<8x256xf32>
    %c5_79 = arith.constant 5 : index
    %c0_80 = arith.constant 0 : index
    %c0_81 = arith.constant 0 : index
    %121 = vector.load %arg4[%c5_79, %c0_80, %c0_81] : memref<25x8x8xf32, #tpu.memory_space<vmem>>, vector<1x8x8xf32>
    %122 = vector.shape_cast %121 : vector<1x8x8xf32> to vector<8x8xf32>
    %cst_82 = arith.constant dense<0.000000e+00> : vector<8x256xf32>
    %123 = tpu.matmul %122, %120, %cst_82 {dimension_numbers = #tpu.dot_dimension_numbers<[1], [0], [0], [1], [0, 0, 1, 1], [], []>} : vector<8x8xf32>, vector<8x256xf32>, vector<8x256xf32> -> vector<8x256xf32>
    %124 = arith.addf %117, %123 : vector<8x256xf32>
    %c17_i32_83 = arith.constant 17 : i32
    %125 = tpu.dynamic_rotate %11 by %c17_i32_83 dim 1 : vector<8x256xf32>, i32 -> vector<8x256xf32>
    %c192 = arith.constant 192 : index
    %c0_84 = arith.constant 0 : index
    %126 = vector.load %arg6[%c192, %c0_84] : memref<344x256xf32, #tpu.memory_space<vmem>>, vector<8x256xf32>
    %127 = arith.mulf %125, %126 : vector<8x256xf32>
    %c6_85 = arith.constant 6 : index
    %c0_86 = arith.constant 0 : index
    %c0_87 = arith.constant 0 : index
    %128 = vector.load %arg4[%c6_85, %c0_86, %c0_87] : memref<25x8x8xf32, #tpu.memory_space<vmem>>, vector<1x8x8xf32>
    %129 = vector.shape_cast %128 : vector<1x8x8xf32> to vector<8x8xf32>
    %cst_88 = arith.constant dense<0.000000e+00> : vector<8x256xf32>
    %130 = tpu.matmul %129, %127, %cst_88 {dimension_numbers = #tpu.dot_dimension_numbers<[1], [0], [0], [1], [0, 0, 1, 1], [], []>} : vector<8x8xf32>, vector<8x256xf32>, vector<8x256xf32> -> vector<8x256xf32>
    %131 = arith.addf %124, %130 : vector<8x256xf32>
    %c16_i32_89 = arith.constant 16 : i32
    %132 = tpu.dynamic_rotate %11 by %c16_i32_89 dim 1 : vector<8x256xf32>, i32 -> vector<8x256xf32>
    %c200 = arith.constant 200 : index
    %c0_90 = arith.constant 0 : index
    %133 = vector.load %arg6[%c200, %c0_90] : memref<344x256xf32, #tpu.memory_space<vmem>>, vector<8x256xf32>
    %134 = arith.mulf %132, %133 : vector<8x256xf32>
    %c7_91 = arith.constant 7 : index
    %c0_92 = arith.constant 0 : index
    %c0_93 = arith.constant 0 : index
    %135 = vector.load %arg4[%c7_91, %c0_92, %c0_93] : memref<25x8x8xf32, #tpu.memory_space<vmem>>, vector<1x8x8xf32>
    %136 = vector.shape_cast %135 : vector<1x8x8xf32> to vector<8x8xf32>
    %cst_94 = arith.constant dense<0.000000e+00> : vector<8x256xf32>
    %137 = tpu.matmul %136, %134, %cst_94 {dimension_numbers = #tpu.dot_dimension_numbers<[1], [0], [0], [1], [0, 0, 1, 1], [], []>} : vector<8x8xf32>, vector<8x256xf32>, vector<8x256xf32> -> vector<8x256xf32>
    %138 = arith.addf %131, %137 : vector<8x256xf32>
    %c15_i32_95 = arith.constant 15 : i32
    %139 = tpu.dynamic_rotate %11 by %c15_i32_95 dim 1 : vector<8x256xf32>, i32 -> vector<8x256xf32>
    %c208 = arith.constant 208 : index
    %c0_96 = arith.constant 0 : index
    %140 = vector.load %arg6[%c208, %c0_96] : memref<344x256xf32, #tpu.memory_space<vmem>>, vector<8x256xf32>
    %141 = arith.mulf %139, %140 : vector<8x256xf32>
    %c8_97 = arith.constant 8 : index
    %c0_98 = arith.constant 0 : index
    %c0_99 = arith.constant 0 : index
    %142 = vector.load %arg4[%c8_97, %c0_98, %c0_99] : memref<25x8x8xf32, #tpu.memory_space<vmem>>, vector<1x8x8xf32>
    %143 = vector.shape_cast %142 : vector<1x8x8xf32> to vector<8x8xf32>
    %cst_100 = arith.constant dense<0.000000e+00> : vector<8x256xf32>
    %144 = tpu.matmul %143, %141, %cst_100 {dimension_numbers = #tpu.dot_dimension_numbers<[1], [0], [0], [1], [0, 0, 1, 1], [], []>} : vector<8x8xf32>, vector<8x256xf32>, vector<8x256xf32> -> vector<8x256xf32>
    %145 = arith.addf %138, %144 : vector<8x256xf32>
    %c14_i32 = arith.constant 14 : i32
    %146 = tpu.dynamic_rotate %11 by %c14_i32 dim 1 : vector<8x256xf32>, i32 -> vector<8x256xf32>
    %c216 = arith.constant 216 : index
    %c0_101 = arith.constant 0 : index
    %147 = vector.load %arg6[%c216, %c0_101] : memref<344x256xf32, #tpu.memory_space<vmem>>, vector<8x256xf32>
    %148 = arith.mulf %146, %147 : vector<8x256xf32>
    %c9 = arith.constant 9 : index
    %c0_102 = arith.constant 0 : index
    %c0_103 = arith.constant 0 : index
    %149 = vector.load %arg4[%c9, %c0_102, %c0_103] : memref<25x8x8xf32, #tpu.memory_space<vmem>>, vector<1x8x8xf32>
    %150 = vector.shape_cast %149 : vector<1x8x8xf32> to vector<8x8xf32>
    %cst_104 = arith.constant dense<0.000000e+00> : vector<8x256xf32>
    %151 = tpu.matmul %150, %148, %cst_104 {dimension_numbers = #tpu.dot_dimension_numbers<[1], [0], [0], [1], [0, 0, 1, 1], [], []>} : vector<8x8xf32>, vector<8x256xf32>, vector<8x256xf32> -> vector<8x256xf32>
    %152 = arith.addf %145, %151 : vector<8x256xf32>
    %c2_i32 = arith.constant 2 : i32
    %153 = tpu.dynamic_rotate %11 by %c2_i32 dim 1 : vector<8x256xf32>, i32 -> vector<8x256xf32>
    %c224 = arith.constant 224 : index
    %c0_105 = arith.constant 0 : index
    %154 = vector.load %arg6[%c224, %c0_105] : memref<344x256xf32, #tpu.memory_space<vmem>>, vector<8x256xf32>
    %155 = arith.mulf %153, %154 : vector<8x256xf32>
    %c10 = arith.constant 10 : index
    %c0_106 = arith.constant 0 : index
    %c0_107 = arith.constant 0 : index
    %156 = vector.load %arg4[%c10, %c0_106, %c0_107] : memref<25x8x8xf32, #tpu.memory_space<vmem>>, vector<1x8x8xf32>
    %157 = vector.shape_cast %156 : vector<1x8x8xf32> to vector<8x8xf32>
    %cst_108 = arith.constant dense<0.000000e+00> : vector<8x256xf32>
    %158 = tpu.matmul %157, %155, %cst_108 {dimension_numbers = #tpu.dot_dimension_numbers<[1], [0], [0], [1], [0, 0, 1, 1], [], []>} : vector<8x8xf32>, vector<8x256xf32>, vector<8x256xf32> -> vector<8x256xf32>
    %159 = arith.addf %152, %158 : vector<8x256xf32>
    %c1_i32_109 = arith.constant 1 : i32
    %160 = tpu.dynamic_rotate %11 by %c1_i32_109 dim 1 : vector<8x256xf32>, i32 -> vector<8x256xf32>
    %c232 = arith.constant 232 : index
    %c0_110 = arith.constant 0 : index
    %161 = vector.load %arg6[%c232, %c0_110] : memref<344x256xf32, #tpu.memory_space<vmem>>, vector<8x256xf32>
    %162 = arith.mulf %160, %161 : vector<8x256xf32>
    %c11 = arith.constant 11 : index
    %c0_111 = arith.constant 0 : index
    %c0_112 = arith.constant 0 : index
    %163 = vector.load %arg4[%c11, %c0_111, %c0_112] : memref<25x8x8xf32, #tpu.memory_space<vmem>>, vector<1x8x8xf32>
    %164 = vector.shape_cast %163 : vector<1x8x8xf32> to vector<8x8xf32>
    %cst_113 = arith.constant dense<0.000000e+00> : vector<8x256xf32>
    %165 = tpu.matmul %164, %162, %cst_113 {dimension_numbers = #tpu.dot_dimension_numbers<[1], [0], [0], [1], [0, 0, 1, 1], [], []>} : vector<8x8xf32>, vector<8x256xf32>, vector<8x256xf32> -> vector<8x256xf32>
    %166 = arith.addf %159, %165 : vector<8x256xf32>
    %c12 = arith.constant 12 : index
    %c0_114 = arith.constant 0 : index
    %c0_115 = arith.constant 0 : index
    %167 = vector.load %arg4[%c12, %c0_114, %c0_115] : memref<25x8x8xf32, #tpu.memory_space<vmem>>, vector<1x8x8xf32>
    %168 = vector.shape_cast %167 : vector<1x8x8xf32> to vector<8x8xf32>
    %cst_116 = arith.constant dense<0.000000e+00> : vector<8x256xf32>
    %169 = tpu.matmul %168, %11, %cst_116 {dimension_numbers = #tpu.dot_dimension_numbers<[1], [0], [0], [1], [0, 0, 1, 1], [], []>} : vector<8x8xf32>, vector<8x256xf32>, vector<8x256xf32> -> vector<8x256xf32>
    %170 = arith.addf %166, %169 : vector<8x256xf32>
    %c255_i32_117 = arith.constant 255 : i32
    %171 = tpu.dynamic_rotate %11 by %c255_i32_117 dim 1 : vector<8x256xf32>, i32 -> vector<8x256xf32>
    %c248 = arith.constant 248 : index
    %c0_118 = arith.constant 0 : index
    %172 = vector.load %arg6[%c248, %c0_118] : memref<344x256xf32, #tpu.memory_space<vmem>>, vector<8x256xf32>
    %173 = arith.mulf %171, %172 : vector<8x256xf32>
    %c13 = arith.constant 13 : index
    %c0_119 = arith.constant 0 : index
    %c0_120 = arith.constant 0 : index
    %174 = vector.load %arg4[%c13, %c0_119, %c0_120] : memref<25x8x8xf32, #tpu.memory_space<vmem>>, vector<1x8x8xf32>
    %175 = vector.shape_cast %174 : vector<1x8x8xf32> to vector<8x8xf32>
    %cst_121 = arith.constant dense<0.000000e+00> : vector<8x256xf32>
    %176 = tpu.matmul %175, %173, %cst_121 {dimension_numbers = #tpu.dot_dimension_numbers<[1], [0], [0], [1], [0, 0, 1, 1], [], []>} : vector<8x8xf32>, vector<8x256xf32>, vector<8x256xf32> -> vector<8x256xf32>
    %177 = arith.addf %170, %176 : vector<8x256xf32>
    %c254_i32 = arith.constant 254 : i32
    %178 = tpu.dynamic_rotate %11 by %c254_i32 dim 1 : vector<8x256xf32>, i32 -> vector<8x256xf32>
    %c256 = arith.constant 256 : index
    %c0_122 = arith.constant 0 : index
    %179 = vector.load %arg6[%c256, %c0_122] : memref<344x256xf32, #tpu.memory_space<vmem>>, vector<8x256xf32>
    %180 = arith.mulf %178, %179 : vector<8x256xf32>
    %c14 = arith.constant 14 : index
    %c0_123 = arith.constant 0 : index
    %c0_124 = arith.constant 0 : index
    %181 = vector.load %arg4[%c14, %c0_123, %c0_124] : memref<25x8x8xf32, #tpu.memory_space<vmem>>, vector<1x8x8xf32>
    %182 = vector.shape_cast %181 : vector<1x8x8xf32> to vector<8x8xf32>
    %cst_125 = arith.constant dense<0.000000e+00> : vector<8x256xf32>
    %183 = tpu.matmul %182, %180, %cst_125 {dimension_numbers = #tpu.dot_dimension_numbers<[1], [0], [0], [1], [0, 0, 1, 1], [], []>} : vector<8x8xf32>, vector<8x256xf32>, vector<8x256xf32> -> vector<8x256xf32>
    %184 = arith.addf %177, %183 : vector<8x256xf32>
    %c242_i32 = arith.constant 242 : i32
    %185 = tpu.dynamic_rotate %11 by %c242_i32 dim 1 : vector<8x256xf32>, i32 -> vector<8x256xf32>
    %c264 = arith.constant 264 : index
    %c0_126 = arith.constant 0 : index
    %186 = vector.load %arg6[%c264, %c0_126] : memref<344x256xf32, #tpu.memory_space<vmem>>, vector<8x256xf32>
    %187 = arith.mulf %185, %186 : vector<8x256xf32>
    %c15 = arith.constant 15 : index
    %c0_127 = arith.constant 0 : index
    %c0_128 = arith.constant 0 : index
    %188 = vector.load %arg4[%c15, %c0_127, %c0_128] : memref<25x8x8xf32, #tpu.memory_space<vmem>>, vector<1x8x8xf32>
    %189 = vector.shape_cast %188 : vector<1x8x8xf32> to vector<8x8xf32>
    %cst_129 = arith.constant dense<0.000000e+00> : vector<8x256xf32>
    %190 = tpu.matmul %189, %187, %cst_129 {dimension_numbers = #tpu.dot_dimension_numbers<[1], [0], [0], [1], [0, 0, 1, 1], [], []>} : vector<8x8xf32>, vector<8x256xf32>, vector<8x256xf32> -> vector<8x256xf32>
    %191 = arith.addf %184, %190 : vector<8x256xf32>
    %c241_i32_130 = arith.constant 241 : i32
    %192 = tpu.dynamic_rotate %11 by %c241_i32_130 dim 1 : vector<8x256xf32>, i32 -> vector<8x256xf32>
    %c272 = arith.constant 272 : index
    %c0_131 = arith.constant 0 : index
    %193 = vector.load %arg6[%c272, %c0_131] : memref<344x256xf32, #tpu.memory_space<vmem>>, vector<8x256xf32>
    %194 = arith.mulf %192, %193 : vector<8x256xf32>
    %c16_132 = arith.constant 16 : index
    %c0_133 = arith.constant 0 : index
    %c0_134 = arith.constant 0 : index
    %195 = vector.load %arg4[%c16_132, %c0_133, %c0_134] : memref<25x8x8xf32, #tpu.memory_space<vmem>>, vector<1x8x8xf32>
    %196 = vector.shape_cast %195 : vector<1x8x8xf32> to vector<8x8xf32>
    %cst_135 = arith.constant dense<0.000000e+00> : vector<8x256xf32>
    %197 = tpu.matmul %196, %194, %cst_135 {dimension_numbers = #tpu.dot_dimension_numbers<[1], [0], [0], [1], [0, 0, 1, 1], [], []>} : vector<8x8xf32>, vector<8x256xf32>, vector<8x256xf32> -> vector<8x256xf32>
    %198 = arith.addf %191, %197 : vector<8x256xf32>
    %c240_i32_136 = arith.constant 240 : i32
    %199 = tpu.dynamic_rotate %11 by %c240_i32_136 dim 1 : vector<8x256xf32>, i32 -> vector<8x256xf32>
    %c280 = arith.constant 280 : index
    %c0_137 = arith.constant 0 : index
    %200 = vector.load %arg6[%c280, %c0_137] : memref<344x256xf32, #tpu.memory_space<vmem>>, vector<8x256xf32>
    %201 = arith.mulf %199, %200 : vector<8x256xf32>
    %c17 = arith.constant 17 : index
    %c0_138 = arith.constant 0 : index
    %c0_139 = arith.constant 0 : index
    %202 = vector.load %arg4[%c17, %c0_138, %c0_139] : memref<25x8x8xf32, #tpu.memory_space<vmem>>, vector<1x8x8xf32>
    %203 = vector.shape_cast %202 : vector<1x8x8xf32> to vector<8x8xf32>
    %cst_140 = arith.constant dense<0.000000e+00> : vector<8x256xf32>
    %204 = tpu.matmul %203, %201, %cst_140 {dimension_numbers = #tpu.dot_dimension_numbers<[1], [0], [0], [1], [0, 0, 1, 1], [], []>} : vector<8x8xf32>, vector<8x256xf32>, vector<8x256xf32> -> vector<8x256xf32>
    %205 = arith.addf %198, %204 : vector<8x256xf32>
    %c239_i32_141 = arith.constant 239 : i32
    %206 = tpu.dynamic_rotate %11 by %c239_i32_141 dim 1 : vector<8x256xf32>, i32 -> vector<8x256xf32>
    %c288 = arith.constant 288 : index
    %c0_142 = arith.constant 0 : index
    %207 = vector.load %arg6[%c288, %c0_142] : memref<344x256xf32, #tpu.memory_space<vmem>>, vector<8x256xf32>
    %208 = arith.mulf %206, %207 : vector<8x256xf32>
    %c18 = arith.constant 18 : index
    %c0_143 = arith.constant 0 : index
    %c0_144 = arith.constant 0 : index
    %209 = vector.load %arg4[%c18, %c0_143, %c0_144] : memref<25x8x8xf32, #tpu.memory_space<vmem>>, vector<1x8x8xf32>
    %210 = vector.shape_cast %209 : vector<1x8x8xf32> to vector<8x8xf32>
    %cst_145 = arith.constant dense<0.000000e+00> : vector<8x256xf32>
    %211 = tpu.matmul %210, %208, %cst_145 {dimension_numbers = #tpu.dot_dimension_numbers<[1], [0], [0], [1], [0, 0, 1, 1], [], []>} : vector<8x8xf32>, vector<8x256xf32>, vector<8x256xf32> -> vector<8x256xf32>
    %212 = arith.addf %205, %211 : vector<8x256xf32>
    %c238_i32 = arith.constant 238 : i32
    %213 = tpu.dynamic_rotate %11 by %c238_i32 dim 1 : vector<8x256xf32>, i32 -> vector<8x256xf32>
    %c296 = arith.constant 296 : index
    %c0_146 = arith.constant 0 : index
    %214 = vector.load %arg6[%c296, %c0_146] : memref<344x256xf32, #tpu.memory_space<vmem>>, vector<8x256xf32>
    %215 = arith.mulf %213, %214 : vector<8x256xf32>
    %c19 = arith.constant 19 : index
    %c0_147 = arith.constant 0 : index
    %c0_148 = arith.constant 0 : index
    %216 = vector.load %arg4[%c19, %c0_147, %c0_148] : memref<25x8x8xf32, #tpu.memory_space<vmem>>, vector<1x8x8xf32>
    %217 = vector.shape_cast %216 : vector<1x8x8xf32> to vector<8x8xf32>
    %cst_149 = arith.constant dense<0.000000e+00> : vector<8x256xf32>
    %218 = tpu.matmul %217, %215, %cst_149 {dimension_numbers = #tpu.dot_dimension_numbers<[1], [0], [0], [1], [0, 0, 1, 1], [], []>} : vector<8x8xf32>, vector<8x256xf32>, vector<8x256xf32> -> vector<8x256xf32>
    %219 = arith.addf %212, %218 : vector<8x256xf32>
    %c226_i32 = arith.constant 226 : i32
    %220 = tpu.dynamic_rotate %11 by %c226_i32 dim 1 : vector<8x256xf32>, i32 -> vector<8x256xf32>
    %c304 = arith.constant 304 : index
    %c0_150 = arith.constant 0 : index
    %221 = vector.load %arg6[%c304, %c0_150] : memref<344x256xf32, #tpu.memory_space<vmem>>, vector<8x256xf32>
    %222 = arith.mulf %220, %221 : vector<8x256xf32>
    %c20 = arith.constant 20 : index
    %c0_151 = arith.constant 0 : index
    %c0_152 = arith.constant 0 : index
    %223 = vector.load %arg4[%c20, %c0_151, %c0_152] : memref<25x8x8xf32, #tpu.memory_space<vmem>>, vector<1x8x8xf32>
    %224 = vector.shape_cast %223 : vector<1x8x8xf32> to vector<8x8xf32>
    %cst_153 = arith.constant dense<0.000000e+00> : vector<8x256xf32>
    %225 = tpu.matmul %224, %222, %cst_153 {dimension_numbers = #tpu.dot_dimension_numbers<[1], [0], [0], [1], [0, 0, 1, 1], [], []>} : vector<8x8xf32>, vector<8x256xf32>, vector<8x256xf32> -> vector<8x256xf32>
    %226 = arith.addf %219, %225 : vector<8x256xf32>
    %c225_i32 = arith.constant 225 : i32
    %227 = tpu.dynamic_rotate %11 by %c225_i32 dim 1 : vector<8x256xf32>, i32 -> vector<8x256xf32>
    %c312 = arith.constant 312 : index
    %c0_154 = arith.constant 0 : index
    %228 = vector.load %arg6[%c312, %c0_154] : memref<344x256xf32, #tpu.memory_space<vmem>>, vector<8x256xf32>
    %229 = arith.mulf %227, %228 : vector<8x256xf32>
    %c21 = arith.constant 21 : index
    %c0_155 = arith.constant 0 : index
    %c0_156 = arith.constant 0 : index
    %230 = vector.load %arg4[%c21, %c0_155, %c0_156] : memref<25x8x8xf32, #tpu.memory_space<vmem>>, vector<1x8x8xf32>
    %231 = vector.shape_cast %230 : vector<1x8x8xf32> to vector<8x8xf32>
    %cst_157 = arith.constant dense<0.000000e+00> : vector<8x256xf32>
    %232 = tpu.matmul %231, %229, %cst_157 {dimension_numbers = #tpu.dot_dimension_numbers<[1], [0], [0], [1], [0, 0, 1, 1], [], []>} : vector<8x8xf32>, vector<8x256xf32>, vector<8x256xf32> -> vector<8x256xf32>
    %233 = arith.addf %226, %232 : vector<8x256xf32>
    %c224_i32 = arith.constant 224 : i32
    %234 = tpu.dynamic_rotate %11 by %c224_i32 dim 1 : vector<8x256xf32>, i32 -> vector<8x256xf32>
    %c320 = arith.constant 320 : index
    %c0_158 = arith.constant 0 : index
    %235 = vector.load %arg6[%c320, %c0_158] : memref<344x256xf32, #tpu.memory_space<vmem>>, vector<8x256xf32>
    %236 = arith.mulf %234, %235 : vector<8x256xf32>
    %c22 = arith.constant 22 : index
    %c0_159 = arith.constant 0 : index
    %c0_160 = arith.constant 0 : index
    %237 = vector.load %arg4[%c22, %c0_159, %c0_160] : memref<25x8x8xf32, #tpu.memory_space<vmem>>, vector<1x8x8xf32>
    %238 = vector.shape_cast %237 : vector<1x8x8xf32> to vector<8x8xf32>
    %cst_161 = arith.constant dense<0.000000e+00> : vector<8x256xf32>
    %239 = tpu.matmul %238, %236, %cst_161 {dimension_numbers = #tpu.dot_dimension_numbers<[1], [0], [0], [1], [0, 0, 1, 1], [], []>} : vector<8x8xf32>, vector<8x256xf32>, vector<8x256xf32> -> vector<8x256xf32>
    %240 = arith.addf %233, %239 : vector<8x256xf32>
    %c223_i32 = arith.constant 223 : i32
    %241 = tpu.dynamic_rotate %11 by %c223_i32 dim 1 : vector<8x256xf32>, i32 -> vector<8x256xf32>
    %c328 = arith.constant 328 : index
    %c0_162 = arith.constant 0 : index
    %242 = vector.load %arg6[%c328, %c0_162] : memref<344x256xf32, #tpu.memory_space<vmem>>, vector<8x256xf32>
    %243 = arith.mulf %241, %242 : vector<8x256xf32>
    %c23 = arith.constant 23 : index
    %c0_163 = arith.constant 0 : index
    %c0_164 = arith.constant 0 : index
    %244 = vector.load %arg4[%c23, %c0_163, %c0_164] : memref<25x8x8xf32, #tpu.memory_space<vmem>>, vector<1x8x8xf32>
    %245 = vector.shape_cast %244 : vector<1x8x8xf32> to vector<8x8xf32>
    %cst_165 = arith.constant dense<0.000000e+00> : vector<8x256xf32>
    %246 = tpu.matmul %245, %243, %cst_165 {dimension_numbers = #tpu.dot_dimension_numbers<[1], [0], [0], [1], [0, 0, 1, 1], [], []>} : vector<8x8xf32>, vector<8x256xf32>, vector<8x256xf32> -> vector<8x256xf32>
    %247 = arith.addf %240, %246 : vector<8x256xf32>
    %c222_i32 = arith.constant 222 : i32
    %248 = tpu.dynamic_rotate %11 by %c222_i32 dim 1 : vector<8x256xf32>, i32 -> vector<8x256xf32>
    %c336 = arith.constant 336 : index
    %c0_166 = arith.constant 0 : index
    %249 = vector.load %arg6[%c336, %c0_166] : memref<344x256xf32, #tpu.memory_space<vmem>>, vector<8x256xf32>
    %250 = arith.mulf %248, %249 : vector<8x256xf32>
    %c24_167 = arith.constant 24 : index
    %c0_168 = arith.constant 0 : index
    %c0_169 = arith.constant 0 : index
    %251 = vector.load %arg4[%c24_167, %c0_168, %c0_169] : memref<25x8x8xf32, #tpu.memory_space<vmem>>, vector<1x8x8xf32>
    %252 = vector.shape_cast %251 : vector<1x8x8xf32> to vector<8x8xf32>
    %cst_170 = arith.constant dense<0.000000e+00> : vector<8x256xf32>
    %253 = tpu.matmul %252, %250, %cst_170 {dimension_numbers = #tpu.dot_dimension_numbers<[1], [0], [0], [1], [0, 0, 1, 1], [], []>} : vector<8x8xf32>, vector<8x256xf32>, vector<8x256xf32> -> vector<8x256xf32>
    %254 = arith.addf %247, %253 : vector<8x256xf32>
    %c48_171 = arith.constant 48 : index
    %c0_172 = arith.constant 0 : index
    %255 = vector.load %arg5[%c48_171, %c0_172] : memref<56x1xf32, #tpu.memory_space<vmem>>, vector<8x1xf32>
    %256 = vector.broadcast %255 : vector<8x1xf32> to vector<8x256xf32>
    %257 = arith.addf %254, %256 : vector<8x256xf32>
    %cst_173 = arith.constant 0.000000e+00 : f32
    %258 = vector.broadcast %cst_173 : f32 to vector<8x256xf32>
    %259 = arith.maximumf %257, %258 : vector<8x256xf32>
    %c16_174 = arith.constant 16 : index
    %c0_175 = arith.constant 0 : index
    %260 = vector.load %arg7[%c16_174, %c0_175] : memref<32x256xf32, #tpu.memory_space<vmem>>, vector<8x256xf32>
    tpu.vector_store %arg7[%c16_174, %c0_175], %259 {strides = array<i32>} : memref<32x256xf32, #tpu.memory_space<vmem>>, vector<8x256xf32>,
    return
  }
  func.func @transform_0(%arg0: i32) -> (i32, i32) {
    %c0_i32 = arith.constant 0 : i32
    %c0_i32_0 = arith.constant 0 : i32
    return %c0_i32, %arg0 : i32, i32
  }
  func.func @transform_1(%arg0: i32) -> (i32, i32) {
    %c0_i32 = arith.constant 0 : i32
    %c0_i32_0 = arith.constant 0 : i32
    %c0_i32_1 = arith.constant 0 : i32
    return %c0_i32, %c0_i32_0 : i32, i32
  }
  func.func @transform_2(%arg0: i32) -> (i32, i32, i32) {
    %c0_i32 = arith.constant 0 : i32
    %c0_i32_0 = arith.constant 0 : i32
    %c0_i32_1 = arith.constant 0 : i32
    %c0_i32_2 = arith.constant 0 : i32
    return %c0_i32, %c0_i32_0, %c0_i32_1 : i32, i32, i32
  }
  func.func @transform_3(%arg0: i32) -> (i32, i32, i32) {
    %c0_i32 = arith.constant 0 : i32
    %c0_i32_0 = arith.constant 0 : i32
    %c0_i32_1 = arith.constant 0 : i32
    %c0_i32_2 = arith.constant 0 : i32
    return %c0_i32, %c0_i32_0, %c0_i32_1 : i32, i32, i32
  }
  func.func @transform_4(%arg0: i32) -> (i32, i32) {
    %c0_i32 = arith.constant 0 : i32
    %c0_i32_0 = arith.constant 0 : i32
    %c0_i32_1 = arith.constant 0 : i32
    return %c0_i32, %c0_i32_0 : i32, i32
  }
  func.func @transform_5(%arg0: i32) -> (i32, i32) {
    %c0_i32 = arith.constant 0 : i32
    %c0_i32_0 = arith.constant 0 : i32
    %c0_i32_1 = arith.constant 0 : i32
    return %c0_i32, %c0_i32_0 : i32, i32
  }
  func.func @transform_6(%arg0: i32) -> (i32, i32) {
    %c0_i32 = arith.constant 0 : i32
    %c0_i32_0 = arith.constant 0 : i32
    return %c0_i32, %arg0 : i32, i32
  }
}

</mosaic_0001>

<llo_original>
// kernel: inception_block.1
$region0: #{inception_block.1}
  #allocation0 [shape = 'u32[]', space=smem, size = 0x4, offset = 0x4, fixed_abs, tag = 'smem constant byte address 0x4 - core index']
  #allocation1 [shape = 'u32[144,128]{1,0:T(1,128)}', space=vmem, size = 0x12000, scoped, tag = 'internal scratch']
  %s0 = inlined_call_operand.vmem [shape: f32[4,512], index: 0, kind: input, shape index: {}]
  %s1 = inlined_call_operand.vmem [shape: f32[32,4], index: 1, kind: input, shape index: {}]
  %s2 = inlined_call_operand.vmem [shape: f32[9,16,16], index: 2, kind: input, shape index: {}]
  %s3 = inlined_call_operand.vmem [shape: f32[25,8,8], index: 3, kind: input, shape index: {}]
  %s4 = inlined_call_operand.vmem [shape: f32[56,1], index: 4, kind: input, shape index: {}]
  %s5 = inlined_call_operand.vmem [shape: f32[344,256], index: 5, kind: input, shape index: {}]
  %s6 = inlined_call_operand.vmem [shape: f32[32,512], index: 6, kind: output, shape index: {}]
  %s7 = sld [smem:[#allocation0]]
  $region76: #{inception_block.1} parent=0
    _
  %s9 = ssub.s32 1, %s7
  %s10 = scalar_select 0, %s9, %s7
  $region1: #{inception_block.1} parent=0
    #allocation2 [shape = 'u8[65536]{0}', space=vmem, size = 0x10000, scoped, tag = 'output window, operand 0']
    loop: start=0, step=1, limit=4
    $region2: #{inception_block.1} parent=1 // loop_pre_header
      _
    $region3: #{inception_block.1} parent=1 // loop_header
      %s12 = sphi 0, %s16
      %p13 = scmp.ge.s32.totalorder %s12, 4
      %s22 = sphi 0, %s24
      %s25 = sphi 0, %s22
      %s26 = sphi 0, %s25
      %s42 = sphi 0, %s26
      %s46 = sphi 0, %s46
      %s48 = sphi 0, %s46
      %s49 = sphi 0, %s48
      %s63 = sphi 0, %s49
      %s67 = sphi 0, %s67
      %s69 = sphi 0, %s67
      %s70 = sphi 0, %s69
      %s84 = sphi 0, %s70
      %s88 = sphi 0, %s88
      %s90 = sphi 0, %s88
      %s91 = sphi 0, %s90
      %s105 = sphi 0, %s91
      %s109 = sphi 0, %s109
      %s111 = sphi 0, %s109
      %s112 = sphi 0, %s111
      %s126 = sphi 0, %s112
      %s130 = sphi 0, %s130
      %s132 = sphi 0, %s130
      %s133 = sphi 0, %s132
      %s147 = sphi 0, %s133
      %s153 = sphi 0, %s155
      %s156 = sphi 0, %s153
      %s157 = sphi 0, %s156
      %s173 = sphi 0, %s157
    $region4: #{inception_block.1} parent=1 // loop_header_branch
      %15 = sbr.rel (%p13) target = $region8
    $region5: #{inception_block.1} parent=1 // loop_body
      %s17 = ssub.s32 %s12, 1
      %s18 = ssub.s32 %s12, 2
      %s19 = sadd.s32 %s12, 1
      %s20 = ssub.s32 %s12, %s19
      %p21 = scmp.eq.s32.totalorder %s20, 0
      %s23 = sadd.s32 %s22, 1
      %s24 = scalar_select %p21, %s22, %s23
      %p27 = pneg %p21
      %p28 = scmp.eq.s32.totalorder %s12, 1
      %p29 = por %p27, %p28
      %p30 = scmp.ne.s32.totalorder %s22, %s25
      %p31 = scmp.eq.s32.totalorder %s12, 0
      %p32 = por %p30, %p31
      %p33 = scmp.ne.s32.totalorder %s22, %s25
      %p34 = scmp.eq.s32.totalorder %s17, 1
      %p35 = por %p33, %p34
      %p36 = scmp.ne.s32.totalorder %s25, %s26
      %p37 = scmp.eq.s32.totalorder %s17, 0
      %p38 = por %p36, %p37
      %p39 = scmp.ne.s32.totalorder %s25, %s26
      %p40 = scmp.eq.s32.totalorder %s18, 1
      %p41 = por %p39, %p40
      %p43 = scmp.ne.s32.totalorder %s26, %s42
      %p44 = scmp.eq.s32.totalorder %s18, 0
      %p45 = por %p43, %p44
      %s47 = sadd.s32 %s46, 1
      %p50 = scmp.eq.s32.totalorder %s12, 1
      %p51 = scmp.ne.s32.totalorder %s46, %s48
      %p52 = scmp.eq.s32.totalorder %s12, 0
      %p53 = por %p51, %p52
      %p54 = scmp.ne.s32.totalorder %s46, %s48
      %p55 = scmp.eq.s32.totalorder %s17, 1
      %p56 = por %p54, %p55
      %p57 = scmp.ne.s32.totalorder %s48, %s49
      %p58 = scmp.eq.s32.totalorder %s17, 0
      %p59 = por %p57, %p58
      %p60 = scmp.ne.s32.totalorder %s48, %s49
      %p61 = scmp.eq.s32.totalorder %s18, 1
      %p62 = por %p60, %p61
      %p64 = scmp.ne.s32.totalorder %s49, %s63
      %p65 = scmp.eq.s32.totalorder %s18, 0
      %p66 = por %p64, %p65
      %s68 = sadd.s32 %s67, 1
      %p71 = scmp.eq.s32.totalorder %s12, 1
      %p72 = scmp.ne.s32.totalorder %s67, %s69
      %p73 = scmp.eq.s32.totalorder %s12, 0
      %p74 = por %p72, %p73
      %p75 = scmp.ne.s32.totalorder %s67, %s69
      %p76 = scmp.eq.s32.totalorder %s17, 1
      %p77 = por %p75, %p76
      %p78 = scmp.ne.s32.totalorder %s69, %s70
      %p79 = scmp.eq.s32.totalorder %s17, 0
      %p80 = por %p78, %p79
      %p81 = scmp.ne.s32.totalorder %s69, %s70
      %p82 = scmp.eq.s32.totalorder %s18, 1
      %p83 = por %p81, %p82
      %p85 = scmp.ne.s32.totalorder %s70, %s84
      %p86 = scmp.eq.s32.totalorder %s18, 0
      %p87 = por %p85, %p86
      %s89 = sadd.s32 %s88, 1
      %p92 = scmp.eq.s32.totalorder %s12, 1
      %p93 = scmp.ne.s32.totalorder %s88, %s90
      %p94 = scmp.eq.s32.totalorder %s12, 0
      %p95 = por %p93, %p94
      %p96 = scmp.ne.s32.totalorder %s88, %s90
      %p97 = scmp.eq.s32.totalorder %s17, 1
      %p98 = por %p96, %p97
      %p99 = scmp.ne.s32.totalorder %s90, %s91
      %p100 = scmp.eq.s32.totalorder %s17, 0
      %p101 = por %p99, %p100
      %p102 = scmp.ne.s32.totalorder %s90, %s91
      %p103 = scmp.eq.s32.totalorder %s18, 1
      %p104 = por %p102, %p103
      %p106 = scmp.ne.s32.totalorder %s91, %s105
      %p107 = scmp.eq.s32.totalorder %s18, 0
      %p108 = por %p106, %p107
      %s110 = sadd.s32 %s109, 1
      %p113 = scmp.eq.s32.totalorder %s12, 1
      %p114 = scmp.ne.s32.totalorder %s109, %s111
      %p115 = scmp.eq.s32.totalorder %s12, 0
      %p116 = por %p114, %p115
      %p117 = scmp.ne.s32.totalorder %s109, %s111
      %p118 = scmp.eq.s32.totalorder %s17, 1
      %p119 = por %p117, %p118
      %p120 = scmp.ne.s32.totalorder %s111, %s112
      %p121 = scmp.eq.s32.totalorder %s17, 0
      %p122 = por %p120, %p121
      %p123 = scmp.ne.s32.totalorder %s111, %s112
      %p124 = scmp.eq.s32.totalorder %s18, 1
      %p125 = por %p123, %p124
      %p127 = scmp.ne.s32.totalorder %s112, %s126
      %p128 = scmp.eq.s32.totalorder %s18, 0
      %p129 = por %p127, %p128
      %s131 = sadd.s32 %s130, 1
      %p134 = scmp.eq.s32.totalorder %s12, 1
      %p135 = scmp.ne.s32.totalorder %s130, %s132
      %p136 = scmp.eq.s32.totalorder %s12, 0
      %p137 = por %p135, %p136
      %p138 = scmp.ne.s32.totalorder %s130, %s132
      %p139 = scmp.eq.s32.totalorder %s17, 1
      %p140 = por %p138, %p139
      %p141 = scmp.ne.s32.totalorder %s132, %s133
      %p142 = scmp.eq.s32.totalorder %s17, 0
      %p143 = por %p141, %p142
      %p144 = scmp.ne.s32.totalorder %s132, %s133
      %p145 = scmp.eq.s32.totalorder %s18, 1
      %p146 = por %p144, %p145
      %p148 = scmp.ne.s32.totalorder %s133, %s147
      %p149 = scmp.eq.s32.totalorder %s18, 0
      %p150 = por %p148, %p149
      %s151 = ssub.s32 %s12, %s19
      %p152 = scmp.eq.s32.totalorder %s151, 0
      %s154 = sadd.s32 %s153, 1
      %s155 = scalar_select %p152, %s153, %s154
      %p158 = pneg %p152
      %p159 = scmp.eq.s32.totalorder %s12, 1
      %p160 = por %p158, %p159
      %p161 = scmp.ne.s32.totalorder %s153, %s156
      %p162 = scmp.eq.s32.totalorder %s12, 0
      %p163 = por %p161, %p162
      %p164 = scmp.ne.s32.totalorder %s153, %s156
      %p165 = scmp.eq.s32.totalorder %s17, 1
      %p166 = por %p164, %p165
      %p167 = scmp.ne.s32.totalorder %s156, %s157
      %p168 = scmp.eq.s32.totalorder %s17, 0
      %p169 = por %p167, %p168
      %p170 = scmp.ne.s32.totalorder %s156, %s157
      %p171 = scmp.eq.s32.totalorder %s18, 1
      %p172 = por %p170, %p171
      %p174 = scmp.ne.s32.totalorder %s157, %s173
      %p175 = scmp.eq.s32.totalorder %s18, 0
      %p176 = por %p174, %p175
      %p177 = scmp.le.s32.totalorder 1, %s12
      %p178 = scmp.lt.s32.totalorder %s12, 3
      %p179 = pnand %p177, %p178
      %p180 = pneg %p179
      // Predicated region
      $region9: #{inception_block.1} parent=5 // pred_check
        _
      $region10: #{inception_block.1} parent=5 // pred_check_branch
        %182 = sbr.rel (%p179) target = $region12
      $region11: #{inception_block.1} parent=5 // pred_region
        %s183 = ssub.s32 %s12, 1
        // Predicated region
        $region13: #{inception_block.1} parent=11 // pred_check
          %p184 = pneg %p59
        $region14: #{inception_block.1} parent=11 // pred_check_branch
          %186 = sbr.rel (%p184) target = $region16
        $region15: #{inception_block.1} parent=11 // pred_region
          _
        $region16: #{inception_block.1} parent=11 // pred_fallthru
          _
        // Predicated region
        $region17: #{inception_block.1} parent=11 // pred_check
          %p187 = pneg %p80
        $region18: #{inception_block.1} parent=11 // pred_check_branch
          %189 = sbr.rel (%p187) target = $region20
        $region19: #{inception_block.1} parent=11 // pred_region
          _
        $region20: #{inception_block.1} parent=11 // pred_fallthru
          _
        // Predicated region
        $region21: #{inception_block.1} parent=11 // pred_check
          %p190 = pneg %p101
        $region22: #{inception_block.1} parent=11 // pred_check_branch
          %192 = sbr.rel (%p190) target = $region24
        $region23: #{inception_block.1} parent=11 // pred_region
          _
        $region24: #{inception_block.1} parent=11 // pred_fallthru
          _
        // Predicated region
        $region25: #{inception_block.1} parent=11 // pred_check
          %p193 = pneg %p122
        $region26: #{inception_block.1} parent=11 // pred_check_branch
          %195 = sbr.rel (%p193) target = $region28
        $region27: #{inception_block.1} parent=11 // pred_region
          _
        $region28: #{inception_block.1} parent=11 // pred_fallthru
          _
        // Predicated region
        $region29: #{inception_block.1} parent=11 // pred_check
          %p196 = pneg %p143
        $region30: #{inception_block.1} parent=11 // pred_check_branch
          %198 = sbr.rel (%p196) target = $region32
        $region31: #{inception_block.1} parent=11 // pred_region
          _
        $region32: #{inception_block.1} parent=11 // pred_fallthru
          _
      $region12: #{inception_block.1} parent=5 // pred_fallthru
        _
      %p199 = scmp.lt.s32.totalorder %s12, 2
      // Predicated region
      $region33: #{inception_block.1} parent=5 // pred_check
        %p200 = pneg %p199
      $region34: #{inception_block.1} parent=5 // pred_check_branch
        %202 = sbr.rel (%p200) target = $region36
      $region35: #{inception_block.1} parent=5 // pred_region
        // Predicated region
        $region37: #{inception_block.1} parent=35 // pred_check
          %p203 = pneg %p32
        $region38: #{inception_block.1} parent=35 // pred_check_branch
          %205 = sbr.rel (%p203) target = $region40
        $region39: #{inception_block.1} parent=35 // pred_region
          %s206 = smul.u32 2, %s12
          %p207 = scmp.lt.s32.totalorder %s206, 3
          %s208 = scalar_select %p207, %s206, 3
          %s209 = smul.addr %s208, 4
          %s210 = scalar_lea.vmem %s0, %s209
          %s211 = smul.u32 2, %s12
        $region40: #{inception_block.1} parent=35 // pred_fallthru
          _
      $region36: #{inception_block.1} parent=5 // pred_fallthru
        _
      %p212 = scmp.le.s32.totalorder 1, %s12
      %p213 = scmp.lt.s32.totalorder %s12, 3
      %p214 = pnand %p212, %p213
      %p215 = pneg %p214
      // Predicated region
      $region41: #{inception_block.1} parent=5 // pred_check
        _
      $region42: #{inception_block.1} parent=5 // pred_check_branch
        %217 = sbr.rel (%p214) target = $region44
      $region43: #{inception_block.1} parent=5 // pred_region
        %s218 = ssub.s32 %s12, 1
        %s219 = smul.u32 2, %s17
        %p220 = scmp.lt.s32.totalorder %s219, 3
        %s221 = scalar_select %p220, %s219, 3
        %s222 = smul.addr %s221, 4
        %s223 = scalar_lea.vmem %s0, %s222
        %p224 = pneg %p38
        %p225 = pneg %p35
        %p226 = pneg %p59
        %p227 = pneg %p56
        %p228 = pneg %p80
        %p229 = pneg %p77
        %p230 = pneg %p101
        %p231 = pneg %p98
        %p232 = pneg %p122
        %p233 = pneg %p119
        %p234 = pneg %p143
        %p235 = pneg %p140
        %p236 = pneg %p169
        %p237 = pneg %p166
        %s238 = sand.u32 %s156, 1
        %s239 = sand.u32 %s156, 1
        %s240 = smul.addr %s239, 64
        %s241 = scalar_lea.vmem [#allocation2], %s240
        %s242 = smul.u32 2, %s17
        %p243 = scmp.lt.s32.totalorder %s242, 3
        %s244 = scalar_select %p243, %s242, 3
        %s245 = smul.addr %s244, 4
        %s246 = scalar_lea.vmem %s0, %s245
        %s247 = smul.u32 2, %s17
        %s248 = smul.u32 2, %s17
        %v249 = vld [vmem:[%s1] sm:$0xff]
        %v250 = vld [vmem:[%s1 + $0x8] sm:$0xff]
        %v251 = vld [vmem:[%s1 + $0x10] sm:$0xff]
        %v252 = vld [vmem:[%s1 + $0x18] sm:$0xff]
        %v253 = vld [vmem:[%s246] sm:$0xff]
        %v254 = vld [vmem:[%s4] sm:$0xff]
        %v255 = vld [vmem:[%s4 + $0x8] sm:$0xff]
        %v256 = vld [vmem:[%s4 + $0x10] sm:$0xff]
        %v257 = vld [vmem:[%s4 + $0x18] sm:$0xff]
        %259 = vset.pattern.permute.xlu0 0
        %260 = vperm.xlu0 %259, %v254
        %v261 = vpop.permute.xlu0 %260
        %264 = vset.pattern.permute.xlu0 0
        %265 = vperm.xlu0 %264, %v255
        %v266 = vpop.permute.xlu0 %265
        %269 = vset.pattern.permute.xlu0 0
        %270 = vperm.xlu0 %269, %v256
        %v271 = vpop.permute.xlu0 %270
        %274 = vset.pattern.permute.xlu0 0
        %275 = vperm.xlu0 %274, %v257
        %v276 = vpop.permute.xlu0 %275
        %v279 = vcombine.high %v253, %v253
        %vm280 = vcmask 31744
        %v282 = vsel %vm280, %v249, 0
        %v285 = vsel %vm280, %v250, 0
        %v288 = vsel %vm280, %v251, 0
        %v291 = vsel %vm280, %v252, 0
        %vm293 = vcmask 1043456
        %v294 = vsel %vm293, %v253, 0
        %v296 = vsel %vm293, %v279, 0
        %298 = vmatprep.subr.mxu0 %v296
        %299 = vmatpush1.msra.mxu0 %v294
        %300 = vmatprep.subr.mxu0 0.0
        %301 = vmatpush1.msra.mxu0 0.0
        %302 = vmatprep.subr.mxu0 0.0
        %303 = vmatpush1.msra.mxu0 0.0
        %304 = vmatprep.subr.mxu0 0.0
        %305 = vmatpush1.msra.mxu0 0.0
        %306 = vmatprep.subr.mxu0 0.0
        %307 = vmatpush1.msra.mxu0 0.0
        %308 = vmatprep.subr.mxu0 0.0
        %309 = vmatpush1.msra.mxu0 0.0
        %310 = vmatprep.subr.mxu0 0.0
        %311 = vmatpush1.msra.mxu0 0.0
        %312 = vmatprep.subr.mxu0 0.0
        %313 = vmatpush1.msra.mxu0 0.0
        %314 = vmatprep.subr.mxu0 0.0
        %315 = vmatpush1.msra.mxu0 0.0
        %316 = vmatprep.subr.mxu0 0.0
        %317 = vmatpush1.msra.mxu0 0.0
        %318 = vmatprep.subr.mxu0 0.0
        %319 = vmatpush1.msra.mxu0 0.0
        %320 = vmatprep.subr.mxu0 0.0
        %321 = vmatpush1.msra.mxu0 0.0
        %322 = vmatprep.subr.mxu0 0.0
        %323 = vmatpush1.msra.mxu0 0.0
        %324 = vmatprep.subr.mxu0 0.0
        %325 = vmatpush1.msra.mxu0 0.0
        %326 = vmatprep.subr.mxu0 0.0
        %327 = vmatpush1.msra.mxu0 0.0
        %328 = vmatprep.subr.mxu0 0.0
        %329 = vmatpush1.msra.mxu0 0.0
        %330 = vmatprep.subr.mxu0 0.0
        %331 = vmatpush1.msra.mxu0 0.0
        %332 = vmatprep.subr.mxu0 0.0
        %333 = vmatpush1.msra.mxu0 0.0
        %334 = vmatprep.subr.mxu0 0.0
        %335 = vmatpush1.msra.mxu0 0.0
        %336 = vmatprep.subr.mxu0 0.0
        %337 = vmatpush1.msra.mxu0 0.0
        %338 = vmatprep.subr.mxu0 0.0
        %339 = vmatpush1.msra.mxu0 0.0
        %340 = vmatprep.subr.mxu0 0.0
        %341 = vmatpush1.msra.mxu0 0.0
        %342 = vmatprep.subr.mxu0 0.0
        %343 = vmatpush1.msra.mxu0 0.0
        %344 = vmatprep.subr.mxu0 0.0
        %345 = vmatpush1.msra.mxu0 0.0
        %346 = vmatprep.subr.mxu0 0.0
        %347 = vmatpush1.msra.mxu0 0.0
        %348 = vmatprep.subr.mxu0 0.0
        %349 = vmatpush1.msra.mxu0 0.0
        %350 = vmatprep.subr.mxu0 0.0
        %351 = vmatpush1.msra.mxu0 0.0
        %352 = vmatprep.subr.mxu0 0.0
        %353 = vmatpush1.msra.mxu0 0.0
        %354 = vmatprep.subr.mxu0 0.0
        %355 = vmatpush1.msra.mxu0 0.0
        %356 = vmatprep.subr.mxu0 0.0
        %357 = vmatpush1.msra.mxu0 0.0
        %358 = vmatprep.subr.mxu0 0.0
        %359 = vmatpush1.msra.mxu0 0.0
        %360 = vmatprep.subr.mxu0 0.0
        %361 = vmatpush1.msra.mxu0 0.0
        %362 = vmatprep.mubr.f32.mxu0 0.0
        %363 = vmatmul.mubr.f32.gmra.mrb[0].mxu0 %v282
        %v364 = vpop.f32.mrb[0].mxu0
        %v365 = vadd.f32 %v261, %v364
        %v366 = vpop.f32.mrb[0].mxu0
        %v367 = vadd.f32 %v261, %v366
        %368 = vmatprep.mubr.f32.mxu0 0.0
        %369 = vmatmul.mubr.f32.gmra.mrb[0].mxu0 %v285
        %v370 = vpop.f32.mrb[0].mxu0
        %v371 = vadd.f32 %v266, %v370
        %v372 = vpop.f32.mrb[0].mxu0
        %v373 = vadd.f32 %v266, %v372
        %374 = vmatprep.mubr.f32.mxu0 0.0
        %375 = vmatmul.mubr.f32.gmra.mrb[0].mxu0 %v288
        %v376 = vpop.f32.mrb[0].mxu0
        %v377 = vadd.f32 %v271, %v376
        %v378 = vpop.f32.mrb[0].mxu0
        %v379 = vadd.f32 %v271, %v378
        %380 = vmatprep.mubr.f32.mxu0 0.0
        %381 = vmatmul.mubr.f32.gmra.mrb[0].mxu0 %v291
        %v382 = vpop.f32.mrb[0].mxu0
        %v383 = vadd.f32 %v276, %v382
        %v384 = vpop.f32.mrb[0].mxu0
        %v385 = vadd.f32 %v276, %v384
        %386 = vdwg.mxu0
        %v387 = vmax.f32 %v365, 0.0
        %v388 = vmax.f32 %v367, 0.0
        %v389 = vmax.f32 %v371, 0.0
        %v390 = vmax.f32 %v373, 0.0
        %v391 = vmax.f32 %v377, 0.0
        %v392 = vmax.f32 %v379, 0.0
        %v393 = vmax.f32 %v383, 0.0
        %v394 = vmax.f32 %v385, 0.0
        %395 = vst [vmem:[%s241] sm:$0xff] %v387
        %396 = vst [vmem:[%s241 + $0x8] sm:$0xff] %v388
        %397 = vrot.lane.b32.xlu0 %v389, 17
        %v398 = vpop.permute.xlu0 %397
        %399 = vrot.lane.b32.xlu0 %v391, 17
        %v400 = vpop.permute.xlu0 %399
        %401 = vrot.lane.b32.xlu0 %v390, 17
        %v402 = vpop.permute.xlu0 %401
        %403 = vrot.lane.b32.xlu0 %v392, 17
        %v404 = vpop.permute.xlu0 %403
        %v405 = vlaneseq
        %v406 = vand.u32 %v405, 127
        %vm407 = vcmp.lt.s32.totalorder %v406, 17
        %v408 = vsel %vm407, %v398, %v402
        %v409 = vsel %vm407, %v400, %v404
        %v410 = vsel %vm407, %v402, %v398
        %v411 = vsel %vm407, %v404, %v400
        %v412 = vld [vmem:[%s5] sm:$0xff]
        %v413 = vld [vmem:[%s5 + $0x8] sm:$0xff]
        %v414 = vld [vmem:[%s5 + $0x10] sm:$0xff]
        %v415 = vld [vmem:[%s5 + $0x18] sm:$0xff]
        %v416 = vmul.f32 %v410, %v412
        %v417 = vmul.f32 %v408, %v413
        %v418 = vmul.f32 %v411, %v414
        %v419 = vmul.f32 %v409, %v415
        %v420 = vld [vmem:[%s2] sm:$0xff]
        %v421 = vld [vmem:[%s2 + $0x8] sm:$0xff]
        %422 = vrot.lane.b32.xlu0 %v389, 16
        %v423 = vpop.permute.xlu0 %422
        %424 = vrot.lane.b32.xlu0 %v391, 16
        %v425 = vpop.permute.xlu0 %424
        %426 = vrot.lane.b32.xlu0 %v390, 16
        %v427 = vpop.permute.xlu0 %426
        %428 = vrot.lane.b32.xlu0 %v392, 16
        %v429 = vpop.permute.xlu0 %428
        %vm430 = vcmp.lt.s32.totalorder %v406, 16
        %v431 = vsel %vm430, %v423, %v427
        %v432 = vsel %vm430, %v425, %v429
        %v433 = vsel %vm430, %v427, %v423
        %v434 = vsel %vm430, %v429, %v425
        %v435 = vld [vmem:[%s5 + $0x20] sm:$0xff]
        %v436 = vld [vmem:[%s5 + $0x28] sm:$0xff]
        %v437 = vld [vmem:[%s5 + $0x30] sm:$0xff]
        %v438 = vld [vmem:[%s5 + $0x38] sm:$0xff]
        %v439 = vmul.f32 %v433, %v435
        %v440 = vmul.f32 %v431, %v436
        %v441 = vmul.f32 %v434, %v437
        %v442 = vmul.f32 %v432, %v438
        %s443 = scalar_lea.vmem %s2, 16
        %v444 = vld [vmem:[%s443] sm:$0xff]
        %v445 = vld [vmem:[%s443 + $0x8] sm:$0xff]
        %vm446 = vcmask 130048
        %v448 = vsel %vm446, %v444, 0
        %v451 = vsel %vm446, %v445, 0
        %453 = vmatprep.subr.mxu0 %v440
        %454 = vmatpush1.msra.mxu0 %v439
        %455 = vmatprep.subr.mxu0 %v442
        %456 = vmatpush1.msra.mxu0 %v441
        %457 = vmatprep.subr.mxu0 0.0
        %458 = vmatpush1.msra.mxu0 0.0
        %459 = vmatprep.subr.mxu0 0.0
        %460 = vmatpush1.msra.mxu0 0.0
        %461 = vmatprep.subr.mxu0 0.0
        %462 = vmatpush1.msra.mxu0 0.0
        %463 = vmatprep.subr.mxu0 0.0
        %464 = vmatpush1.msra.mxu0 0.0
        %465 = vmatprep.subr.mxu0 0.0
        %466 = vmatpush1.msra.mxu0 0.0
        %467 = vmatprep.subr.mxu0 0.0
        %468 = vmatpush1.msra.mxu0 0.0
        %469 = vmatprep.subr.mxu0 0.0
        %470 = vmatpush1.msra.mxu0 0.0
        %471 = vmatprep.subr.mxu0 0.0
        %472 = vmatpush1.msra.mxu0 0.0
        %473 = vmatprep.subr.mxu0 0.0
        %474 = vmatpush1.msra.mxu0 0.0
        %475 = vmatprep.subr.mxu0 0.0
        %476 = vmatpush1.msra.mxu0 0.0
        %477 = vmatprep.subr.mxu0 0.0
        %478 = vmatpush1.msra.mxu0 0.0
        %479 = vmatprep.subr.mxu0 0.0
        %480 = vmatpush1.msra.mxu0 0.0
        %481 = vmatprep.subr.mxu0 0.0
        %482 = vmatpush1.msra.mxu0 0.0
        %483 = vmatprep.subr.mxu0 0.0
        %484 = vmatpush1.msra.mxu0 0.0
        %485 = vmatprep.subr.mxu0 0.0
        %486 = vmatpush1.msra.mxu0 0.0
        %487 = vmatprep.subr.mxu0 0.0
        %488 = vmatpush1.msra.mxu0 0.0
        %489 = vmatprep.subr.mxu0 0.0
        %490 = vmatpush1.msra.mxu0 0.0
        %491 = vmatprep.subr.mxu0 0.0
        %492 = vmatpush1.msra.mxu0 0.0
        %493 = vmatprep.subr.mxu0 0.0
        %494 = vmatpush1.msra.mxu0 0.0
        %495 = vmatprep.subr.mxu0 0.0
        %496 = vmatpush1.msra.mxu0 0.0
        %497 = vmatprep.subr.mxu0 0.0
        %498 = vmatpush1.msra.mxu0 0.0
        %499 = vmatprep.subr.mxu0 0.0
        %500 = vmatpush1.msra.mxu0 0.0
        %501 = vmatprep.subr.mxu0 0.0
        %502 = vmatpush1.msra.mxu0 0.0
        %503 = vmatprep.subr.mxu0 0.0
        %504 = vmatpush1.msra.mxu0 0.0
        %505 = vmatprep.subr.mxu0 0.0
        %506 = vmatpush1.msra.mxu0 0.0
        %507 = vmatprep.subr.mxu0 0.0
        %508 = vmatpush1.msra.mxu0 0.0
        %509 = vmatprep.subr.mxu0 0.0
        %510 = vmatpush1.msra.mxu0 0.0
        %511 = vmatprep.subr.mxu0 0.0
        %512 = vmatpush1.msra.mxu0 0.0
        %513 = vmatprep.subr.mxu0 0.0
        %514 = vmatpush1.msra.mxu0 0.0
        %515 = vmatprep.subr.mxu0 0.0
        %516 = vmatpush1.msra.mxu0 0.0
        %517 = vmatprep.mubr.f32.mxu0 0.0
        %518 = vmatmul.mubr.f32.gmra.mrb[0].mxu0 %v448
        %v519 = vpop.f32.mrb[0].mxu0
        %v520 = vadd.f32 0.0, %v519
        %v521 = vpop.f32.mrb[0].mxu0
        %v522 = vadd.f32 0.0, %v521
        %523 = vmatprep.mubr.f32.mxu0 0.0
        %524 = vmatmul.mubr.f32.gmra.mrb[0].mxu0 %v451
        %v525 = vpop.f32.mrb[0].mxu0
        %v526 = vadd.f32 0.0, %v525
        %v527 = vpop.f32.mrb[0].mxu0
        %v528 = vadd.f32 0.0, %v527
        %529 = vdwg.mxu0
        %v531 = vsel %vm446, %v420, 0
        %v534 = vsel %vm446, %v421, 0
        %536 = vmatprep.subr.mxu0 %v417
        %537 = vmatpush1.msra.mxu0 %v416
        %538 = vmatprep.subr.mxu0 %v419
        %539 = vmatpush1.msra.mxu0 %v418
        %540 = vmatprep.subr.mxu0 0.0
        %541 = vmatpush1.msra.mxu0 0.0
        %542 = vmatprep.subr.mxu0 0.0
        %543 = vmatpush1.msra.mxu0 0.0
        %544 = vmatprep.subr.mxu0 0.0
        %545 = vmatpush1.msra.mxu0 0.0
        %546 = vmatprep.subr.mxu0 0.0
        %547 = vmatpush1.msra.mxu0 0.0
        %548 = vmatprep.subr.mxu0 0.0
        %549 = vmatpush1.msra.mxu0 0.0
        %550 = vmatprep.subr.mxu0 0.0
        %551 = vmatpush1.msra.mxu0 0.0
        %552 = vmatprep.subr.mxu0 0.0
        %553 = vmatpush1.msra.mxu0 0.0
        %554 = vmatprep.subr.mxu0 0.0
        %555 = vmatpush1.msra.mxu0 0.0
        %556 = vmatprep.subr.mxu0 0.0
        %557 = vmatpush1.msra.mxu0 0.0
        %558 = vmatprep.subr.mxu0 0.0
        %559 = vmatpush1.msra.mxu0 0.0
        %560 = vmatprep.subr.mxu0 0.0
        %561 = vmatpush1.msra.mxu0 0.0
        %562 = vmatprep.subr.mxu0 0.0
        %563 = vmatpush1.msra.mxu0 0.0
        %564 = vmatprep.subr.mxu0 0.0
        %565 = vmatpush1.msra.mxu0 0.0
        %566 = vmatprep.subr.mxu0 0.0
        %567 = vmatpush1.msra.mxu0 0.0
        %568 = vmatprep.subr.mxu0 0.0
        %569 = vmatpush1.msra.mxu0 0.0
        %570 = vmatprep.subr.mxu0 0.0
        %571 = vmatpush1.msra.mxu0 0.0
        %572 = vmatprep.subr.mxu0 0.0
        %573 = vmatpush1.msra.mxu0 0.0
        %574 = vmatprep.subr.mxu0 0.0
        %575 = vmatpush1.msra.mxu0 0.0
        %576 = vmatprep.subr.mxu0 0.0
        %577 = vmatpush1.msra.mxu0 0.0
        %578 = vmatprep.subr.mxu0 0.0
        %579 = vmatpush1.msra.mxu0 0.0
        %580 = vmatprep.subr.mxu0 0.0
        %581 = vmatpush1.msra.mxu0 0.0
        %582 = vmatprep.subr.mxu0 0.0
        %583 = vmatpush1.msra.mxu0 0.0
        %584 = vmatprep.subr.mxu0 0.0
        %585 = vmatpush1.msra.mxu0 0.0
        %586 = vmatprep.subr.mxu0 0.0
        %587 = vmatpush1.msra.mxu0 0.0
        %588 = vmatprep.subr.mxu0 0.0
        %589 = vmatpush1.msra.mxu0 0.0
        %590 = vmatprep.subr.mxu0 0.0
        %591 = vmatpush1.msra.mxu0 0.0
        %592 = vmatprep.subr.mxu0 0.0
        %593 = vmatpush1.msra.mxu0 0.0
        %594 = vmatprep.subr.mxu0 0.0
        %595 = vmatpush1.msra.mxu0 0.0
        %596 = vmatprep.subr.mxu0 0.0
        %597 = vmatpush1.msra.mxu0 0.0
        %598 = vmatprep.subr.mxu0 0.0
        %599 = vmatpush1.msra.mxu0 0.0
        %600 = vmatprep.mubr.f32.mxu0 0.0
        %601 = vmatmul.mubr.f32.gmra.mrb[0].mxu0 %v531
        %v602 = vpop.f32.mrb[0].mxu0
        %v603 = vadd.f32 %v520, %v602
        %v604 = vpop.f32.mrb[0].mxu0
        %v605 = vadd.f32 %v522, %v604
        %606 = vmatprep.mubr.f32.mxu0 0.0
        %607 = vmatmul.mubr.f32.gmra.mrb[0].mxu0 %v534
        %v608 = vpop.f32.mrb[0].mxu0
        %v609 = vadd.f32 %v526, %v608
        %v610 = vpop.f32.mrb[0].mxu0
        %v611 = vadd.f32 %v528, %v610
        %612 = vdwg.mxu0
        %613 = vrot.lane.b32.xlu0 %v389, 15
        %v614 = vpop.permute.xlu0 %613
        %615 = vrot.lane.b32.xlu0 %v391, 15
        %v616 = vpop.permute.xlu0 %615
        %617 = vrot.lane.b32.xlu0 %v390, 15
        %v618 = vpop.permute.xlu0 %617
        %619 = vrot.lane.b32.xlu0 %v392, 15
        %v620 = vpop.permute.xlu0 %619
        %vm621 = vcmp.lt.s32.totalorder %v406, 15
        %v622 = vsel %vm621, %v614, %v618
        %v623 = vsel %vm621, %v616, %v620
        %v624 = vsel %vm621, %v618, %v614
        %v625 = vsel %vm621, %v620, %v616
        %v626 = vld [vmem:[%s5 + $0x40] sm:$0xff]
        %v627 = vld [vmem:[%s5 + $0x48] sm:$0xff]
        %v628 = vld [vmem:[%s5 + $0x50] sm:$0xff]
        %v629 = vld [vmem:[%s5 + $0x58] sm:$0xff]
        %v630 = vmul.f32 %v624, %v626
        %v631 = vmul.f32 %v622, %v627
        %v632 = vmul.f32 %v625, %v628
        %v633 = vmul.f32 %v623, %v629
        %s634 = scalar_lea.vmem %s2, 32
        %v635 = vld [vmem:[%s634] sm:$0xff]
        %v636 = vld [vmem:[%s634 + $0x8] sm:$0xff]
        %v638 = vsel %vm446, %v635, 0
        %v641 = vsel %vm446, %v636, 0
        %643 = vmatprep.subr.mxu0 %v631
        %644 = vmatpush1.msra.mxu0 %v630
        %645 = vmatprep.subr.mxu0 %v633
        %646 = vmatpush1.msra.mxu0 %v632
        %647 = vmatprep.subr.mxu0 0.0
        %648 = vmatpush1.msra.mxu0 0.0
        %649 = vmatprep.subr.mxu0 0.0
        %650 = vmatpush1.msra.mxu0 0.0
        %651 = vmatprep.subr.mxu0 0.0
        %652 = vmatpush1.msra.mxu0 0.0
        %653 = vmatprep.subr.mxu0 0.0
        %654 = vmatpush1.msra.mxu0 0.0
        %655 = vmatprep.subr.mxu0 0.0
        %656 = vmatpush1.msra.mxu0 0.0
        %657 = vmatprep.subr.mxu0 0.0
        %658 = vmatpush1.msra.mxu0 0.0
        %659 = vmatprep.subr.mxu0 0.0
        %660 = vmatpush1.msra.mxu0 0.0
        %661 = vmatprep.subr.mxu0 0.0
        %662 = vmatpush1.msra.mxu0 0.0
        %663 = vmatprep.subr.mxu0 0.0
        %664 = vmatpush1.msra.mxu0 0.0
        %665 = vmatprep.subr.mxu0 0.0
        %666 = vmatpush1.msra.mxu0 0.0
        %667 = vmatprep.subr.mxu0 0.0
        %668 = vmatpush1.msra.mxu0 0.0
        %669 = vmatprep.subr.mxu0 0.0
        %670 = vmatpush1.msra.mxu0 0.0
        %671 = vmatprep.subr.mxu0 0.0
        %672 = vmatpush1.msra.mxu0 0.0
        %673 = vmatprep.subr.mxu0 0.0
        %674 = vmatpush1.msra.mxu0 0.0
        %675 = vmatprep.subr.mxu0 0.0
        %676 = vmatpush1.msra.mxu0 0.0
        %677 = vmatprep.subr.mxu0 0.0
        %678 = vmatpush1.msra.mxu0 0.0
        %679 = vmatprep.subr.mxu0 0.0
        %680 = vmatpush1.msra.mxu0 0.0
        %681 = vmatprep.subr.mxu0 0.0
        %682 = vmatpush1.msra.mxu0 0.0
        %683 = vmatprep.subr.mxu0 0.0
        %684 = vmatpush1.msra.mxu0 0.0
        %685 = vmatprep.subr.mxu0 0.0
        %686 = vmatpush1.msra.mxu0 0.0
        %687 = vmatprep.subr.mxu0 0.0
        %688 = vmatpush1.msra.mxu0 0.0
        %689 = vmatprep.subr.mxu0 0.0
        %690 = vmatpush1.msra.mxu0 0.0
        %691 = vmatprep.subr.mxu0 0.0
        %692 = vmatpush1.msra.mxu0 0.0
        %693 = vmatprep.subr.mxu0 0.0
        %694 = vmatpush1.msra.mxu0 0.0
        %695 = vmatprep.subr.mxu0 0.0
        %696 = vmatpush1.msra.mxu0 0.0
        %697 = vmatprep.subr.mxu0 0.0
        %698 = vmatpush1.msra.mxu0 0.0
        %699 = vmatprep.subr.mxu0 0.0
        %700 = vmatpush1.msra.mxu0 0.0
        %701 = vmatprep.subr.mxu0 0.0
        %702 = vmatpush1.msra.mxu0 0.0
        %703 = vmatprep.subr.mxu0 0.0
        %704 = vmatpush1.msra.mxu0 0.0
        %705 = vmatprep.subr.mxu0 0.0
        %706 = vmatpush1.msra.mxu0 0.0
        %707 = vmatprep.mubr.f32.mxu0 0.0
        %708 = vmatmul.mubr.f32.gmra.mrb[0].mxu0 %v638
        %v709 = vpop.f32.mrb[0].mxu0
        %v710 = vadd.f32 0.0, %v709
        %v711 = vpop.f32.mrb[0].mxu0
        %v712 = vadd.f32 0.0, %v711
        %713 = vmatprep.mubr.f32.mxu0 0.0
        %714 = vmatmul.mubr.f32.gmra.mrb[0].mxu0 %v641
        %v715 = vpop.f32.mrb[0].mxu0
        %v716 = vadd.f32 0.0, %v715
        %v717 = vpop.f32.mrb[0].mxu0
        %v718 = vadd.f32 0.0, %v717
        %719 = vdwg.mxu0
        %v720 = vadd.f32 %v603, %v710
        %v721 = vadd.f32 %v605, %v712
        %v722 = vadd.f32 %v609, %v716
        %v723 = vadd.f32 %v611, %v718
        %724 = vrot.lane.b32.xlu0 %v389, 1
        %v725 = vpop.permute.xlu0 %724
        %726 = vrot.lane.b32.xlu0 %v391, 1
        %v727 = vpop.permute.xlu0 %726
        %728 = vrot.lane.b32.xlu0 %v390, 1
        %v729 = vpop.permute.xlu0 %728
        %730 = vrot.lane.b32.xlu0 %v392, 1
        %v731 = vpop.permute.xlu0 %730
        %vm732 = vcmp.lt.s32.totalorder %v406, 1
        %v733 = vsel %vm732, %v725, %v729
        %v734 = vsel %vm732, %v727, %v731
        %v735 = vsel %vm732, %v729, %v725
        %v736 = vsel %vm732, %v731, %v727
        %v737 = vld [vmem:[%s5 + $0x60] sm:$0xff]
        %v738 = vld [vmem:[%s5 + $0x68] sm:$0xff]
        %v739 = vld [vmem:[%s5 + $0x70] sm:$0xff]
        %v740 = vld [vmem:[%s5 + $0x78] sm:$0xff]
        %v741 = vmul.f32 %v735, %v737
        %v742 = vmul.f32 %v733, %v738
        %v743 = vmul.f32 %v736, %v739
        %v744 = vmul.f32 %v734, %v740
        %s745 = scalar_lea.vmem %s2, 48
        %v746 = vld [vmem:[%s745] sm:$0xff]
        %v747 = vld [vmem:[%s745 + $0x8] sm:$0xff]
        %v749 = vsel %vm446, %v746, 0
        %v752 = vsel %vm446, %v747, 0
        %754 = vmatprep.subr.mxu0 %v742
        %755 = vmatpush1.msra.mxu0 %v741
        %756 = vmatprep.subr.mxu0 %v744
        %757 = vmatpush1.msra.mxu0 %v743
        %758 = vmatprep.subr.mxu0 0.0
        %759 = vmatpush1.msra.mxu0 0.0
        %760 = vmatprep.subr.mxu0 0.0
        %761 = vmatpush1.msra.mxu0 0.0
        %762 = vmatprep.subr.mxu0 0.0
        %763 = vmatpush1.msra.mxu0 0.0
        %764 = vmatprep.subr.mxu0 0.0
        %765 = vmatpush1.msra.mxu0 0.0
        %766 = vmatprep.subr.mxu0 0.0
        %767 = vmatpush1.msra.mxu0 0.0
        %768 = vmatprep.subr.mxu0 0.0
        %769 = vmatpush1.msra.mxu0 0.0
        %770 = vmatprep.subr.mxu0 0.0
        %771 = vmatpush1.msra.mxu0 0.0
        %772 = vmatprep.subr.mxu0 0.0
        %773 = vmatpush1.msra.mxu0 0.0
        %774 = vmatprep.subr.mxu0 0.0
        %775 = vmatpush1.msra.mxu0 0.0
        %776 = vmatprep.subr.mxu0 0.0
        %777 = vmatpush1.msra.mxu0 0.0
        %778 = vmatprep.subr.mxu0 0.0
        %779 = vmatpush1.msra.mxu0 0.0
        %780 = vmatprep.subr.mxu0 0.0
        %781 = vmatpush1.msra.mxu0 0.0
        %782 = vmatprep.subr.mxu0 0.0
        %783 = vmatpush1.msra.mxu0 0.0
        %784 = vmatprep.subr.mxu0 0.0
        %785 = vmatpush1.msra.mxu0 0.0
        %786 = vmatprep.subr.mxu0 0.0
        %787 = vmatpush1.msra.mxu0 0.0
        %788 = vmatprep.subr.mxu0 0.0
        %789 = vmatpush1.msra.mxu0 0.0
        %790 = vmatprep.subr.mxu0 0.0
        %791 = vmatpush1.msra.mxu0 0.0
        %792 = vmatprep.subr.mxu0 0.0
        %793 = vmatpush1.msra.mxu0 0.0
        %794 = vmatprep.subr.mxu0 0.0
        %795 = vmatpush1.msra.mxu0 0.0
        %796 = vmatprep.subr.mxu0 0.0
        %797 = vmatpush1.msra.mxu0 0.0
        %798 = vmatprep.subr.mxu0 0.0
        %799 = vmatpush1.msra.mxu0 0.0
        %800 = vmatprep.subr.mxu0 0.0
        %801 = vmatpush1.msra.mxu0 0.0
        %802 = vmatprep.subr.mxu0 0.0
        %803 = vmatpush1.msra.mxu0 0.0
        %804 = vmatprep.subr.mxu0 0.0
        %805 = vmatpush1.msra.mxu0 0.0
        %806 = vmatprep.subr.mxu0 0.0
        %807 = vmatpush1.msra.mxu0 0.0
        %808 = vmatprep.subr.mxu0 0.0
        %809 = vmatpush1.msra.mxu0 0.0
        %810 = vmatprep.subr.mxu0 0.0
        %811 = vmatpush1.msra.mxu0 0.0
        %812 = vmatprep.subr.mxu0 0.0
        %813 = vmatpush1.msra.mxu0 0.0
        %814 = vmatprep.subr.mxu0 0.0
        %815 = vmatpush1.msra.mxu0 0.0
        %816 = vmatprep.subr.mxu0 0.0
        %817 = vmatpush1.msra.mxu0 0.0
        %818 = vmatprep.mubr.f32.mxu0 0.0
        %819 = vmatmul.mubr.f32.gmra.mrb[0].mxu0 %v749
        %v820 = vpop.f32.mrb[0].mxu0
        %v821 = vadd.f32 0.0, %v820
        %v822 = vpop.f32.mrb[0].mxu0
        %v823 = vadd.f32 0.0, %v822
        %824 = vmatprep.mubr.f32.mxu0 0.0
        %825 = vmatmul.mubr.f32.gmra.mrb[0].mxu0 %v752
        %v826 = vpop.f32.mrb[0].mxu0
        %v827 = vadd.f32 0.0, %v826
        %v828 = vpop.f32.mrb[0].mxu0
        %v829 = vadd.f32 0.0, %v828
        %830 = vdwg.mxu0
        %v831 = vadd.f32 %v720, %v821
        %v832 = vadd.f32 %v721, %v823
        %v833 = vadd.f32 %v722, %v827
        %v834 = vadd.f32 %v723, %v829
        %s835 = scalar_lea.vmem %s2, 64
        %v836 = vld [vmem:[%s835] sm:$0xff]
        %v837 = vld [vmem:[%s835 + $0x8] sm:$0xff]
        %v839 = vsel %vm446, %v836, 0
        %v842 = vsel %vm446, %v837, 0
        %844 = vmatprep.subr.mxu0 %v390
        %845 = vmatpush1.msra.mxu0 %v389
        %846 = vmatprep.subr.mxu0 %v392
        %847 = vmatpush1.msra.mxu0 %v391
        %848 = vmatprep.subr.mxu0 0.0
        %849 = vmatpush1.msra.mxu0 0.0
        %850 = vmatprep.subr.mxu0 0.0
        %851 = vmatpush1.msra.mxu0 0.0
        %852 = vmatprep.subr.mxu0 0.0
        %853 = vmatpush1.msra.mxu0 0.0
        %854 = vmatprep.subr.mxu0 0.0
        %855 = vmatpush1.msra.mxu0 0.0
        %856 = vmatprep.subr.mxu0 0.0
        %857 = vmatpush1.msra.mxu0 0.0
        %858 = vmatprep.subr.mxu0 0.0
        %859 = vmatpush1.msra.mxu0 0.0
        %860 = vmatprep.subr.mxu0 0.0
        %861 = vmatpush1.msra.mxu0 0.0
        %862 = vmatprep.subr.mxu0 0.0
        %863 = vmatpush1.msra.mxu0 0.0
        %864 = vmatprep.subr.mxu0 0.0
        %865 = vmatpush1.msra.mxu0 0.0
        %866 = vmatprep.subr.mxu0 0.0
        %867 = vmatpush1.msra.mxu0 0.0
        %868 = vmatprep.subr.mxu0 0.0
        %869 = vmatpush1.msra.mxu0 0.0
        %870 = vmatprep.subr.mxu0 0.0
        %871 = vmatpush1.msra.mxu0 0.0
        %872 = vmatprep.subr.mxu0 0.0
        %873 = vmatpush1.msra.mxu0 0.0
        %874 = vmatprep.subr.mxu0 0.0
        %875 = vmatpush1.msra.mxu0 0.0
        %876 = vmatprep.subr.mxu0 0.0
        %877 = vmatpush1.msra.mxu0 0.0
        %878 = vmatprep.subr.mxu0 0.0
        %879 = vmatpush1.msra.mxu0 0.0
        %880 = vmatprep.subr.mxu0 0.0
        %881 = vmatpush1.msra.mxu0 0.0
        %882 = vmatprep.subr.mxu0 0.0
        %883 = vmatpush1.msra.mxu0 0.0
        %884 = vmatprep.subr.mxu0 0.0
        %885 = vmatpush1.msra.mxu0 0.0
        %886 = vmatprep.subr.mxu0 0.0
        %887 = vmatpush1.msra.mxu0 0.0
        %888 = vmatprep.subr.mxu0 0.0
        %889 = vmatpush1.msra.mxu0 0.0
        %890 = vmatprep.subr.mxu0 0.0
        %891 = vmatpush1.msra.mxu0 0.0
        %892 = vmatprep.subr.mxu0 0.0
        %893 = vmatpush1.msra.mxu0 0.0
        %894 = vmatprep.subr.mxu0 0.0
        %895 = vmatpush1.msra.mxu0 0.0
        %896 = vmatprep.subr.mxu0 0.0
        %897 = vmatpush1.msra.mxu0 0.0
        %898 = vmatprep.subr.mxu0 0.0
        %899 = vmatpush1.msra.mxu0 0.0
        %900 = vmatprep.subr.mxu0 0.0
        %901 = vmatpush1.msra.mxu0 0.0
        %902 = vmatprep.subr.mxu0 0.0
        %903 = vmatpush1.msra.mxu0 0.0
        %904 = vmatprep.subr.mxu0 0.0
        %905 = vmatpush1.msra.mxu0 0.0
        %906 = vmatprep.subr.mxu0 0.0
        %907 = vmatpush1.msra.mxu0 0.0
        %908 = vmatprep.mubr.f32.mxu0 0.0
        %909 = vmatmul.mubr.f32.gmra.mrb[0].mxu0 %v839
        %v910 = vpop.f32.mrb[0].mxu0
        %v911 = vadd.f32 0.0, %v910
        %v912 = vpop.f32.mrb[0].mxu0
        %v913 = vadd.f32 0.0, %v912
        %914 = vmatprep.mubr.f32.mxu0 0.0
        %915 = vmatmul.mubr.f32.gmra.mrb[0].mxu0 %v842
        %v916 = vpop.f32.mrb[0].mxu0
        %v917 = vadd.f32 0.0, %v916
        %v918 = vpop.f32.mrb[0].mxu0
        %v919 = vadd.f32 0.0, %v918
        %920 = vdwg.mxu0
        %v921 = vadd.f32 %v831, %v911
        %v922 = vadd.f32 %v832, %v913
        %v923 = vadd.f32 %v833, %v917
        %v924 = vadd.f32 %v834, %v919
        %925 = vrot.lane.b32.xlu0 %v389, 127
        %v926 = vpop.permute.xlu0 %925
        %927 = vrot.lane.b32.xlu0 %v391, 127
        %v928 = vpop.permute.xlu0 %927
        %929 = vrot.lane.b32.xlu0 %v390, 127
        %v930 = vpop.permute.xlu0 %929
        %931 = vrot.lane.b32.xlu0 %v392, 127
        %v932 = vpop.permute.xlu0 %931
        %vm933 = vcmp.lt.s32.totalorder %v406, 127
        %v934 = vsel %vm933, %v926, %v930
        %v935 = vsel %vm933, %v928, %v932
        %v936 = vsel %vm933, %v930, %v926
        %v937 = vsel %vm933, %v932, %v928
        %v938 = vld [vmem:[%s5 + $0xa0] sm:$0xff]
        %v939 = vld [vmem:[%s5 + $0xa8] sm:$0xff]
        %v940 = vld [vmem:[%s5 + $0xb0] sm:$0xff]
        %v941 = vld [vmem:[%s5 + $0xb8] sm:$0xff]
        %v942 = vmul.f32 %v934, %v938
        %v943 = vmul.f32 %v936, %v939
        %v944 = vmul.f32 %v935, %v940
        %v945 = vmul.f32 %v937, %v941
        %s946 = scalar_lea.vmem %s2, 80
        %v947 = vld [vmem:[%s946] sm:$0xff]
        %v948 = vld [vmem:[%s946 + $0x8] sm:$0xff]
        %v950 = vsel %vm446, %v947, 0
        %v953 = vsel %vm446, %v948, 0
        %955 = vmatprep.subr.mxu0 %v943
        %956 = vmatpush1.msra.mxu0 %v942
        %957 = vmatprep.subr.mxu0 %v945
        %958 = vmatpush1.msra.mxu0 %v944
        %959 = vmatprep.subr.mxu0 0.0
        %960 = vmatpush1.msra.mxu0 0.0
        %961 = vmatprep.subr.mxu0 0.0
        %962 = vmatpush1.msra.mxu0 0.0
        %963 = vmatprep.subr.mxu0 0.0
        %964 = vmatpush1.msra.mxu0 0.0
        %965 = vmatprep.subr.mxu0 0.0
        %966 = vmatpush1.msra.mxu0 0.0
        %967 = vmatprep.subr.mxu0 0.0
        %968 = vmatpush1.msra.mxu0 0.0
        %969 = vmatprep.subr.mxu0 0.0
        %970 = vmatpush1.msra.mxu0 0.0
        %971 = vmatprep.subr.mxu0 0.0
        %972 = vmatpush1.msra.mxu0 0.0
        %973 = vmatprep.subr.mxu0 0.0
        %974 = vmatpush1.msra.mxu0 0.0
        %975 = vmatprep.subr.mxu0 0.0
        %976 = vmatpush1.msra.mxu0 0.0
        %977 = vmatprep.subr.mxu0 0.0
        %978 = vmatpush1.msra.mxu0 0.0
        %979 = vmatprep.subr.mxu0 0.0
        %980 = vmatpush1.msra.mxu0 0.0
        %981 = vmatprep.subr.mxu0 0.0
        %982 = vmatpush1.msra.mxu0 0.0
        %983 = vmatprep.subr.mxu0 0.0
        %984 = vmatpush1.msra.mxu0 0.0
        %985 = vmatprep.subr.mxu0 0.0
        %986 = vmatpush1.msra.mxu0 0.0
        %987 = vmatprep.subr.mxu0 0.0
        %988 = vmatpush1.msra.mxu0 0.0
        %989 = vmatprep.subr.mxu0 0.0
        %990 = vmatpush1.msra.mxu0 0.0
        %991 = vmatprep.subr.mxu0 0.0
        %992 = vmatpush1.msra.mxu0 0.0
        %993 = vmatprep.subr.mxu0 0.0
        %994 = vmatpush1.msra.mxu0 0.0
        %995 = vmatprep.subr.mxu0 0.0
        %996 = vmatpush1.msra.mxu0 0.0
        %997 = vmatprep.subr.mxu0 0.0
        %998 = vmatpush1.msra.mxu0 0.0
        %999 = vmatprep.subr.mxu0 0.0
        %1000 = vmatpush1.msra.mxu0 0.0
        %1001 = vmatprep.subr.mxu0 0.0
        %1002 = vmatpush1.msra.mxu0 0.0
        %1003 = vmatprep.subr.mxu0 0.0
        %1004 = vmatpush1.msra.mxu0 0.0
        %1005 = vmatprep.subr.mxu0 0.0
        %1006 = vmatpush1.msra.mxu0 0.0
        %1007 = vmatprep.subr.mxu0 0.0
        %1008 = vmatpush1.msra.mxu0 0.0
        %1009 = vmatprep.subr.mxu0 0.0
        %1010 = vmatpush1.msra.mxu0 0.0
        %1011 = vmatprep.subr.mxu0 0.0
        %1012 = vmatpush1.msra.mxu0 0.0
        %1013 = vmatprep.subr.mxu0 0.0
        %1014 = vmatpush1.msra.mxu0 0.0
        %1015 = vmatprep.subr.mxu0 0.0
        %1016 = vmatpush1.msra.mxu0 0.0
        %1017 = vmatprep.subr.mxu0 0.0
        %1018 = vmatpush1.msra.mxu0 0.0
        %1019 = vmatprep.mubr.f32.mxu0 0.0
        %1020 = vmatmul.mubr.f32.gmra.mrb[0].mxu0 %v950
        %v1021 = vpop.f32.mrb[0].mxu0
        %v1022 = vadd.f32 0.0, %v1021
        %v1023 = vpop.f32.mrb[0].mxu0
        %v1024 = vadd.f32 0.0, %v1023
        %1025 = vmatprep.mubr.f32.mxu0 0.0
        %1026 = vmatmul.mubr.f32.gmra.mrb[0].mxu0 %v953
        %v1027 = vpop.f32.mrb[0].mxu0
        %v1028 = vadd.f32 0.0, %v1027
        %v1029 = vpop.f32.mrb[0].mxu0
        %v1030 = vadd.f32 0.0, %v1029
        %1031 = vdwg.mxu0
        %v1032 = vadd.f32 %v921, %v1022
        %v1033 = vadd.f32 %v922, %v1024
        %v1034 = vadd.f32 %v923, %v1028
        %v1035 = vadd.f32 %v924, %v1030
        %1036 = vrot.lane.b32.xlu0 %v389, 113
        %v1037 = vpop.permute.xlu0 %1036
        %1038 = vrot.lane.b32.xlu0 %v391, 113
        %v1039 = vpop.permute.xlu0 %1038
        %1040 = vrot.lane.b32.xlu0 %v390, 113
        %v1041 = vpop.permute.xlu0 %1040
        %1042 = vrot.lane.b32.xlu0 %v392, 113
        %v1043 = vpop.permute.xlu0 %1042
        %vm1044 = vcmp.lt.s32.totalorder %v406, 113
        %v1045 = vsel %vm1044, %v1037, %v1041
        %v1046 = vsel %vm1044, %v1039, %v1043
        %v1047 = vsel %vm1044, %v1041, %v1037
        %v1048 = vsel %vm1044, %v1043, %v1039
        %v1049 = vld [vmem:[%s5 + $0xc0] sm:$0xff]
        %v1050 = vld [vmem:[%s5 + $0xc8] sm:$0xff]
        %v1051 = vld [vmem:[%s5 + $0xd0] sm:$0xff]
        %v1052 = vld [vmem:[%s5 + $0xd8] sm:$0xff]
        %v1053 = vmul.f32 %v1045, %v1049
        %v1054 = vmul.f32 %v1047, %v1050
        %v1055 = vmul.f32 %v1046, %v1051
        %v1056 = vmul.f32 %v1048, %v1052
        %s1057 = scalar_lea.vmem %s2, 96
        %v1058 = vld [vmem:[%s1057] sm:$0xff]
        %v1059 = vld [vmem:[%s1057 + $0x8] sm:$0xff]
        %v1061 = vsel %vm446, %v1058, 0
        %v1064 = vsel %vm446, %v1059, 0
        %1066 = vmatprep.subr.mxu0 %v1054
        %1067 = vmatpush1.msra.mxu0 %v1053
        %1068 = vmatprep.subr.mxu0 %v1056
        %1069 = vmatpush1.msra.mxu0 %v1055
        %1070 = vmatprep.subr.mxu0 0.0
        %1071 = vmatpush1.msra.mxu0 0.0
        %1072 = vmatprep.subr.mxu0 0.0
        %1073 = vmatpush1.msra.mxu0 0.0
        %1074 = vmatprep.subr.mxu0 0.0
        %1075 = vmatpush1.msra.mxu0 0.0
        %1076 = vmatprep.subr.mxu0 0.0
        %1077 = vmatpush1.msra.mxu0 0.0
        %1078 = vmatprep.subr.mxu0 0.0
        %1079 = vmatpush1.msra.mxu0 0.0
        %1080 = vmatprep.subr.mxu0 0.0
        %1081 = vmatpush1.msra.mxu0 0.0
        %1082 = vmatprep.subr.mxu0 0.0
        %1083 = vmatpush1.msra.mxu0 0.0
        %1084 = vmatprep.subr.mxu0 0.0
        %1085 = vmatpush1.msra.mxu0 0.0
        %1086 = vmatprep.subr.mxu0 0.0
        %1087 = vmatpush1.msra.mxu0 0.0
        %1088 = vmatprep.subr.mxu0 0.0
        %1089 = vmatpush1.msra.mxu0 0.0
        %1090 = vmatprep.subr.mxu0 0.0
        %1091 = vmatpush1.msra.mxu0 0.0
        %1092 = vmatprep.subr.mxu0 0.0
        %1093 = vmatpush1.msra.mxu0 0.0
        %1094 = vmatprep.subr.mxu0 0.0
        %1095 = vmatpush1.msra.mxu0 0.0
        %1096 = vmatprep.subr.mxu0 0.0
        %1097 = vmatpush1.msra.mxu0 0.0
        %1098 = vmatprep.subr.mxu0 0.0
        %1099 = vmatpush1.msra.mxu0 0.0
        %1100 = vmatprep.subr.mxu0 0.0
        %1101 = vmatpush1.msra.mxu0 0.0
        %1102 = vmatprep.subr.mxu0 0.0
        %1103 = vmatpush1.msra.mxu0 0.0
        %1104 = vmatprep.subr.mxu0 0.0
        %1105 = vmatpush1.msra.mxu0 0.0
        %1106 = vmatprep.subr.mxu0 0.0
        %1107 = vmatpush1.msra.mxu0 0.0
        %1108 = vmatprep.subr.mxu0 0.0
        %1109 = vmatpush1.msra.mxu0 0.0
        %1110 = vmatprep.subr.mxu0 0.0
        %1111 = vmatpush1.msra.mxu0 0.0
        %1112 = vmatprep.subr.mxu0 0.0
        %1113 = vmatpush1.msra.mxu0 0.0
        %1114 = vmatprep.subr.mxu0 0.0
        %1115 = vmatpush1.msra.mxu0 0.0
        %1116 = vmatprep.subr.mxu0 0.0
        %1117 = vmatpush1.msra.mxu0 0.0
        %1118 = vmatprep.subr.mxu0 0.0
        %1119 = vmatpush1.msra.mxu0 0.0
        %1120 = vmatprep.subr.mxu0 0.0
        %1121 = vmatpush1.msra.mxu0 0.0
        %1122 = vmatprep.subr.mxu0 0.0
        %1123 = vmatpush1.msra.mxu0 0.0
        %1124 = vmatprep.subr.mxu0 0.0
        %1125 = vmatpush1.msra.mxu0 0.0
        %1126 = vmatprep.subr.mxu0 0.0
        %1127 = vmatpush1.msra.mxu0 0.0
        %1128 = vmatprep.subr.mxu0 0.0
        %1129 = vmatpush1.msra.mxu0 0.0
        %1130 = vmatprep.mubr.f32.mxu0 0.0
        %1131 = vmatmul.mubr.f32.gmra.mrb[0].mxu0 %v1061
        %v1132 = vpop.f32.mrb[0].mxu0
        %v1133 = vadd.f32 0.0, %v1132
        %v1134 = vpop.f32.mrb[0].mxu0
        %v1135 = vadd.f32 0.0, %v1134
        %1136 = vmatprep.mubr.f32.mxu0 0.0
        %1137 = vmatmul.mubr.f32.gmra.mrb[0].mxu0 %v1064
        %v1138 = vpop.f32.mrb[0].mxu0
        %v1139 = vadd.f32 0.0, %v1138
        %v1140 = vpop.f32.mrb[0].mxu0
        %v1141 = vadd.f32 0.0, %v1140
        %1142 = vdwg.mxu0
        %v1143 = vadd.f32 %v1032, %v1133
        %v1144 = vadd.f32 %v1033, %v1135
        %v1145 = vadd.f32 %v1034, %v1139
        %v1146 = vadd.f32 %v1035, %v1141
        %1147 = vrot.lane.b32.xlu0 %v389, 112
        %v1148 = vpop.permute.xlu0 %1147
        %1149 = vrot.lane.b32.xlu0 %v391, 112
        %v1150 = vpop.permute.xlu0 %1149
        %1151 = vrot.lane.b32.xlu0 %v390, 112
        %v1152 = vpop.permute.xlu0 %1151
        %1153 = vrot.lane.b32.xlu0 %v392, 112
        %v1154 = vpop.permute.xlu0 %1153
        %vm1155 = vcmp.lt.s32.totalorder %v406, 112
        %v1156 = vsel %vm1155, %v1148, %v1152
        %v1157 = vsel %vm1155, %v1150, %v1154
        %v1158 = vsel %vm1155, %v1152, %v1148
        %v1159 = vsel %vm1155, %v1154, %v1150
        %v1160 = vld [vmem:[%s5 + $0xe0] sm:$0xff]
        %v1161 = vld [vmem:[%s5 + $0xe8] sm:$0xff]
        %v1162 = vld [vmem:[%s5 + $0xf0] sm:$0xff]
        %v1163 = vld [vmem:[%s5 + $0xf8] sm:$0xff]
        %v1164 = vmul.f32 %v1156, %v1160
        %v1165 = vmul.f32 %v1158, %v1161
        %v1166 = vmul.f32 %v1157, %v1162
        %v1167 = vmul.f32 %v1159, %v1163
        %s1168 = scalar_lea.vmem %s2, 112
        %v1169 = vld [vmem:[%s1168] sm:$0xff]
        %v1170 = vld [vmem:[%s1168 + $0x8] sm:$0xff]
        %v1172 = vsel %vm446, %v1169, 0
        %v1175 = vsel %vm446, %v1170, 0
        %1177 = vmatprep.subr.mxu0 %v1165
        %1178 = vmatpush1.msra.mxu0 %v1164
        %1179 = vmatprep.subr.mxu0 %v1167
        %1180 = vmatpush1.msra.mxu0 %v1166
        %1181 = vmatprep.subr.mxu0 0.0
        %1182 = vmatpush1.msra.mxu0 0.0
        %1183 = vmatprep.subr.mxu0 0.0
        %1184 = vmatpush1.msra.mxu0 0.0
        %1185 = vmatprep.subr.mxu0 0.0
        %1186 = vmatpush1.msra.mxu0 0.0
        %1187 = vmatprep.subr.mxu0 0.0
        %1188 = vmatpush1.msra.mxu0 0.0
        %1189 = vmatprep.subr.mxu0 0.0
        %1190 = vmatpush1.msra.mxu0 0.0
        %1191 = vmatprep.subr.mxu0 0.0
        %1192 = vmatpush1.msra.mxu0 0.0
        %1193 = vmatprep.subr.mxu0 0.0
        %1194 = vmatpush1.msra.mxu0 0.0
        %1195 = vmatprep.subr.mxu0 0.0
        %1196 = vmatpush1.msra.mxu0 0.0
        %1197 = vmatprep.subr.mxu0 0.0
        %1198 = vmatpush1.msra.mxu0 0.0
        %1199 = vmatprep.subr.mxu0 0.0
        %1200 = vmatpush1.msra.mxu0 0.0
        %1201 = vmatprep.subr.mxu0 0.0
        %1202 = vmatpush1.msra.mxu0 0.0
        %1203 = vmatprep.subr.mxu0 0.0
        %1204 = vmatpush1.msra.mxu0 0.0
        %1205 = vmatprep.subr.mxu0 0.0
        %1206 = vmatpush1.msra.mxu0 0.0
        %1207 = vmatprep.subr.mxu0 0.0
        %1208 = vmatpush1.msra.mxu0 0.0
        %1209 = vmatprep.subr.mxu0 0.0
        %1210 = vmatpush1.msra.mxu0 0.0
        %1211 = vmatprep.subr.mxu0 0.0
        %1212 = vmatpush1.msra.mxu0 0.0
        %1213 = vmatprep.subr.mxu0 0.0
        %1214 = vmatpush1.msra.mxu0 0.0
        %1215 = vmatprep.subr.mxu0 0.0
        %1216 = vmatpush1.msra.mxu0 0.0
        %1217 = vmatprep.subr.mxu0 0.0
        %1218 = vmatpush1.msra.mxu0 0.0
        %1219 = vmatprep.subr.mxu0 0.0
        %1220 = vmatpush1.msra.mxu0 0.0
        %1221 = vmatprep.subr.mxu0 0.0
        %1222 = vmatpush1.msra.mxu0 0.0
        %1223 = vmatprep.subr.mxu0 0.0
        %1224 = vmatpush1.msra.mxu0 0.0
        %1225 = vmatprep.subr.mxu0 0.0
        %1226 = vmatpush1.msra.mxu0 0.0
        %1227 = vmatprep.subr.mxu0 0.0
        %1228 = vmatpush1.msra.mxu0 0.0
        %1229 = vmatprep.subr.mxu0 0.0
        %1230 = vmatpush1.msra.mxu0 0.0
        %1231 = vmatprep.subr.mxu0 0.0
        %1232 = vmatpush1.msra.mxu0 0.0
        %1233 = vmatprep.subr.mxu0 0.0
        %1234 = vmatpush1.msra.mxu0 0.0
        %1235 = vmatprep.subr.mxu0 0.0
        %1236 = vmatpush1.msra.mxu0 0.0
        %1237 = vmatprep.subr.mxu0 0.0
        %1238 = vmatpush1.msra.mxu0 0.0
        %1239 = vmatprep.subr.mxu0 0.0
        %1240 = vmatpush1.msra.mxu0 0.0
        %1241 = vmatprep.mubr.f32.mxu0 0.0
        %1242 = vmatmul.mubr.f32.gmra.mrb[0].mxu0 %v1172
        %v1243 = vpop.f32.mrb[0].mxu0
        %v1244 = vadd.f32 0.0, %v1243
        %v1245 = vpop.f32.mrb[0].mxu0
        %v1246 = vadd.f32 0.0, %v1245
        %1247 = vmatprep.mubr.f32.mxu0 0.0
        %1248 = vmatmul.mubr.f32.gmra.mrb[0].mxu0 %v1175
        %v1249 = vpop.f32.mrb[0].mxu0
        %v1250 = vadd.f32 0.0, %v1249
        %v1251 = vpop.f32.mrb[0].mxu0
        %v1252 = vadd.f32 0.0, %v1251
        %1253 = vdwg.mxu0
        %v1254 = vadd.f32 %v1143, %v1244
        %v1255 = vadd.f32 %v1144, %v1246
        %v1256 = vadd.f32 %v1145, %v1250
        %v1257 = vadd.f32 %v1146, %v1252
        %1258 = vrot.lane.b32.xlu0 %v389, 111
        %v1259 = vpop.permute.xlu0 %1258
        %1260 = vrot.lane.b32.xlu0 %v391, 111
        %v1261 = vpop.permute.xlu0 %1260
        %1262 = vrot.lane.b32.xlu0 %v390, 111
        %v1263 = vpop.permute.xlu0 %1262
        %1264 = vrot.lane.b32.xlu0 %v392, 111
        %v1265 = vpop.permute.xlu0 %1264
        %vm1266 = vcmp.lt.s32.totalorder %v406, 111
        %v1267 = vsel %vm1266, %v1259, %v1263
        %v1268 = vsel %vm1266, %v1261, %v1265
        %v1269 = vsel %vm1266, %v1263, %v1259
        %v1270 = vsel %vm1266, %v1265, %v1261
        %v1271 = vld [vmem:[%s5 + $0x100] sm:$0xff]
        %v1272 = vld [vmem:[%s5 + $0x108] sm:$0xff]
        %v1273 = vld [vmem:[%s5 + $0x110] sm:$0xff]
        %v1274 = vld [vmem:[%s5 + $0x118] sm:$0xff]
        %v1275 = vmul.f32 %v1267, %v1271
        %v1276 = vmul.f32 %v1269, %v1272
        %v1277 = vmul.f32 %v1268, %v1273
        %v1278 = vmul.f32 %v1270, %v1274
        %s1279 = scalar_lea.vmem %s2, 128
        %v1280 = vld [vmem:[%s1279] sm:$0xff]
        %v1281 = vld [vmem:[%s1279 + $0x8] sm:$0xff]
        %v1283 = vsel %vm446, %v1280, 0
        %v1286 = vsel %vm446, %v1281, 0
        %1288 = vmatprep.subr.mxu0 %v1276
        %1289 = vmatpush1.msra.mxu0 %v1275
        %1290 = vmatprep.subr.mxu0 %v1278
        %1291 = vmatpush1.msra.mxu0 %v1277
        %1292 = vmatprep.subr.mxu0 0.0
        %1293 = vmatpush1.msra.mxu0 0.0
        %1294 = vmatprep.subr.mxu0 0.0
        %1295 = vmatpush1.msra.mxu0 0.0
        %1296 = vmatprep.subr.mxu0 0.0
        %1297 = vmatpush1.msra.mxu0 0.0
        %1298 = vmatprep.subr.mxu0 0.0
        %1299 = vmatpush1.msra.mxu0 0.0
        %1300 = vmatprep.subr.mxu0 0.0
        %1301 = vmatpush1.msra.mxu0 0.0
        %1302 = vmatprep.subr.mxu0 0.0
        %1303 = vmatpush1.msra.mxu0 0.0
        %1304 = vmatprep.subr.mxu0 0.0
        %1305 = vmatpush1.msra.mxu0 0.0
        %1306 = vmatprep.subr.mxu0 0.0
        %1307 = vmatpush1.msra.mxu0 0.0
        %1308 = vmatprep.subr.mxu0 0.0
        %1309 = vmatpush1.msra.mxu0 0.0
        %1310 = vmatprep.subr.mxu0 0.0
        %1311 = vmatpush1.msra.mxu0 0.0
        %1312 = vmatprep.subr.mxu0 0.0
        %1313 = vmatpush1.msra.mxu0 0.0
        %1314 = vmatprep.subr.mxu0 0.0
        %1315 = vmatpush1.msra.mxu0 0.0
        %1316 = vmatprep.subr.mxu0 0.0
        %1317 = vmatpush1.msra.mxu0 0.0
        %1318 = vmatprep.subr.mxu0 0.0
        %1319 = vmatpush1.msra.mxu0 0.0
        %1320 = vmatprep.subr.mxu0 0.0
        %1321 = vmatpush1.msra.mxu0 0.0
        %1322 = vmatprep.subr.mxu0 0.0
        %1323 = vmatpush1.msra.mxu0 0.0
        %1324 = vmatprep.subr.mxu0 0.0
        %1325 = vmatpush1.msra.mxu0 0.0
        %1326 = vmatprep.subr.mxu0 0.0
        %1327 = vmatpush1.msra.mxu0 0.0
        %1328 = vmatprep.subr.mxu0 0.0
        %1329 = vmatpush1.msra.mxu0 0.0
        %1330 = vmatprep.subr.mxu0 0.0
        %1331 = vmatpush1.msra.mxu0 0.0
        %1332 = vmatprep.subr.mxu0 0.0
        %1333 = vmatpush1.msra.mxu0 0.0
        %1334 = vmatprep.subr.mxu0 0.0
        %1335 = vmatpush1.msra.mxu0 0.0
        %1336 = vmatprep.subr.mxu0 0.0
        %1337 = vmatpush1.msra.mxu0 0.0
        %1338 = vmatprep.subr.mxu0 0.0
        %1339 = vmatpush1.msra.mxu0 0.0
        %1340 = vmatprep.subr.mxu0 0.0
        %1341 = vmatpush1.msra.mxu0 0.0
        %1342 = vmatprep.subr.mxu0 0.0
        %1343 = vmatpush1.msra.mxu0 0.0
        %1344 = vmatprep.subr.mxu0 0.0
        %1345 = vmatpush1.msra.mxu0 0.0
        %1346 = vmatprep.subr.mxu0 0.0
        %1347 = vmatpush1.msra.mxu0 0.0
        %1348 = vmatprep.subr.mxu0 0.0
        %1349 = vmatpush1.msra.mxu0 0.0
        %1350 = vmatprep.subr.mxu0 0.0
        %1351 = vmatpush1.msra.mxu0 0.0
        %1352 = vmatprep.mubr.f32.mxu0 0.0
        %1353 = vmatmul.mubr.f32.gmra.mrb[0].mxu0 %v1283
        %v1354 = vpop.f32.mrb[0].mxu0
        %v1355 = vadd.f32 0.0, %v1354
        %v1356 = vpop.f32.mrb[0].mxu0
        %v1357 = vadd.f32 0.0, %v1356
        %1358 = vmatprep.mubr.f32.mxu0 0.0
        %1359 = vmatmul.mubr.f32.gmra.mrb[0].mxu0 %v1286
        %v1360 = vpop.f32.mrb[0].mxu0
        %v1361 = vadd.f32 0.0, %v1360
        %v1362 = vpop.f32.mrb[0].mxu0
        %v1363 = vadd.f32 0.0, %v1362
        %1364 = vdwg.mxu0
        %v1365 = vadd.f32 %v1254, %v1355
        %v1366 = vadd.f32 %v1255, %v1357
        %v1367 = vadd.f32 %v1256, %v1361
        %v1368 = vadd.f32 %v1257, %v1363
        %v1369 = vld [vmem:[%s4 + $0x20] sm:$0xff]
        %v1370 = vld [vmem:[%s4 + $0x28] sm:$0xff]
        %1372 = vset.pattern.permute.xlu0 0
        %1373 = vperm.xlu0 %1372, %v1369
        %v1374 = vpop.permute.xlu0 %1373
        %1377 = vset.pattern.permute.xlu0 0
        %1378 = vperm.xlu0 %1377, %v1370
        %v1379 = vpop.permute.xlu0 %1378
        %v1381 = vadd.f32 %v1365, %v1374
        %v1382 = vadd.f32 %v1366, %v1374
        %v1383 = vadd.f32 %v1367, %v1379
        %v1384 = vadd.f32 %v1368, %v1379
        %v1385 = vmax.f32 %v1381, 0.0
        %v1386 = vmax.f32 %v1382, 0.0
        %v1387 = vmax.f32 %v1383, 0.0
        %v1388 = vmax.f32 %v1384, 0.0
        %1389 = vst [vmem:[%s241 + $0x10] sm:$0xff] %v1385
        %1390 = vst [vmem:[%s241 + $0x18] sm:$0xff] %v1386
        %1391 = vst [vmem:[%s241 + $0x30] sm:$0xff] %v1387
        %1392 = vst [vmem:[%s241 + $0x38] sm:$0xff] %v1388
        %1393 = vrot.lane.b32.xlu0 %v393, 34
        %v1394 = vpop.permute.xlu0 %1393
        %1395 = vrot.lane.b32.xlu0 %v394, 34
        %v1396 = vpop.permute.xlu0 %1395
        %vm1397 = vcmp.lt.s32.totalorder %v406, 34
        %v1398 = vsel %vm1397, %v1394, %v1396
        %v1399 = vsel %vm1397, %v1396, %v1394
        %v1400 = vld [vmem:[%s5 + $0x120] sm:$0xff]
        %v1401 = vld [vmem:[%s5 + $0x128] sm:$0xff]
        %v1402 = vmul.f32 %v1399, %v1400
        %v1403 = vmul.f32 %v1398, %v1401
        %v1404 = vld [vmem:[%s3] sm:$0xff]
        %1405 = vrot.lane.b32.xlu0 %v393, 33
        %v1406 = vpop.permute.xlu0 %1405
        %1407 = vrot.lane.b32.xlu0 %v394, 33
        %v1408 = vpop.permute.xlu0 %1407
        %vm1409 = vcmp.lt.s32.totalorder %v406, 33
        %v1410 = vsel %vm1409, %v1406, %v1408
        %v1411 = vsel %vm1409, %v1408, %v1406
        %v1412 = vld [vmem:[%s5 + $0x130] sm:$0xff]
        %v1413 = vld [vmem:[%s5 + $0x138] sm:$0xff]
        %v1414 = vmul.f32 %v1411, %v1412
        %v1415 = vmul.f32 %v1410, %v1413
        %s1416 = scalar_lea.vmem %s3, 8
        %v1417 = vld [vmem:[%s1416] sm:$0xff]
        %vm1418 = vcmask 64512
        %v1420 = vsel %vm1418, %v1417, 0
        %1422 = vmatprep.subr.mxu0 %v1415
        %1423 = vmatpush1.msra.mxu0 %v1414
        %1424 = vmatprep.subr.mxu0 0.0
        %1425 = vmatpush1.msra.mxu0 0.0
        %1426 = vmatprep.subr.mxu0 0.0
        %1427 = vmatpush1.msra.mxu0 0.0
        %1428 = vmatprep.subr.mxu0 0.0
        %1429 = vmatpush1.msra.mxu0 0.0
        %1430 = vmatprep.subr.mxu0 0.0
        %1431 = vmatpush1.msra.mxu0 0.0
        %1432 = vmatprep.subr.mxu0 0.0
        %1433 = vmatpush1.msra.mxu0 0.0
        %1434 = vmatprep.subr.mxu0 0.0
        %1435 = vmatpush1.msra.mxu0 0.0
        %1436 = vmatprep.subr.mxu0 0.0
        %1437 = vmatpush1.msra.mxu0 0.0
        %1438 = vmatprep.subr.mxu0 0.0
        %1439 = vmatpush1.msra.mxu0 0.0
        %1440 = vmatprep.subr.mxu0 0.0
        %1441 = vmatpush1.msra.mxu0 0.0
        %1442 = vmatprep.subr.mxu0 0.0
        %1443 = vmatpush1.msra.mxu0 0.0
        %1444 = vmatprep.subr.mxu0 0.0
        %1445 = vmatpush1.msra.mxu0 0.0
        %1446 = vmatprep.subr.mxu0 0.0
        %1447 = vmatpush1.msra.mxu0 0.0
        %1448 = vmatprep.subr.mxu0 0.0
        %1449 = vmatpush1.msra.mxu0 0.0
        %1450 = vmatprep.subr.mxu0 0.0
        %1451 = vmatpush1.msra.mxu0 0.0
        %1452 = vmatprep.subr.mxu0 0.0
        %1453 = vmatpush1.msra.mxu0 0.0
        %1454 = vmatprep.subr.mxu0 0.0
        %1455 = vmatpush1.msra.mxu0 0.0
        %1456 = vmatprep.subr.mxu0 0.0
        %1457 = vmatpush1.msra.mxu0 0.0
        %1458 = vmatprep.subr.mxu0 0.0
        %1459 = vmatpush1.msra.mxu0 0.0
        %1460 = vmatprep.subr.mxu0 0.0
        %1461 = vmatpush1.msra.mxu0 0.0
        %1462 = vmatprep.subr.mxu0 0.0
        %1463 = vmatpush1.msra.mxu0 0.0
        %1464 = vmatprep.subr.mxu0 0.0
        %1465 = vmatpush1.msra.mxu0 0.0
        %1466 = vmatprep.subr.mxu0 0.0
        %1467 = vmatpush1.msra.mxu0 0.0
        %1468 = vmatprep.subr.mxu0 0.0
        %1469 = vmatpush1.msra.mxu0 0.0
        %1470 = vmatprep.subr.mxu0 0.0
        %1471 = vmatpush1.msra.mxu0 0.0
        %1472 = vmatprep.subr.mxu0 0.0
        %1473 = vmatpush1.msra.mxu0 0.0
        %1474 = vmatprep.subr.mxu0 0.0
        %1475 = vmatpush1.msra.mxu0 0.0
        %1476 = vmatprep.subr.mxu0 0.0
        %1477 = vmatpush1.msra.mxu0 0.0
        %1478 = vmatprep.subr.mxu0 0.0
        %1479 = vmatpush1.msra.mxu0 0.0
        %1480 = vmatprep.subr.mxu0 0.0
        %1481 = vmatpush1.msra.mxu0 0.0
        %1482 = vmatprep.subr.mxu0 0.0
        %1483 = vmatpush1.msra.mxu0 0.0
        %1484 = vmatprep.subr.mxu0 0.0
        %1485 = vmatpush1.msra.mxu0 0.0
        %1486 = vmatprep.mubr.f32.mxu0 0.0
        %1487 = vmatmul.mubr.f32.gmra.mrb[0].mxu0 %v1420
        %v1488 = vpop.f32.mrb[0].mxu0
        %v1489 = vadd.f32 0.0, %v1488
        %v1490 = vpop.f32.mrb[0].mxu0
        %v1491 = vadd.f32 0.0, %v1490
        %1492 = vdwg.mxu0
        %v1494 = vsel %vm1418, %v1404, 0
        %1496 = vmatprep.subr.mxu0 %v1403
        %1497 = vmatpush1.msra.mxu0 %v1402
        %1498 = vmatprep.subr.mxu0 0.0
        %1499 = vmatpush1.msra.mxu0 0.0
        %1500 = vmatprep.subr.mxu0 0.0
        %1501 = vmatpush1.msra.mxu0 0.0
        %1502 = vmatprep.subr.mxu0 0.0
        %1503 = vmatpush1.msra.mxu0 0.0
        %1504 = vmatprep.subr.mxu0 0.0
        %1505 = vmatpush1.msra.mxu0 0.0
        %1506 = vmatprep.subr.mxu0 0.0
        %1507 = vmatpush1.msra.mxu0 0.0
        %1508 = vmatprep.subr.mxu0 0.0
        %1509 = vmatpush1.msra.mxu0 0.0
        %1510 = vmatprep.subr.mxu0 0.0
        %1511 = vmatpush1.msra.mxu0 0.0
        %1512 = vmatprep.subr.mxu0 0.0
        %1513 = vmatpush1.msra.mxu0 0.0
        %1514 = vmatprep.subr.mxu0 0.0
        %1515 = vmatpush1.msra.mxu0 0.0
        %1516 = vmatprep.subr.mxu0 0.0
        %1517 = vmatpush1.msra.mxu0 0.0
        %1518 = vmatprep.subr.mxu0 0.0
        %1519 = vmatpush1.msra.mxu0 0.0
        %1520 = vmatprep.subr.mxu0 0.0
        %1521 = vmatpush1.msra.mxu0 0.0
        %1522 = vmatprep.subr.mxu0 0.0
        %1523 = vmatpush1.msra.mxu0 0.0
        %1524 = vmatprep.subr.mxu0 0.0
        %1525 = vmatpush1.msra.mxu0 0.0
        %1526 = vmatprep.subr.mxu0 0.0
        %1527 = vmatpush1.msra.mxu0 0.0
        %1528 = vmatprep.subr.mxu0 0.0
        %1529 = vmatpush1.msra.mxu0 0.0
        %1530 = vmatprep.subr.mxu0 0.0
        %1531 = vmatpush1.msra.mxu0 0.0
        %1532 = vmatprep.subr.mxu0 0.0
        %1533 = vmatpush1.msra.mxu0 0.0
        %1534 = vmatprep.subr.mxu0 0.0
        %1535 = vmatpush1.msra.mxu0 0.0
        %1536 = vmatprep.subr.mxu0 0.0
        %1537 = vmatpush1.msra.mxu0 0.0
        %1538 = vmatprep.subr.mxu0 0.0
        %1539 = vmatpush1.msra.mxu0 0.0
        %1540 = vmatprep.subr.mxu0 0.0
        %1541 = vmatpush1.msra.mxu0 0.0
        %1542 = vmatprep.subr.mxu0 0.0
        %1543 = vmatpush1.msra.mxu0 0.0
        %1544 = vmatprep.subr.mxu0 0.0
        %1545 = vmatpush1.msra.mxu0 0.0
        %1546 = vmatprep.subr.mxu0 0.0
        %1547 = vmatpush1.msra.mxu0 0.0
        %1548 = vmatprep.subr.mxu0 0.0
        %1549 = vmatpush1.msra.mxu0 0.0
        %1550 = vmatprep.subr.mxu0 0.0
        %1551 = vmatpush1.msra.mxu0 0.0
        %1552 = vmatprep.subr.mxu0 0.0
        %1553 = vmatpush1.msra.mxu0 0.0
        %1554 = vmatprep.subr.mxu0 0.0
        %1555 = vmatpush1.msra.mxu0 0.0
        %1556 = vmatprep.subr.mxu0 0.0
        %1557 = vmatpush1.msra.mxu0 0.0
        %1558 = vmatprep.subr.mxu0 0.0
        %1559 = vmatpush1.msra.mxu0 0.0
        %1560 = vmatprep.mubr.f32.mxu0 0.0
        %1561 = vmatmul.mubr.f32.gmra.mrb[0].mxu0 %v1494
        %v1562 = vpop.f32.mrb[0].mxu0
        %v1563 = vadd.f32 %v1489, %v1562
        %v1564 = vpop.f32.mrb[0].mxu0
        %v1565 = vadd.f32 %v1491, %v1564
        %1566 = vdwg.mxu0
        %1567 = vrot.lane.b32.xlu0 %v393, 32
        %v1568 = vpop.permute.xlu0 %1567
        %1569 = vrot.lane.b32.xlu0 %v394, 32
        %v1570 = vpop.permute.xlu0 %1569
        %vm1571 = vcmp.lt.s32.totalorder %v406, 32
        %v1572 = vsel %vm1571, %v1568, %v1570
        %v1573 = vsel %vm1571, %v1570, %v1568
        %v1574 = vld [vmem:[%s5 + $0x140] sm:$0xff]
        %v1575 = vld [vmem:[%s5 + $0x148] sm:$0xff]
        %v1576 = vmul.f32 %v1573, %v1574
        %v1577 = vmul.f32 %v1572, %v1575
        %s1578 = scalar_lea.vmem %s3, 16
        %v1579 = vld [vmem:[%s1578] sm:$0xff]
        %v1581 = vsel %vm1418, %v1579, 0
        %1583 = vmatprep.subr.mxu0 %v1577
        %1584 = vmatpush1.msra.mxu0 %v1576
        %1585 = vmatprep.subr.mxu0 0.0
        %1586 = vmatpush1.msra.mxu0 0.0
        %1587 = vmatprep.subr.mxu0 0.0
        %1588 = vmatpush1.msra.mxu0 0.0
        %1589 = vmatprep.subr.mxu0 0.0
        %1590 = vmatpush1.msra.mxu0 0.0
        %1591 = vmatprep.subr.mxu0 0.0
        %1592 = vmatpush1.msra.mxu0 0.0
        %1593 = vmatprep.subr.mxu0 0.0
        %1594 = vmatpush1.msra.mxu0 0.0
        %1595 = vmatprep.subr.mxu0 0.0
        %1596 = vmatpush1.msra.mxu0 0.0
        %1597 = vmatprep.subr.mxu0 0.0
        %1598 = vmatpush1.msra.mxu0 0.0
        %1599 = vmatprep.subr.mxu0 0.0
        %1600 = vmatpush1.msra.mxu0 0.0
        %1601 = vmatprep.subr.mxu0 0.0
        %1602 = vmatpush1.msra.mxu0 0.0
        %1603 = vmatprep.subr.mxu0 0.0
        %1604 = vmatpush1.msra.mxu0 0.0
        %1605 = vmatprep.subr.mxu0 0.0
        %1606 = vmatpush1.msra.mxu0 0.0
        %1607 = vmatprep.subr.mxu0 0.0
        %1608 = vmatpush1.msra.mxu0 0.0
        %1609 = vmatprep.subr.mxu0 0.0
        %1610 = vmatpush1.msra.mxu0 0.0
        %1611 = vmatprep.subr.mxu0 0.0
        %1612 = vmatpush1.msra.mxu0 0.0
        %1613 = vmatprep.subr.mxu0 0.0
        %1614 = vmatpush1.msra.mxu0 0.0
        %1615 = vmatprep.subr.mxu0 0.0
        %1616 = vmatpush1.msra.mxu0 0.0
        %1617 = vmatprep.subr.mxu0 0.0
        %1618 = vmatpush1.msra.mxu0 0.0
        %1619 = vmatprep.subr.mxu0 0.0
        %1620 = vmatpush1.msra.mxu0 0.0
        %1621 = vmatprep.subr.mxu0 0.0
        %1622 = vmatpush1.msra.mxu0 0.0
        %1623 = vmatprep.subr.mxu0 0.0
        %1624 = vmatpush1.msra.mxu0 0.0
        %1625 = vmatprep.subr.mxu0 0.0
        %1626 = vmatpush1.msra.mxu0 0.0
        %1627 = vmatprep.subr.mxu0 0.0
        %1628 = vmatpush1.msra.mxu0 0.0
        %1629 = vmatprep.subr.mxu0 0.0
        %1630 = vmatpush1.msra.mxu0 0.0
        %1631 = vmatprep.subr.mxu0 0.0
        %1632 = vmatpush1.msra.mxu0 0.0
        %1633 = vmatprep.subr.mxu0 0.0
        %1634 = vmatpush1.msra.mxu0 0.0
        %1635 = vmatprep.subr.mxu0 0.0
        %1636 = vmatpush1.msra.mxu0 0.0
        %1637 = vmatprep.subr.mxu0 0.0
        %1638 = vmatpush1.msra.mxu0 0.0
        %1639 = vmatprep.subr.mxu0 0.0
        %1640 = vmatpush1.msra.mxu0 0.0
        %1641 = vmatprep.subr.mxu0 0.0
        %1642 = vmatpush1.msra.mxu0 0.0
        %1643 = vmatprep.subr.mxu0 0.0
        %1644 = vmatpush1.msra.mxu0 0.0
        %1645 = vmatprep.subr.mxu0 0.0
        %1646 = vmatpush1.msra.mxu0 0.0
        %1647 = vmatprep.mubr.f32.mxu0 0.0
        %1648 = vmatmul.mubr.f32.gmra.mrb[0].mxu0 %v1581
        %v1649 = vpop.f32.mrb[0].mxu0
        %v1650 = vadd.f32 0.0, %v1649
        %v1651 = vpop.f32.mrb[0].mxu0
        %v1652 = vadd.f32 0.0, %v1651
        %1653 = vdwg.mxu0
        %v1654 = vadd.f32 %v1563, %v1650
        %v1655 = vadd.f32 %v1565, %v1652
        %1656 = vrot.lane.b32.xlu0 %v393, 31
        %v1657 = vpop.permute.xlu0 %1656
        %1658 = vrot.lane.b32.xlu0 %v394, 31
        %v1659 = vpop.permute.xlu0 %1658
        %vm1660 = vcmp.lt.s32.totalorder %v406, 31
        %v1661 = vsel %vm1660, %v1657, %v1659
        %v1662 = vsel %vm1660, %v1659, %v1657
        %v1663 = vld [vmem:[%s5 + $0x150] sm:$0xff]
        %v1664 = vld [vmem:[%s5 + $0x158] sm:$0xff]
        %v1665 = vmul.f32 %v1662, %v1663
        %v1666 = vmul.f32 %v1661, %v1664
        %s1667 = scalar_lea.vmem %s3, 24
        %v1668 = vld [vmem:[%s1667] sm:$0xff]
        %v1670 = vsel %vm1418, %v1668, 0
        %1672 = vmatprep.subr.mxu0 %v1666
        %1673 = vmatpush1.msra.mxu0 %v1665
        %1674 = vmatprep.subr.mxu0 0.0
        %1675 = vmatpush1.msra.mxu0 0.0
        %1676 = vmatprep.subr.mxu0 0.0
        %1677 = vmatpush1.msra.mxu0 0.0
        %1678 = vmatprep.subr.mxu0 0.0
        %1679 = vmatpush1.msra.mxu0 0.0
        %1680 = vmatprep.subr.mxu0 0.0
        %1681 = vmatpush1.msra.mxu0 0.0
        %1682 = vmatprep.subr.mxu0 0.0
        %1683 = vmatpush1.msra.mxu0 0.0
        %1684 = vmatprep.subr.mxu0 0.0
        %1685 = vmatpush1.msra.mxu0 0.0
        %1686 = vmatprep.subr.mxu0 0.0
        %1687 = vmatpush1.msra.mxu0 0.0
        %1688 = vmatprep.subr.mxu0 0.0
        %1689 = vmatpush1.msra.mxu0 0.0
        %1690 = vmatprep.subr.mxu0 0.0
        %1691 = vmatpush1.msra.mxu0 0.0
        %1692 = vmatprep.subr.mxu0 0.0
        %1693 = vmatpush1.msra.mxu0 0.0
        %1694 = vmatprep.subr.mxu0 0.0
        %1695 = vmatpush1.msra.mxu0 0.0
        %1696 = vmatprep.subr.mxu0 0.0
        %1697 = vmatpush1.msra.mxu0 0.0
        %1698 = vmatprep.subr.mxu0 0.0
        %1699 = vmatpush1.msra.mxu0 0.0
        %1700 = vmatprep.subr.mxu0 0.0
        %1701 = vmatpush1.msra.mxu0 0.0
        %1702 = vmatprep.subr.mxu0 0.0
        %1703 = vmatpush1.msra.mxu0 0.0
        %1704 = vmatprep.subr.mxu0 0.0
        %1705 = vmatpush1.msra.mxu0 0.0
        %1706 = vmatprep.subr.mxu0 0.0
        %1707 = vmatpush1.msra.mxu0 0.0
        %1708 = vmatprep.subr.mxu0 0.0
        %1709 = vmatpush1.msra.mxu0 0.0
        %1710 = vmatprep.subr.mxu0 0.0
        %1711 = vmatpush1.msra.mxu0 0.0
        %1712 = vmatprep.subr.mxu0 0.0
        %1713 = vmatpush1.msra.mxu0 0.0
        %1714 = vmatprep.subr.mxu0 0.0
        %1715 = vmatpush1.msra.mxu0 0.0
        %1716 = vmatprep.subr.mxu0 0.0
        %1717 = vmatpush1.msra.mxu0 0.0
        %1718 = vmatprep.subr.mxu0 0.0
        %1719 = vmatpush1.msra.mxu0 0.0
        %1720 = vmatprep.subr.mxu0 0.0
        %1721 = vmatpush1.msra.mxu0 0.0
        %1722 = vmatprep.subr.mxu0 0.0
        %1723 = vmatpush1.msra.mxu0 0.0
        %1724 = vmatprep.subr.mxu0 0.0
        %1725 = vmatpush1.msra.mxu0 0.0
        %1726 = vmatprep.subr.mxu0 0.0
        %1727 = vmatpush1.msra.mxu0 0.0
        %1728 = vmatprep.subr.mxu0 0.0
        %1729 = vmatpush1.msra.mxu0 0.0
        %1730 = vmatprep.subr.mxu0 0.0
        %1731 = vmatpush1.msra.mxu0 0.0
        %1732 = vmatprep.subr.mxu0 0.0
        %1733 = vmatpush1.msra.mxu0 0.0
        %1734 = vmatprep.subr.mxu0 0.0
        %1735 = vmatpush1.msra.mxu0 0.0
        %1736 = vmatprep.mubr.f32.mxu0 0.0
        %1737 = vmatmul.mubr.f32.gmra.mrb[0].mxu0 %v1670
        %v1738 = vpop.f32.mrb[0].mxu0
        %v1739 = vadd.f32 0.0, %v1738
        %v1740 = vpop.f32.mrb[0].mxu0
        %v1741 = vadd.f32 0.0, %v1740
        %1742 = vdwg.mxu0
        %v1743 = vadd.f32 %v1654, %v1739
        %v1744 = vadd.f32 %v1655, %v1741
        %1745 = vrot.lane.b32.xlu0 %v393, 30
        %v1746 = vpop.permute.xlu0 %1745
        %1747 = vrot.lane.b32.xlu0 %v394, 30
        %v1748 = vpop.permute.xlu0 %1747
        %vm1749 = vcmp.lt.s32.totalorder %v406, 30
        %v1750 = vsel %vm1749, %v1746, %v1748
        %v1751 = vsel %vm1749, %v1748, %v1746
        %v1752 = vld [vmem:[%s5 + $0x160] sm:$0xff]
        %v1753 = vld [vmem:[%s5 + $0x168] sm:$0xff]
        %v1754 = vmul.f32 %v1751, %v1752
        %v1755 = vmul.f32 %v1750, %v1753
        %s1756 = scalar_lea.vmem %s3, 32
        %v1757 = vld [vmem:[%s1756] sm:$0xff]
        %v1759 = vsel %vm1418, %v1757, 0
        %1761 = vmatprep.subr.mxu0 %v1755
        %1762 = vmatpush1.msra.mxu0 %v1754
        %1763 = vmatprep.subr.mxu0 0.0
        %1764 = vmatpush1.msra.mxu0 0.0
        %1765 = vmatprep.subr.mxu0 0.0
        %1766 = vmatpush1.msra.mxu0 0.0
        %1767 = vmatprep.subr.mxu0 0.0
        %1768 = vmatpush1.msra.mxu0 0.0
        %1769 = vmatprep.subr.mxu0 0.0
        %1770 = vmatpush1.msra.mxu0 0.0
        %1771 = vmatprep.subr.mxu0 0.0
        %1772 = vmatpush1.msra.mxu0 0.0
        %1773 = vmatprep.subr.mxu0 0.0
        %1774 = vmatpush1.msra.mxu0 0.0
        %1775 = vmatprep.subr.mxu0 0.0
        %1776 = vmatpush1.msra.mxu0 0.0
        %1777 = vmatprep.subr.mxu0 0.0
        %1778 = vmatpush1.msra.mxu0 0.0
        %1779 = vmatprep.subr.mxu0 0.0
        %1780 = vmatpush1.msra.mxu0 0.0
        %1781 = vmatprep.subr.mxu0 0.0
        %1782 = vmatpush1.msra.mxu0 0.0
        %1783 = vmatprep.subr.mxu0 0.0
        %1784 = vmatpush1.msra.mxu0 0.0
        %1785 = vmatprep.subr.mxu0 0.0
        %1786 = vmatpush1.msra.mxu0 0.0
        %1787 = vmatprep.subr.mxu0 0.0
        %1788 = vmatpush1.msra.mxu0 0.0
        %1789 = vmatprep.subr.mxu0 0.0
        %1790 = vmatpush1.msra.mxu0 0.0
        %1791 = vmatprep.subr.mxu0 0.0
        %1792 = vmatpush1.msra.mxu0 0.0
        %1793 = vmatprep.subr.mxu0 0.0
        %1794 = vmatpush1.msra.mxu0 0.0
        %1795 = vmatprep.subr.mxu0 0.0
        %1796 = vmatpush1.msra.mxu0 0.0
        %1797 = vmatprep.subr.mxu0 0.0
        %1798 = vmatpush1.msra.mxu0 0.0
        %1799 = vmatprep.subr.mxu0 0.0
        %1800 = vmatpush1.msra.mxu0 0.0
        %1801 = vmatprep.subr.mxu0 0.0
        %1802 = vmatpush1.msra.mxu0 0.0
        %1803 = vmatprep.subr.mxu0 0.0
        %1804 = vmatpush1.msra.mxu0 0.0
        %1805 = vmatprep.subr.mxu0 0.0
        %1806 = vmatpush1.msra.mxu0 0.0
        %1807 = vmatprep.subr.mxu0 0.0
        %1808 = vmatpush1.msra.mxu0 0.0
        %1809 = vmatprep.subr.mxu0 0.0
        %1810 = vmatpush1.msra.mxu0 0.0
        %1811 = vmatprep.subr.mxu0 0.0
        %1812 = vmatpush1.msra.mxu0 0.0
        %1813 = vmatprep.subr.mxu0 0.0
        %1814 = vmatpush1.msra.mxu0 0.0
        %1815 = vmatprep.subr.mxu0 0.0
        %1816 = vmatpush1.msra.mxu0 0.0
        %1817 = vmatprep.subr.mxu0 0.0
        %1818 = vmatpush1.msra.mxu0 0.0
        %1819 = vmatprep.subr.mxu0 0.0
        %1820 = vmatpush1.msra.mxu0 0.0
        %1821 = vmatprep.subr.mxu0 0.0
        %1822 = vmatpush1.msra.mxu0 0.0
        %1823 = vmatprep.subr.mxu0 0.0
        %1824 = vmatpush1.msra.mxu0 0.0
        %1825 = vmatprep.mubr.f32.mxu0 0.0
        %1826 = vmatmul.mubr.f32.gmra.mrb[0].mxu0 %v1759
        %v1827 = vpop.f32.mrb[0].mxu0
        %v1828 = vadd.f32 0.0, %v1827
        %v1829 = vpop.f32.mrb[0].mxu0
        %v1830 = vadd.f32 0.0, %v1829
        %1831 = vdwg.mxu0
        %v1832 = vadd.f32 %v1743, %v1828
        %v1833 = vadd.f32 %v1744, %v1830
        %1834 = vrot.lane.b32.xlu0 %v393, 18
        %v1835 = vpop.permute.xlu0 %1834
        %1836 = vrot.lane.b32.xlu0 %v394, 18
        %v1837 = vpop.permute.xlu0 %1836
        %vm1838 = vcmp.lt.s32.totalorder %v406, 18
        %v1839 = vsel %vm1838, %v1835, %v1837
        %v1840 = vsel %vm1838, %v1837, %v1835
        %v1841 = vld [vmem:[%s5 + $0x170] sm:$0xff]
        %v1842 = vld [vmem:[%s5 + $0x178] sm:$0xff]
        %v1843 = vmul.f32 %v1840, %v1841
        %v1844 = vmul.f32 %v1839, %v1842
        %s1845 = scalar_lea.vmem %s3, 40
        %v1846 = vld [vmem:[%s1845] sm:$0xff]
        %v1848 = vsel %vm1418, %v1846, 0
        %1850 = vmatprep.subr.mxu0 %v1844
        %1851 = vmatpush1.msra.mxu0 %v1843
        %1852 = vmatprep.subr.mxu0 0.0
        %1853 = vmatpush1.msra.mxu0 0.0
        %1854 = vmatprep.subr.mxu0 0.0
        %1855 = vmatpush1.msra.mxu0 0.0
        %1856 = vmatprep.subr.mxu0 0.0
        %1857 = vmatpush1.msra.mxu0 0.0
        %1858 = vmatprep.subr.mxu0 0.0
        %1859 = vmatpush1.msra.mxu0 0.0
        %1860 = vmatprep.subr.mxu0 0.0
        %1861 = vmatpush1.msra.mxu0 0.0
        %1862 = vmatprep.subr.mxu0 0.0
        %1863 = vmatpush1.msra.mxu0 0.0
        %1864 = vmatprep.subr.mxu0 0.0
        %1865 = vmatpush1.msra.mxu0 0.0
        %1866 = vmatprep.subr.mxu0 0.0
        %1867 = vmatpush1.msra.mxu0 0.0
        %1868 = vmatprep.subr.mxu0 0.0
        %1869 = vmatpush1.msra.mxu0 0.0
        %1870 = vmatprep.subr.mxu0 0.0
        %1871 = vmatpush1.msra.mxu0 0.0
        %1872 = vmatprep.subr.mxu0 0.0
        %1873 = vmatpush1.msra.mxu0 0.0
        %1874 = vmatprep.subr.mxu0 0.0
        %1875 = vmatpush1.msra.mxu0 0.0
        %1876 = vmatprep.subr.mxu0 0.0
        %1877 = vmatpush1.msra.mxu0 0.0
        %1878 = vmatprep.subr.mxu0 0.0
        %1879 = vmatpush1.msra.mxu0 0.0
        %1880 = vmatprep.subr.mxu0 0.0
        %1881 = vmatpush1.msra.mxu0 0.0
        %1882 = vmatprep.subr.mxu0 0.0
        %1883 = vmatpush1.msra.mxu0 0.0
        %1884 = vmatprep.subr.mxu0 0.0
        %1885 = vmatpush1.msra.mxu0 0.0
        %1886 = vmatprep.subr.mxu0 0.0
        %1887 = vmatpush1.msra.mxu0 0.0
        %1888 = vmatprep.subr.mxu0 0.0
        %1889 = vmatpush1.msra.mxu0 0.0
        %1890 = vmatprep.subr.mxu0 0.0
        %1891 = vmatpush1.msra.mxu0 0.0
        %1892 = vmatprep.subr.mxu0 0.0
        %1893 = vmatpush1.msra.mxu0 0.0
        %1894 = vmatprep.subr.mxu0 0.0
        %1895 = vmatpush1.msra.mxu0 0.0
        %1896 = vmatprep.subr.mxu0 0.0
        %1897 = vmatpush1.msra.mxu0 0.0
        %1898 = vmatprep.subr.mxu0 0.0
        %1899 = vmatpush1.msra.mxu0 0.0
        %1900 = vmatprep.subr.mxu0 0.0
        %1901 = vmatpush1.msra.mxu0 0.0
        %1902 = vmatprep.subr.mxu0 0.0
        %1903 = vmatpush1.msra.mxu0 0.0
        %1904 = vmatprep.subr.mxu0 0.0
        %1905 = vmatpush1.msra.mxu0 0.0
        %1906 = vmatprep.subr.mxu0 0.0
        %1907 = vmatpush1.msra.mxu0 0.0
        %1908 = vmatprep.subr.mxu0 0.0
        %1909 = vmatpush1.msra.mxu0 0.0
        %1910 = vmatprep.subr.mxu0 0.0
        %1911 = vmatpush1.msra.mxu0 0.0
        %1912 = vmatprep.subr.mxu0 0.0
        %1913 = vmatpush1.msra.mxu0 0.0
        %1914 = vmatprep.mubr.f32.mxu0 0.0
        %1915 = vmatmul.mubr.f32.gmra.mrb[0].mxu0 %v1848
        %v1916 = vpop.f32.mrb[0].mxu0
        %v1917 = vadd.f32 0.0, %v1916
        %v1918 = vpop.f32.mrb[0].mxu0
        %v1919 = vadd.f32 0.0, %v1918
        %1920 = vdwg.mxu0
        %v1921 = vadd.f32 %v1832, %v1917
        %v1922 = vadd.f32 %v1833, %v1919
        %1923 = vrot.lane.b32.xlu0 %v393, 17
        %v1924 = vpop.permute.xlu0 %1923
        %1925 = vrot.lane.b32.xlu0 %v394, 17
        %v1926 = vpop.permute.xlu0 %1925
        %v1927 = vsel %vm407, %v1924, %v1926
        %v1928 = vsel %vm407, %v1926, %v1924
        %v1929 = vld [vmem:[%s5 + $0x180] sm:$0xff]
        %v1930 = vld [vmem:[%s5 + $0x188] sm:$0xff]
        %v1931 = vmul.f32 %v1928, %v1929
        %v1932 = vmul.f32 %v1927, %v1930
        %s1933 = scalar_lea.vmem %s3, 48
        %v1934 = vld [vmem:[%s1933] sm:$0xff]
        %v1936 = vsel %vm1418, %v1934, 0
        %1938 = vmatprep.subr.mxu0 %v1932
        %1939 = vmatpush1.msra.mxu0 %v1931
        %1940 = vmatprep.subr.mxu0 0.0
        %1941 = vmatpush1.msra.mxu0 0.0
        %1942 = vmatprep.subr.mxu0 0.0
        %1943 = vmatpush1.msra.mxu0 0.0
        %1944 = vmatprep.subr.mxu0 0.0
        %1945 = vmatpush1.msra.mxu0 0.0
        %1946 = vmatprep.subr.mxu0 0.0
        %1947 = vmatpush1.msra.mxu0 0.0
        %1948 = vmatprep.subr.mxu0 0.0
        %1949 = vmatpush1.msra.mxu0 0.0
        %1950 = vmatprep.subr.mxu0 0.0
        %1951 = vmatpush1.msra.mxu0 0.0
        %1952 = vmatprep.subr.mxu0 0.0
        %1953 = vmatpush1.msra.mxu0 0.0
        %1954 = vmatprep.subr.mxu0 0.0
        %1955 = vmatpush1.msra.mxu0 0.0
        %1956 = vmatprep.subr.mxu0 0.0
        %1957 = vmatpush1.msra.mxu0 0.0
        %1958 = vmatprep.subr.mxu0 0.0
        %1959 = vmatpush1.msra.mxu0 0.0
        %1960 = vmatprep.subr.mxu0 0.0
        %1961 = vmatpush1.msra.mxu0 0.0
        %1962 = vmatprep.subr.mxu0 0.0
        %1963 = vmatpush1.msra.mxu0 0.0
        %1964 = vmatprep.subr.mxu0 0.0
        %1965 = vmatpush1.msra.mxu0 0.0
        %1966 = vmatprep.subr.mxu0 0.0
        %1967 = vmatpush1.msra.mxu0 0.0
        %1968 = vmatprep.subr.mxu0 0.0
        %1969 = vmatpush1.msra.mxu0 0.0
        %1970 = vmatprep.subr.mxu0 0.0
        %1971 = vmatpush1.msra.mxu0 0.0
        %1972 = vmatprep.subr.mxu0 0.0
        %1973 = vmatpush1.msra.mxu0 0.0
        %1974 = vmatprep.subr.mxu0 0.0
        %1975 = vmatpush1.msra.mxu0 0.0
        %1976 = vmatprep.subr.mxu0 0.0
        %1977 = vmatpush1.msra.mxu0 0.0
        %1978 = vmatprep.subr.mxu0 0.0
        %1979 = vmatpush1.msra.mxu0 0.0
        %1980 = vmatprep.subr.mxu0 0.0
        %1981 = vmatpush1.msra.mxu0 0.0
        %1982 = vmatprep.subr.mxu0 0.0
        %1983 = vmatpush1.msra.mxu0 0.0
        %1984 = vmatprep.subr.mxu0 0.0
        %1985 = vmatpush1.msra.mxu0 0.0
        %1986 = vmatprep.subr.mxu0 0.0
        %1987 = vmatpush1.msra.mxu0 0.0
        %1988 = vmatprep.subr.mxu0 0.0
        %1989 = vmatpush1.msra.mxu0 0.0
        %1990 = vmatprep.subr.mxu0 0.0
        %1991 = vmatpush1.msra.mxu0 0.0
        %1992 = vmatprep.subr.mxu0 0.0
        %1993 = vmatpush1.msra.mxu0 0.0
        %1994 = vmatprep.subr.mxu0 0.0
        %1995 = vmatpush1.msra.mxu0 0.0
        %1996 = vmatprep.subr.mxu0 0.0
        %1997 = vmatpush1.msra.mxu0 0.0
        %1998 = vmatprep.subr.mxu0 0.0
        %1999 = vmatpush1.msra.mxu0 0.0
        %2000 = vmatprep.subr.mxu0 0.0
        %2001 = vmatpush1.msra.mxu0 0.0
        %2002 = vmatprep.mubr.f32.mxu0 0.0
        %2003 = vmatmul.mubr.f32.gmra.mrb[0].mxu0 %v1936
        %v2004 = vpop.f32.mrb[0].mxu0
        %v2005 = vadd.f32 0.0, %v2004
        %v2006 = vpop.f32.mrb[0].mxu0
        %v2007 = vadd.f32 0.0, %v2006
        %2008 = vdwg.mxu0
        %v2009 = vadd.f32 %v1921, %v2005
        %v2010 = vadd.f32 %v1922, %v2007
        %2011 = vrot.lane.b32.xlu0 %v393, 16
        %v2012 = vpop.permute.xlu0 %2011
        %2013 = vrot.lane.b32.xlu0 %v394, 16
        %v2014 = vpop.permute.xlu0 %2013
        %v2015 = vsel %vm430, %v2012, %v2014
        %v2016 = vsel %vm430, %v2014, %v2012
        %v2017 = vld [vmem:[%s5 + $0x190] sm:$0xff]
        %v2018 = vld [vmem:[%s5 + $0x198] sm:$0xff]
        %v2019 = vmul.f32 %v2016, %v2017
        %v2020 = vmul.f32 %v2015, %v2018
        %s2021 = scalar_lea.vmem %s3, 56
        %v2022 = vld [vmem:[%s2021] sm:$0xff]
        %v2024 = vsel %vm1418, %v2022, 0
        %2026 = vmatprep.subr.mxu0 %v2020
        %2027 = vmatpush1.msra.mxu0 %v2019
        %2028 = vmatprep.subr.mxu0 0.0
        %2029 = vmatpush1.msra.mxu0 0.0
        %2030 = vmatprep.subr.mxu0 0.0
        %2031 = vmatpush1.msra.mxu0 0.0
        %2032 = vmatprep.subr.mxu0 0.0
        %2033 = vmatpush1.msra.mxu0 0.0
        %2034 = vmatprep.subr.mxu0 0.0
        %2035 = vmatpush1.msra.mxu0 0.0
        %2036 = vmatprep.subr.mxu0 0.0
        %2037 = vmatpush1.msra.mxu0 0.0
        %2038 = vmatprep.subr.mxu0 0.0
        %2039 = vmatpush1.msra.mxu0 0.0
        %2040 = vmatprep.subr.mxu0 0.0
        %2041 = vmatpush1.msra.mxu0 0.0
        %2042 = vmatprep.subr.mxu0 0.0
        %2043 = vmatpush1.msra.mxu0 0.0
        %2044 = vmatprep.subr.mxu0 0.0
        %2045 = vmatpush1.msra.mxu0 0.0
        %2046 = vmatprep.subr.mxu0 0.0
        %2047 = vmatpush1.msra.mxu0 0.0
        %2048 = vmatprep.subr.mxu0 0.0
        %2049 = vmatpush1.msra.mxu0 0.0
        %2050 = vmatprep.subr.mxu0 0.0
        %2051 = vmatpush1.msra.mxu0 0.0
        %2052 = vmatprep.subr.mxu0 0.0
        %2053 = vmatpush1.msra.mxu0 0.0
        %2054 = vmatprep.subr.mxu0 0.0
        %2055 = vmatpush1.msra.mxu0 0.0
        %2056 = vmatprep.subr.mxu0 0.0
        %2057 = vmatpush1.msra.mxu0 0.0
        %2058 = vmatprep.subr.mxu0 0.0
        %2059 = vmatpush1.msra.mxu0 0.0
        %2060 = vmatprep.subr.mxu0 0.0
        %2061 = vmatpush1.msra.mxu0 0.0
        %2062 = vmatprep.subr.mxu0 0.0
        %2063 = vmatpush1.msra.mxu0 0.0
        %2064 = vmatprep.subr.mxu0 0.0
        %2065 = vmatpush1.msra.mxu0 0.0
        %2066 = vmatprep.subr.mxu0 0.0
        %2067 = vmatpush1.msra.mxu0 0.0
        %2068 = vmatprep.subr.mxu0 0.0
        %2069 = vmatpush1.msra.mxu0 0.0
        %2070 = vmatprep.subr.mxu0 0.0
        %2071 = vmatpush1.msra.mxu0 0.0
        %2072 = vmatprep.subr.mxu0 0.0
        %2073 = vmatpush1.msra.mxu0 0.0
        %2074 = vmatprep.subr.mxu0 0.0
        %2075 = vmatpush1.msra.mxu0 0.0
        %2076 = vmatprep.subr.mxu0 0.0
        %2077 = vmatpush1.msra.mxu0 0.0
        %2078 = vmatprep.subr.mxu0 0.0
        %2079 = vmatpush1.msra.mxu0 0.0
        %2080 = vmatprep.subr.mxu0 0.0
        %2081 = vmatpush1.msra.mxu0 0.0
        %2082 = vmatprep.subr.mxu0 0.0
        %2083 = vmatpush1.msra.mxu0 0.0
        %2084 = vmatprep.subr.mxu0 0.0
        %2085 = vmatpush1.msra.mxu0 0.0
        %2086 = vmatprep.subr.mxu0 0.0
        %2087 = vmatpush1.msra.mxu0 0.0
        %2088 = vmatprep.subr.mxu0 0.0
        %2089 = vmatpush1.msra.mxu0 0.0
        %2090 = vmatprep.mubr.f32.mxu0 0.0
        %2091 = vmatmul.mubr.f32.gmra.mrb[0].mxu0 %v2024
        %v2092 = vpop.f32.mrb[0].mxu0
        %v2093 = vadd.f32 0.0, %v2092
        %v2094 = vpop.f32.mrb[0].mxu0
        %v2095 = vadd.f32 0.0, %v2094
        %2096 = vdwg.mxu0
        %v2097 = vadd.f32 %v2009, %v2093
        %v2098 = vadd.f32 %v2010, %v2095
        %2099 = vrot.lane.b32.xlu0 %v393, 15
        %v2100 = vpop.permute.xlu0 %2099
        %2101 = vrot.lane.b32.xlu0 %v394, 15
        %v2102 = vpop.permute.xlu0 %2101
        %v2103 = vsel %vm621, %v2100, %v2102
        %v2104 = vsel %vm621, %v2102, %v2100
        %v2105 = vld [vmem:[%s5 + $0x1a0] sm:$0xff]
        %v2106 = vld [vmem:[%s5 + $0x1a8] sm:$0xff]
        %v2107 = vmul.f32 %v2104, %v2105
        %v2108 = vmul.f32 %v2103, %v2106
        %s2109 = scalar_lea.vmem %s3, 64
        %v2110 = vld [vmem:[%s2109] sm:$0xff]
        %v2112 = vsel %vm1418, %v2110, 0
        %2114 = vmatprep.subr.mxu0 %v2108
        %2115 = vmatpush1.msra.mxu0 %v2107
        %2116 = vmatprep.subr.mxu0 0.0
        %2117 = vmatpush1.msra.mxu0 0.0
        %2118 = vmatprep.subr.mxu0 0.0
        %2119 = vmatpush1.msra.mxu0 0.0
        %2120 = vmatprep.subr.mxu0 0.0
        %2121 = vmatpush1.msra.mxu0 0.0
        %2122 = vmatprep.subr.mxu0 0.0
        %2123 = vmatpush1.msra.mxu0 0.0
        %2124 = vmatprep.subr.mxu0 0.0
        %2125 = vmatpush1.msra.mxu0 0.0
        %2126 = vmatprep.subr.mxu0 0.0
        %2127 = vmatpush1.msra.mxu0 0.0
        %2128 = vmatprep.subr.mxu0 0.0
        %2129 = vmatpush1.msra.mxu0 0.0
        %2130 = vmatprep.subr.mxu0 0.0
        %2131 = vmatpush1.msra.mxu0 0.0
        %2132 = vmatprep.subr.mxu0 0.0
        %2133 = vmatpush1.msra.mxu0 0.0
        %2134 = vmatprep.subr.mxu0 0.0
        %2135 = vmatpush1.msra.mxu0 0.0
        %2136 = vmatprep.subr.mxu0 0.0
        %2137 = vmatpush1.msra.mxu0 0.0
        %2138 = vmatprep.subr.mxu0 0.0
        %2139 = vmatpush1.msra.mxu0 0.0
        %2140 = vmatprep.subr.mxu0 0.0
        %2141 = vmatpush1.msra.mxu0 0.0
        %2142 = vmatprep.subr.mxu0 0.0
        %2143 = vmatpush1.msra.mxu0 0.0
        %2144 = vmatprep.subr.mxu0 0.0
        %2145 = vmatpush1.msra.mxu0 0.0
        %2146 = vmatprep.subr.mxu0 0.0
        %2147 = vmatpush1.msra.mxu0 0.0
        %2148 = vmatprep.subr.mxu0 0.0
        %2149 = vmatpush1.msra.mxu0 0.0
        %2150 = vmatprep.subr.mxu0 0.0
        %2151 = vmatpush1.msra.mxu0 0.0
        %2152 = vmatprep.subr.mxu0 0.0
        %2153 = vmatpush1.msra.mxu0 0.0
        %2154 = vmatprep.subr.mxu0 0.0
        %2155 = vmatpush1.msra.mxu0 0.0
        %2156 = vmatprep.subr.mxu0 0.0
        %2157 = vmatpush1.msra.mxu0 0.0
        %2158 = vmatprep.subr.mxu0 0.0
        %2159 = vmatpush1.msra.mxu0 0.0
        %2160 = vmatprep.subr.mxu0 0.0
        %2161 = vmatpush1.msra.mxu0 0.0
        %2162 = vmatprep.subr.mxu0 0.0
        %2163 = vmatpush1.msra.mxu0 0.0
        %2164 = vmatprep.subr.mxu0 0.0
        %2165 = vmatpush1.msra.mxu0 0.0
        %2166 = vmatprep.subr.mxu0 0.0
        %2167 = vmatpush1.msra.mxu0 0.0
        %2168 = vmatprep.subr.mxu0 0.0
        %2169 = vmatpush1.msra.mxu0 0.0
        %2170 = vmatprep.subr.mxu0 0.0
        %2171 = vmatpush1.msra.mxu0 0.0
        %2172 = vmatprep.subr.mxu0 0.0
        %2173 = vmatpush1.msra.mxu0 0.0
        %2174 = vmatprep.subr.mxu0 0.0
        %2175 = vmatpush1.msra.mxu0 0.0
        %2176 = vmatprep.subr.mxu0 0.0
        %2177 = vmatpush1.msra.mxu0 0.0
        %2178 = vmatprep.mubr.f32.mxu0 0.0
        %2179 = vmatmul.mubr.f32.gmra.mrb[0].mxu0 %v2112
        %v2180 = vpop.f32.mrb[0].mxu0
        %v2181 = vadd.f32 0.0, %v2180
        %v2182 = vpop.f32.mrb[0].mxu0
        %v2183 = vadd.f32 0.0, %v2182
        %2184 = vdwg.mxu0
        %v2185 = vadd.f32 %v2097, %v2181
        %v2186 = vadd.f32 %v2098, %v2183
        %2187 = vrot.lane.b32.xlu0 %v393, 14
        %v2188 = vpop.permute.xlu0 %2187
        %2189 = vrot.lane.b32.xlu0 %v394, 14
        %v2190 = vpop.permute.xlu0 %2189
        %vm2191 = vcmp.lt.s32.totalorder %v406, 14
        %v2192 = vsel %vm2191, %v2188, %v2190
        %v2193 = vsel %vm2191, %v2190, %v2188
        %v2194 = vld [vmem:[%s5 + $0x1b0] sm:$0xff]
        %v2195 = vld [vmem:[%s5 + $0x1b8] sm:$0xff]
        %v2196 = vmul.f32 %v2193, %v2194
        %v2197 = vmul.f32 %v2192, %v2195
        %s2198 = scalar_lea.vmem %s3, 72
        %v2199 = vld [vmem:[%s2198] sm:$0xff]
        %v2201 = vsel %vm1418, %v2199, 0
        %2203 = vmatprep.subr.mxu0 %v2197
        %2204 = vmatpush1.msra.mxu0 %v2196
        %2205 = vmatprep.subr.mxu0 0.0
        %2206 = vmatpush1.msra.mxu0 0.0
        %2207 = vmatprep.subr.mxu0 0.0
        %2208 = vmatpush1.msra.mxu0 0.0
        %2209 = vmatprep.subr.mxu0 0.0
        %2210 = vmatpush1.msra.mxu0 0.0
        %2211 = vmatprep.subr.mxu0 0.0
        %2212 = vmatpush1.msra.mxu0 0.0
        %2213 = vmatprep.subr.mxu0 0.0
        %2214 = vmatpush1.msra.mxu0 0.0
        %2215 = vmatprep.subr.mxu0 0.0
        %2216 = vmatpush1.msra.mxu0 0.0
        %2217 = vmatprep.subr.mxu0 0.0
        %2218 = vmatpush1.msra.mxu0 0.0
        %2219 = vmatprep.subr.mxu0 0.0
        %2220 = vmatpush1.msra.mxu0 0.0
        %2221 = vmatprep.subr.mxu0 0.0
        %2222 = vmatpush1.msra.mxu0 0.0
        %2223 = vmatprep.subr.mxu0 0.0
        %2224 = vmatpush1.msra.mxu0 0.0
        %2225 = vmatprep.subr.mxu0 0.0
        %2226 = vmatpush1.msra.mxu0 0.0
        %2227 = vmatprep.subr.mxu0 0.0
        %2228 = vmatpush1.msra.mxu0 0.0
        %2229 = vmatprep.subr.mxu0 0.0
        %2230 = vmatpush1.msra.mxu0 0.0
        %2231 = vmatprep.subr.mxu0 0.0
        %2232 = vmatpush1.msra.mxu0 0.0
        %2233 = vmatprep.subr.mxu0 0.0
        %2234 = vmatpush1.msra.mxu0 0.0
        %2235 = vmatprep.subr.mxu0 0.0
        %2236 = vmatpush1.msra.mxu0 0.0
        %2237 = vmatprep.subr.mxu0 0.0
        %2238 = vmatpush1.msra.mxu0 0.0
        %2239 = vmatprep.subr.mxu0 0.0
        %2240 = vmatpush1.msra.mxu0 0.0
        %2241 = vmatprep.subr.mxu0 0.0
        %2242 = vmatpush1.msra.mxu0 0.0
        %2243 = vmatprep.subr.mxu0 0.0
        %2244 = vmatpush1.msra.mxu0 0.0
        %2245 = vmatprep.subr.mxu0 0.0
        %2246 = vmatpush1.msra.mxu0 0.0
        %2247 = vmatprep.subr.mxu0 0.0
        %2248 = vmatpush1.msra.mxu0 0.0
        %2249 = vmatprep.subr.mxu0 0.0
        %2250 = vmatpush1.msra.mxu0 0.0
        %2251 = vmatprep.subr.mxu0 0.0
        %2252 = vmatpush1.msra.mxu0 0.0
        %2253 = vmatprep.subr.mxu0 0.0
        %2254 = vmatpush1.msra.mxu0 0.0
        %2255 = vmatprep.subr.mxu0 0.0
        %2256 = vmatpush1.msra.mxu0 0.0
        %2257 = vmatprep.subr.mxu0 0.0
        %2258 = vmatpush1.msra.mxu0 0.0
        %2259 = vmatprep.subr.mxu0 0.0
        %2260 = vmatpush1.msra.mxu0 0.0
        %2261 = vmatprep.subr.mxu0 0.0
        %2262 = vmatpush1.msra.mxu0 0.0
        %2263 = vmatprep.subr.mxu0 0.0
        %2264 = vmatpush1.msra.mxu0 0.0
        %2265 = vmatprep.subr.mxu0 0.0
        %2266 = vmatpush1.msra.mxu0 0.0
        %2267 = vmatprep.mubr.f32.mxu0 0.0
        %2268 = vmatmul.mubr.f32.gmra.mrb[0].mxu0 %v2201
        %v2269 = vpop.f32.mrb[0].mxu0
        %v2270 = vadd.f32 0.0, %v2269
        %v2271 = vpop.f32.mrb[0].mxu0
        %v2272 = vadd.f32 0.0, %v2271
        %2273 = vdwg.mxu0
        %v2274 = vadd.f32 %v2185, %v2270
        %v2275 = vadd.f32 %v2186, %v2272
        %2276 = vrot.lane.b32.xlu0 %v393, 2
        %v2277 = vpop.permute.xlu0 %2276
        %2278 = vrot.lane.b32.xlu0 %v394, 2
        %v2279 = vpop.permute.xlu0 %2278
        %vm2280 = vcmp.lt.s32.totalorder %v406, 2
        %v2281 = vsel %vm2280, %v2277, %v2279
        %v2282 = vsel %vm2280, %v2279, %v2277
        %v2283 = vld [vmem:[%s5 + $0x1c0] sm:$0xff]
        %v2284 = vld [vmem:[%s5 + $0x1c8] sm:$0xff]
        %v2285 = vmul.f32 %v2282, %v2283
        %v2286 = vmul.f32 %v2281, %v2284
        %s2287 = scalar_lea.vmem %s3, 80
        %v2288 = vld [vmem:[%s2287] sm:$0xff]
        %v2290 = vsel %vm1418, %v2288, 0
        %2292 = vmatprep.subr.mxu0 %v2286
        %2293 = vmatpush1.msra.mxu0 %v2285
        %2294 = vmatprep.subr.mxu0 0.0
        %2295 = vmatpush1.msra.mxu0 0.0
        %2296 = vmatprep.subr.mxu0 0.0
        %2297 = vmatpush1.msra.mxu0 0.0
        %2298 = vmatprep.subr.mxu0 0.0
        %2299 = vmatpush1.msra.mxu0 0.0
        %2300 = vmatprep.subr.mxu0 0.0
        %2301 = vmatpush1.msra.mxu0 0.0
        %2302 = vmatprep.subr.mxu0 0.0
        %2303 = vmatpush1.msra.mxu0 0.0
        %2304 = vmatprep.subr.mxu0 0.0
        %2305 = vmatpush1.msra.mxu0 0.0
        %2306 = vmatprep.subr.mxu0 0.0
        %2307 = vmatpush1.msra.mxu0 0.0
        %2308 = vmatprep.subr.mxu0 0.0
        %2309 = vmatpush1.msra.mxu0 0.0
        %2310 = vmatprep.subr.mxu0 0.0
        %2311 = vmatpush1.msra.mxu0 0.0
        %2312 = vmatprep.subr.mxu0 0.0
        %2313 = vmatpush1.msra.mxu0 0.0
        %2314 = vmatprep.subr.mxu0 0.0
        %2315 = vmatpush1.msra.mxu0 0.0
        %2316 = vmatprep.subr.mxu0 0.0
        %2317 = vmatpush1.msra.mxu0 0.0
        %2318 = vmatprep.subr.mxu0 0.0
        %2319 = vmatpush1.msra.mxu0 0.0
        %2320 = vmatprep.subr.mxu0 0.0
        %2321 = vmatpush1.msra.mxu0 0.0
        %2322 = vmatprep.subr.mxu0 0.0
        %2323 = vmatpush1.msra.mxu0 0.0
        %2324 = vmatprep.subr.mxu0 0.0
        %2325 = vmatpush1.msra.mxu0 0.0
        %2326 = vmatprep.subr.mxu0 0.0
        %2327 = vmatpush1.msra.mxu0 0.0
        %2328 = vmatprep.subr.mxu0 0.0
        %2329 = vmatpush1.msra.mxu0 0.0
        %2330 = vmatprep.subr.mxu0 0.0
        %2331 = vmatpush1.msra.mxu0 0.0
        %2332 = vmatprep.subr.mxu0 0.0
        %2333 = vmatpush1.msra.mxu0 0.0
        %2334 = vmatprep.subr.mxu0 0.0
        %2335 = vmatpush1.msra.mxu0 0.0
        %2336 = vmatprep.subr.mxu0 0.0
        %2337 = vmatpush1.msra.mxu0 0.0
        %2338 = vmatprep.subr.mxu0 0.0
        %2339 = vmatpush1.msra.mxu0 0.0
        %2340 = vmatprep.subr.mxu0 0.0
        %2341 = vmatpush1.msra.mxu0 0.0
        %2342 = vmatprep.subr.mxu0 0.0
        %2343 = vmatpush1.msra.mxu0 0.0
        %2344 = vmatprep.subr.mxu0 0.0
        %2345 = vmatpush1.msra.mxu0 0.0
        %2346 = vmatprep.subr.mxu0 0.0
        %2347 = vmatpush1.msra.mxu0 0.0
        %2348 = vmatprep.subr.mxu0 0.0
        %2349 = vmatpush1.msra.mxu0 0.0
        %2350 = vmatprep.subr.mxu0 0.0
        %2351 = vmatpush1.msra.mxu0 0.0
        %2352 = vmatprep.subr.mxu0 0.0
        %2353 = vmatpush1.msra.mxu0 0.0
        %2354 = vmatprep.subr.mxu0 0.0
        %2355 = vmatpush1.msra.mxu0 0.0
        %2356 = vmatprep.mubr.f32.mxu0 0.0
        %2357 = vmatmul.mubr.f32.gmra.mrb[0].mxu0 %v2290
        %v2358 = vpop.f32.mrb[0].mxu0
        %v2359 = vadd.f32 0.0, %v2358
        %v2360 = vpop.f32.mrb[0].mxu0
        %v2361 = vadd.f32 0.0, %v2360
        %2362 = vdwg.mxu0
        %v2363 = vadd.f32 %v2274, %v2359
        %v2364 = vadd.f32 %v2275, %v2361
        %2365 = vrot.lane.b32.xlu0 %v393, 1
        %v2366 = vpop.permute.xlu0 %2365
        %2367 = vrot.lane.b32.xlu0 %v394, 1
        %v2368 = vpop.permute.xlu0 %2367
        %v2369 = vsel %vm732, %v2366, %v2368
        %v2370 = vsel %vm732, %v2368, %v2366
        %v2371 = vld [vmem:[%s5 + $0x1d0] sm:$0xff]
        %v2372 = vld [vmem:[%s5 + $0x1d8] sm:$0xff]
        %v2373 = vmul.f32 %v2370, %v2371
        %v2374 = vmul.f32 %v2369, %v2372
        %s2375 = scalar_lea.vmem %s3, 88
        %v2376 = vld [vmem:[%s2375] sm:$0xff]
        %v2378 = vsel %vm1418, %v2376, 0
        %2380 = vmatprep.subr.mxu0 %v2374
        %2381 = vmatpush1.msra.mxu0 %v2373
        %2382 = vmatprep.subr.mxu0 0.0
        %2383 = vmatpush1.msra.mxu0 0.0
        %2384 = vmatprep.subr.mxu0 0.0
        %2385 = vmatpush1.msra.mxu0 0.0
        %2386 = vmatprep.subr.mxu0 0.0
        %2387 = vmatpush1.msra.mxu0 0.0
        %2388 = vmatprep.subr.mxu0 0.0
        %2389 = vmatpush1.msra.mxu0 0.0
        %2390 = vmatprep.subr.mxu0 0.0
        %2391 = vmatpush1.msra.mxu0 0.0
        %2392 = vmatprep.subr.mxu0 0.0
        %2393 = vmatpush1.msra.mxu0 0.0
        %2394 = vmatprep.subr.mxu0 0.0
        %2395 = vmatpush1.msra.mxu0 0.0
        %2396 = vmatprep.subr.mxu0 0.0
        %2397 = vmatpush1.msra.mxu0 0.0
        %2398 = vmatprep.subr.mxu0 0.0
        %2399 = vmatpush1.msra.mxu0 0.0
        %2400 = vmatprep.subr.mxu0 0.0
        %2401 = vmatpush1.msra.mxu0 0.0
        %2402 = vmatprep.subr.mxu0 0.0
        %2403 = vmatpush1.msra.mxu0 0.0
        %2404 = vmatprep.subr.mxu0 0.0
        %2405 = vmatpush1.msra.mxu0 0.0
        %2406 = vmatprep.subr.mxu0 0.0
        %2407 = vmatpush1.msra.mxu0 0.0
        %2408 = vmatprep.subr.mxu0 0.0
        %2409 = vmatpush1.msra.mxu0 0.0
        %2410 = vmatprep.subr.mxu0 0.0
        %2411 = vmatpush1.msra.mxu0 0.0
        %2412 = vmatprep.subr.mxu0 0.0
        %2413 = vmatpush1.msra.mxu0 0.0
        %2414 = vmatprep.subr.mxu0 0.0
        %2415 = vmatpush1.msra.mxu0 0.0
        %2416 = vmatprep.subr.mxu0 0.0
        %2417 = vmatpush1.msra.mxu0 0.0
        %2418 = vmatprep.subr.mxu0 0.0
        %2419 = vmatpush1.msra.mxu0 0.0
        %2420 = vmatprep.subr.mxu0 0.0
        %2421 = vmatpush1.msra.mxu0 0.0
        %2422 = vmatprep.subr.mxu0 0.0
        %2423 = vmatpush1.msra.mxu0 0.0
        %2424 = vmatprep.subr.mxu0 0.0
        %2425 = vmatpush1.msra.mxu0 0.0
        %2426 = vmatprep.subr.mxu0 0.0
        %2427 = vmatpush1.msra.mxu0 0.0
        %2428 = vmatprep.subr.mxu0 0.0
        %2429 = vmatpush1.msra.mxu0 0.0
        %2430 = vmatprep.subr.mxu0 0.0
        %2431 = vmatpush1.msra.mxu0 0.0
        %2432 = vmatprep.subr.mxu0 0.0
        %2433 = vmatpush1.msra.mxu0 0.0
        %2434 = vmatprep.subr.mxu0 0.0
        %2435 = vmatpush1.msra.mxu0 0.0
        %2436 = vmatprep.subr.mxu0 0.0
        %2437 = vmatpush1.msra.mxu0 0.0
        %2438 = vmatprep.subr.mxu0 0.0
        %2439 = vmatpush1.msra.mxu0 0.0
        %2440 = vmatprep.subr.mxu0 0.0
        %2441 = vmatpush1.msra.mxu0 0.0
        %2442 = vmatprep.subr.mxu0 0.0
        %2443 = vmatpush1.msra.mxu0 0.0
        %2444 = vmatprep.mubr.f32.mxu0 0.0
        %2445 = vmatmul.mubr.f32.gmra.mrb[0].mxu0 %v2378
        %v2446 = vpop.f32.mrb[0].mxu0
        %v2447 = vadd.f32 0.0, %v2446
        %v2448 = vpop.f32.mrb[0].mxu0
        %v2449 = vadd.f32 0.0, %v2448
        %2450 = vdwg.mxu0
        %v2451 = vadd.f32 %v2363, %v2447
        %v2452 = vadd.f32 %v2364, %v2449
        %s2453 = scalar_lea.vmem %s3, 96
        %v2454 = vld [vmem:[%s2453] sm:$0xff]
        %v2456 = vsel %vm1418, %v2454, 0
        %2458 = vmatprep.subr.mxu0 %v394
        %2459 = vmatpush1.msra.mxu0 %v393
        %2460 = vmatprep.subr.mxu0 0.0
        %2461 = vmatpush1.msra.mxu0 0.0
        %2462 = vmatprep.subr.mxu0 0.0
        %2463 = vmatpush1.msra.mxu0 0.0
        %2464 = vmatprep.subr.mxu0 0.0
        %2465 = vmatpush1.msra.mxu0 0.0
        %2466 = vmatprep.subr.mxu0 0.0
        %2467 = vmatpush1.msra.mxu0 0.0
        %2468 = vmatprep.subr.mxu0 0.0
        %2469 = vmatpush1.msra.mxu0 0.0
        %2470 = vmatprep.subr.mxu0 0.0
        %2471 = vmatpush1.msra.mxu0 0.0
        %2472 = vmatprep.subr.mxu0 0.0
        %2473 = vmatpush1.msra.mxu0 0.0
        %2474 = vmatprep.subr.mxu0 0.0
        %2475 = vmatpush1.msra.mxu0 0.0
        %2476 = vmatprep.subr.mxu0 0.0
        %2477 = vmatpush1.msra.mxu0 0.0
        %2478 = vmatprep.subr.mxu0 0.0
        %2479 = vmatpush1.msra.mxu0 0.0
        %2480 = vmatprep.subr.mxu0 0.0
        %2481 = vmatpush1.msra.mxu0 0.0
        %2482 = vmatprep.subr.mxu0 0.0
        %2483 = vmatpush1.msra.mxu0 0.0
        %2484 = vmatprep.subr.mxu0 0.0
        %2485 = vmatpush1.msra.mxu0 0.0
        %2486 = vmatprep.subr.mxu0 0.0
        %2487 = vmatpush1.msra.mxu0 0.0
        %2488 = vmatprep.subr.mxu0 0.0
        %2489 = vmatpush1.msra.mxu0 0.0
        %2490 = vmatprep.subr.mxu0 0.0
        %2491 = vmatpush1.msra.mxu0 0.0
        %2492 = vmatprep.subr.mxu0 0.0
        %2493 = vmatpush1.msra.mxu0 0.0
        %2494 = vmatprep.subr.mxu0 0.0
        %2495 = vmatpush1.msra.mxu0 0.0
        %2496 = vmatprep.subr.mxu0 0.0
        %2497 = vmatpush1.msra.mxu0 0.0
        %2498 = vmatprep.subr.mxu0 0.0
        %2499 = vmatpush1.msra.mxu0 0.0
        %2500 = vmatprep.subr.mxu0 0.0
        %2501 = vmatpush1.msra.mxu0 0.0
        %2502 = vmatprep.subr.mxu0 0.0
        %2503 = vmatpush1.msra.mxu0 0.0
        %2504 = vmatprep.subr.mxu0 0.0
        %2505 = vmatpush1.msra.mxu0 0.0
        %2506 = vmatprep.subr.mxu0 0.0
        %2507 = vmatpush1.msra.mxu0 0.0
        %2508 = vmatprep.subr.mxu0 0.0
        %2509 = vmatpush1.msra.mxu0 0.0
        %2510 = vmatprep.subr.mxu0 0.0
        %2511 = vmatpush1.msra.mxu0 0.0
        %2512 = vmatprep.subr.mxu0 0.0
        %2513 = vmatpush1.msra.mxu0 0.0
        %2514 = vmatprep.subr.mxu0 0.0
        %2515 = vmatpush1.msra.mxu0 0.0
        %2516 = vmatprep.subr.mxu0 0.0
        %2517 = vmatpush1.msra.mxu0 0.0
        %2518 = vmatprep.subr.mxu0 0.0
        %2519 = vmatpush1.msra.mxu0 0.0
        %2520 = vmatprep.subr.mxu0 0.0
        %2521 = vmatpush1.msra.mxu0 0.0
        %2522 = vmatprep.mubr.f32.mxu0 0.0
        %2523 = vmatmul.mubr.f32.gmra.mrb[0].mxu0 %v2456
        %v2524 = vpop.f32.mrb[0].mxu0
        %v2525 = vadd.f32 0.0, %v2524
        %v2526 = vpop.f32.mrb[0].mxu0
        %v2527 = vadd.f32 0.0, %v2526
        %2528 = vdwg.mxu0
        %v2529 = vadd.f32 %v2451, %v2525
        %v2530 = vadd.f32 %v2452, %v2527
        %2531 = vrot.lane.b32.xlu0 %v393, 127
        %v2532 = vpop.permute.xlu0 %2531
        %2533 = vrot.lane.b32.xlu0 %v394, 127
        %v2534 = vpop.permute.xlu0 %2533
        %v2535 = vsel %vm933, %v2532, %v2534
        %v2536 = vsel %vm933, %v2534, %v2532
        %v2537 = vld [vmem:[%s5 + $0x1f0] sm:$0xff]
        %v2538 = vld [vmem:[%s5 + $0x1f8] sm:$0xff]
        %v2539 = vmul.f32 %v2535, %v2537
        %v2540 = vmul.f32 %v2536, %v2538
        %s2541 = scalar_lea.vmem %s3, 104
        %v2542 = vld [vmem:[%s2541] sm:$0xff]
        %v2544 = vsel %vm1418, %v2542, 0
        %2546 = vmatprep.subr.mxu0 %v2540
        %2547 = vmatpush1.msra.mxu0 %v2539
        %2548 = vmatprep.subr.mxu0 0.0
        %2549 = vmatpush1.msra.mxu0 0.0
        %2550 = vmatprep.subr.mxu0 0.0
        %2551 = vmatpush1.msra.mxu0 0.0
        %2552 = vmatprep.subr.mxu0 0.0
        %2553 = vmatpush1.msra.mxu0 0.0
        %2554 = vmatprep.subr.mxu0 0.0
        %2555 = vmatpush1.msra.mxu0 0.0
        %2556 = vmatprep.subr.mxu0 0.0
        %2557 = vmatpush1.msra.mxu0 0.0
        %2558 = vmatprep.subr.mxu0 0.0
        %2559 = vmatpush1.msra.mxu0 0.0
        %2560 = vmatprep.subr.mxu0 0.0
        %2561 = vmatpush1.msra.mxu0 0.0
        %2562 = vmatprep.subr.mxu0 0.0
        %2563 = vmatpush1.msra.mxu0 0.0
        %2564 = vmatprep.subr.mxu0 0.0
        %2565 = vmatpush1.msra.mxu0 0.0
        %2566 = vmatprep.subr.mxu0 0.0
        %2567 = vmatpush1.msra.mxu0 0.0
        %2568 = vmatprep.subr.mxu0 0.0
        %2569 = vmatpush1.msra.mxu0 0.0
        %2570 = vmatprep.subr.mxu0 0.0
        %2571 = vmatpush1.msra.mxu0 0.0
        %2572 = vmatprep.subr.mxu0 0.0
        %2573 = vmatpush1.msra.mxu0 0.0
        %2574 = vmatprep.subr.mxu0 0.0
        %2575 = vmatpush1.msra.mxu0 0.0
        %2576 = vmatprep.subr.mxu0 0.0
        %2577 = vmatpush1.msra.mxu0 0.0
        %2578 = vmatprep.subr.mxu0 0.0
        %2579 = vmatpush1.msra.mxu0 0.0
        %2580 = vmatprep.subr.mxu0 0.0
        %2581 = vmatpush1.msra.mxu0 0.0
        %2582 = vmatprep.subr.mxu0 0.0
        %2583 = vmatpush1.msra.mxu0 0.0
        %2584 = vmatprep.subr.mxu0 0.0
        %2585 = vmatpush1.msra.mxu0 0.0
        %2586 = vmatprep.subr.mxu0 0.0
        %2587 = vmatpush1.msra.mxu0 0.0
        %2588 = vmatprep.subr.mxu0 0.0
        %2589 = vmatpush1.msra.mxu0 0.0
        %2590 = vmatprep.subr.mxu0 0.0
        %2591 = vmatpush1.msra.mxu0 0.0
        %2592 = vmatprep.subr.mxu0 0.0
        %2593 = vmatpush1.msra.mxu0 0.0
        %2594 = vmatprep.subr.mxu0 0.0
        %2595 = vmatpush1.msra.mxu0 0.0
        %2596 = vmatprep.subr.mxu0 0.0
        %2597 = vmatpush1.msra.mxu0 0.0
        %2598 = vmatprep.subr.mxu0 0.0
        %2599 = vmatpush1.msra.mxu0 0.0
        %2600 = vmatprep.subr.mxu0 0.0
        %2601 = vmatpush1.msra.mxu0 0.0
        %2602 = vmatprep.subr.mxu0 0.0
        %2603 = vmatpush1.msra.mxu0 0.0
        %2604 = vmatprep.subr.mxu0 0.0
        %2605 = vmatpush1.msra.mxu0 0.0
        %2606 = vmatprep.subr.mxu0 0.0
        %2607 = vmatpush1.msra.mxu0 0.0
        %2608 = vmatprep.subr.mxu0 0.0
        %2609 = vmatpush1.msra.mxu0 0.0
        %2610 = vmatprep.mubr.f32.mxu0 0.0
        %2611 = vmatmul.mubr.f32.gmra.mrb[0].mxu0 %v2544
        %v2612 = vpop.f32.mrb[0].mxu0
        %v2613 = vadd.f32 0.0, %v2612
        %v2614 = vpop.f32.mrb[0].mxu0
        %v2615 = vadd.f32 0.0, %v2614
        %2616 = vdwg.mxu0
        %v2617 = vadd.f32 %v2529, %v2613
        %v2618 = vadd.f32 %v2530, %v2615
        %2619 = vrot.lane.b32.xlu0 %v393, 126
        %v2620 = vpop.permute.xlu0 %2619
        %2621 = vrot.lane.b32.xlu0 %v394, 126
        %v2622 = vpop.permute.xlu0 %2621
        %vm2623 = vcmp.lt.s32.totalorder %v406, 126
        %v2624 = vsel %vm2623, %v2620, %v2622
        %v2625 = vsel %vm2623, %v2622, %v2620
        %v2626 = vld [vmem:[%s5 + $0x200] sm:$0xff]
        %v2627 = vld [vmem:[%s5 + $0x208] sm:$0xff]
        %v2628 = vmul.f32 %v2624, %v2626
        %v2629 = vmul.f32 %v2625, %v2627
        %s2630 = scalar_lea.vmem %s3, 112
        %v2631 = vld [vmem:[%s2630] sm:$0xff]
        %v2633 = vsel %vm1418, %v2631, 0
        %2635 = vmatprep.subr.mxu0 %v2629
        %2636 = vmatpush1.msra.mxu0 %v2628
        %2637 = vmatprep.subr.mxu0 0.0
        %2638 = vmatpush1.msra.mxu0 0.0
        %2639 = vmatprep.subr.mxu0 0.0
        %2640 = vmatpush1.msra.mxu0 0.0
        %2641 = vmatprep.subr.mxu0 0.0
        %2642 = vmatpush1.msra.mxu0 0.0
        %2643 = vmatprep.subr.mxu0 0.0
        %2644 = vmatpush1.msra.mxu0 0.0
        %2645 = vmatprep.subr.mxu0 0.0
        %2646 = vmatpush1.msra.mxu0 0.0
        %2647 = vmatprep.subr.mxu0 0.0
        %2648 = vmatpush1.msra.mxu0 0.0
        %2649 = vmatprep.subr.mxu0 0.0
        %2650 = vmatpush1.msra.mxu0 0.0
        %2651 = vmatprep.subr.mxu0 0.0
        %2652 = vmatpush1.msra.mxu0 0.0
        %2653 = vmatprep.subr.mxu0 0.0
        %2654 = vmatpush1.msra.mxu0 0.0
        %2655 = vmatprep.subr.mxu0 0.0
        %2656 = vmatpush1.msra.mxu0 0.0
        %2657 = vmatprep.subr.mxu0 0.0
        %2658 = vmatpush1.msra.mxu0 0.0
        %2659 = vmatprep.subr.mxu0 0.0
        %2660 = vmatpush1.msra.mxu0 0.0
        %2661 = vmatprep.subr.mxu0 0.0
        %2662 = vmatpush1.msra.mxu0 0.0
        %2663 = vmatprep.subr.mxu0 0.0
        %2664 = vmatpush1.msra.mxu0 0.0
        %2665 = vmatprep.subr.mxu0 0.0
        %2666 = vmatpush1.msra.mxu0 0.0
        %2667 = vmatprep.subr.mxu0 0.0
        %2668 = vmatpush1.msra.mxu0 0.0
        %2669 = vmatprep.subr.mxu0 0.0
        %2670 = vmatpush1.msra.mxu0 0.0
        %2671 = vmatprep.subr.mxu0 0.0
        %2672 = vmatpush1.msra.mxu0 0.0
        %2673 = vmatprep.subr.mxu0 0.0
        %2674 = vmatpush1.msra.mxu0 0.0
        %2675 = vmatprep.subr.mxu0 0.0
        %2676 = vmatpush1.msra.mxu0 0.0
        %2677 = vmatprep.subr.mxu0 0.0
        %2678 = vmatpush1.msra.mxu0 0.0
        %2679 = vmatprep.subr.mxu0 0.0
        %2680 = vmatpush1.msra.mxu0 0.0
        %2681 = vmatprep.subr.mxu0 0.0
        %2682 = vmatpush1.msra.mxu0 0.0
        %2683 = vmatprep.subr.mxu0 0.0
        %2684 = vmatpush1.msra.mxu0 0.0
        %2685 = vmatprep.subr.mxu0 0.0
        %2686 = vmatpush1.msra.mxu0 0.0
        %2687 = vmatprep.subr.mxu0 0.0
        %2688 = vmatpush1.msra.mxu0 0.0
        %2689 = vmatprep.subr.mxu0 0.0
        %2690 = vmatpush1.msra.mxu0 0.0
        %2691 = vmatprep.subr.mxu0 0.0
        %2692 = vmatpush1.msra.mxu0 0.0
        %2693 = vmatprep.subr.mxu0 0.0
        %2694 = vmatpush1.msra.mxu0 0.0
        %2695 = vmatprep.subr.mxu0 0.0
        %2696 = vmatpush1.msra.mxu0 0.0
        %2697 = vmatprep.subr.mxu0 0.0
        %2698 = vmatpush1.msra.mxu0 0.0
        %2699 = vmatprep.mubr.f32.mxu0 0.0
        %2700 = vmatmul.mubr.f32.gmra.mrb[0].mxu0 %v2633
        %v2701 = vpop.f32.mrb[0].mxu0
        %v2702 = vadd.f32 0.0, %v2701
        %v2703 = vpop.f32.mrb[0].mxu0
        %v2704 = vadd.f32 0.0, %v2703
        %2705 = vdwg.mxu0
        %v2706 = vadd.f32 %v2617, %v2702
        %v2707 = vadd.f32 %v2618, %v2704
        %2708 = vrot.lane.b32.xlu0 %v393, 114
        %v2709 = vpop.permute.xlu0 %2708
        %2710 = vrot.lane.b32.xlu0 %v394, 114
        %v2711 = vpop.permute.xlu0 %2710
        %vm2712 = vcmp.lt.s32.totalorder %v406, 114
        %v2713 = vsel %vm2712, %v2709, %v2711
        %v2714 = vsel %vm2712, %v2711, %v2709
        %v2715 = vld [vmem:[%s5 + $0x210] sm:$0xff]
        %v2716 = vld [vmem:[%s5 + $0x218] sm:$0xff]
        %v2717 = vmul.f32 %v2713, %v2715
        %v2718 = vmul.f32 %v2714, %v2716
        %s2719 = scalar_lea.vmem %s3, 120
        %v2720 = vld [vmem:[%s2719] sm:$0xff]
        %v2722 = vsel %vm1418, %v2720, 0
        %2724 = vmatprep.subr.mxu0 %v2718
        %2725 = vmatpush1.msra.mxu0 %v2717
        %2726 = vmatprep.subr.mxu0 0.0
        %2727 = vmatpush1.msra.mxu0 0.0
        %2728 = vmatprep.subr.mxu0 0.0
        %2729 = vmatpush1.msra.mxu0 0.0
        %2730 = vmatprep.subr.mxu0 0.0
        %2731 = vmatpush1.msra.mxu0 0.0
        %2732 = vmatprep.subr.mxu0 0.0
        %2733 = vmatpush1.msra.mxu0 0.0
        %2734 = vmatprep.subr.mxu0 0.0
        %2735 = vmatpush1.msra.mxu0 0.0
        %2736 = vmatprep.subr.mxu0 0.0
        %2737 = vmatpush1.msra.mxu0 0.0
        %2738 = vmatprep.subr.mxu0 0.0
        %2739 = vmatpush1.msra.mxu0 0.0
        %2740 = vmatprep.subr.mxu0 0.0
        %2741 = vmatpush1.msra.mxu0 0.0
        %2742 = vmatprep.subr.mxu0 0.0
        %2743 = vmatpush1.msra.mxu0 0.0
        %2744 = vmatprep.subr.mxu0 0.0
        %2745 = vmatpush1.msra.mxu0 0.0
        %2746 = vmatprep.subr.mxu0 0.0
        %2747 = vmatpush1.msra.mxu0 0.0
        %2748 = vmatprep.subr.mxu0 0.0
        %2749 = vmatpush1.msra.mxu0 0.0
        %2750 = vmatprep.subr.mxu0 0.0
        %2751 = vmatpush1.msra.mxu0 0.0
        %2752 = vmatprep.subr.mxu0 0.0
        %2753 = vmatpush1.msra.mxu0 0.0
        %2754 = vmatprep.subr.mxu0 0.0
        %2755 = vmatpush1.msra.mxu0 0.0
        %2756 = vmatprep.subr.mxu0 0.0
        %2757 = vmatpush1.msra.mxu0 0.0
        %2758 = vmatprep.subr.mxu0 0.0
        %2759 = vmatpush1.msra.mxu0 0.0
        %2760 = vmatprep.subr.mxu0 0.0
        %2761 = vmatpush1.msra.mxu0 0.0
        %2762 = vmatprep.subr.mxu0 0.0
        %2763 = vmatpush1.msra.mxu0 0.0
        %2764 = vmatprep.subr.mxu0 0.0
        %2765 = vmatpush1.msra.mxu0 0.0
        %2766 = vmatprep.subr.mxu0 0.0
        %2767 = vmatpush1.msra.mxu0 0.0
        %2768 = vmatprep.subr.mxu0 0.0
        %2769 = vmatpush1.msra.mxu0 0.0
        %2770 = vmatprep.subr.mxu0 0.0
        %2771 = vmatpush1.msra.mxu0 0.0
        %2772 = vmatprep.subr.mxu0 0.0
        %2773 = vmatpush1.msra.mxu0 0.0
        %2774 = vmatprep.subr.mxu0 0.0
        %2775 = vmatpush1.msra.mxu0 0.0
        %2776 = vmatprep.subr.mxu0 0.0
        %2777 = vmatpush1.msra.mxu0 0.0
        %2778 = vmatprep.subr.mxu0 0.0
        %2779 = vmatpush1.msra.mxu0 0.0
        %2780 = vmatprep.subr.mxu0 0.0
        %2781 = vmatpush1.msra.mxu0 0.0
        %2782 = vmatprep.subr.mxu0 0.0
        %2783 = vmatpush1.msra.mxu0 0.0
        %2784 = vmatprep.subr.mxu0 0.0
        %2785 = vmatpush1.msra.mxu0 0.0
        %2786 = vmatprep.subr.mxu0 0.0
        %2787 = vmatpush1.msra.mxu0 0.0
        %2788 = vmatprep.mubr.f32.mxu0 0.0
        %2789 = vmatmul.mubr.f32.gmra.mrb[0].mxu0 %v2722
        %v2790 = vpop.f32.mrb[0].mxu0
        %v2791 = vadd.f32 0.0, %v2790
        %v2792 = vpop.f32.mrb[0].mxu0
        %v2793 = vadd.f32 0.0, %v2792
        %2794 = vdwg.mxu0
        %v2795 = vadd.f32 %v2706, %v2791
        %v2796 = vadd.f32 %v2707, %v2793
        %2797 = vrot.lane.b32.xlu0 %v393, 113
        %v2798 = vpop.permute.xlu0 %2797
        %2799 = vrot.lane.b32.xlu0 %v394, 113
        %v2800 = vpop.permute.xlu0 %2799
        %v2801 = vsel %vm1044, %v2798, %v2800
        %v2802 = vsel %vm1044, %v2800, %v2798
        %v2803 = vld [vmem:[%s5 + $0x220] sm:$0xff]
        %v2804 = vld [vmem:[%s5 + $0x228] sm:$0xff]
        %v2805 = vmul.f32 %v2801, %v2803
        %v2806 = vmul.f32 %v2802, %v2804
        %s2807 = scalar_lea.vmem %s3, 128
        %v2808 = vld [vmem:[%s2807] sm:$0xff]
        %v2810 = vsel %vm1418, %v2808, 0
        %2812 = vmatprep.subr.mxu0 %v2806
        %2813 = vmatpush1.msra.mxu0 %v2805
        %2814 = vmatprep.subr.mxu0 0.0
        %2815 = vmatpush1.msra.mxu0 0.0
        %2816 = vmatprep.subr.mxu0 0.0
        %2817 = vmatpush1.msra.mxu0 0.0
        %2818 = vmatprep.subr.mxu0 0.0
        %2819 = vmatpush1.msra.mxu0 0.0
        %2820 = vmatprep.subr.mxu0 0.0
        %2821 = vmatpush1.msra.mxu0 0.0
        %2822 = vmatprep.subr.mxu0 0.0
        %2823 = vmatpush1.msra.mxu0 0.0
        %2824 = vmatprep.subr.mxu0 0.0
        %2825 = vmatpush1.msra.mxu0 0.0
        %2826 = vmatprep.subr.mxu0 0.0
        %2827 = vmatpush1.msra.mxu0 0.0
        %2828 = vmatprep.subr.mxu0 0.0
        %2829 = vmatpush1.msra.mxu0 0.0
        %2830 = vmatprep.subr.mxu0 0.0
        %2831 = vmatpush1.msra.mxu0 0.0
        %2832 = vmatprep.subr.mxu0 0.0
        %2833 = vmatpush1.msra.mxu0 0.0
        %2834 = vmatprep.subr.mxu0 0.0
        %2835 = vmatpush1.msra.mxu0 0.0
        %2836 = vmatprep.subr.mxu0 0.0
        %2837 = vmatpush1.msra.mxu0 0.0
        %2838 = vmatprep.subr.mxu0 0.0
        %2839 = vmatpush1.msra.mxu0 0.0
        %2840 = vmatprep.subr.mxu0 0.0
        %2841 = vmatpush1.msra.mxu0 0.0
        %2842 = vmatprep.subr.mxu0 0.0
        %2843 = vmatpush1.msra.mxu0 0.0
        %2844 = vmatprep.subr.mxu0 0.0
        %2845 = vmatpush1.msra.mxu0 0.0
        %2846 = vmatprep.subr.mxu0 0.0
        %2847 = vmatpush1.msra.mxu0 0.0
        %2848 = vmatprep.subr.mxu0 0.0
        %2849 = vmatpush1.msra.mxu0 0.0
        %2850 = vmatprep.subr.mxu0 0.0
        %2851 = vmatpush1.msra.mxu0 0.0
        %2852 = vmatprep.subr.mxu0 0.0
        %2853 = vmatpush1.msra.mxu0 0.0
        %2854 = vmatprep.subr.mxu0 0.0
        %2855 = vmatpush1.msra.mxu0 0.0
        %2856 = vmatprep.subr.mxu0 0.0
        %2857 = vmatpush1.msra.mxu0 0.0
        %2858 = vmatprep.subr.mxu0 0.0
        %2859 = vmatpush1.msra.mxu0 0.0
        %2860 = vmatprep.subr.mxu0 0.0
        %2861 = vmatpush1.msra.mxu0 0.0
        %2862 = vmatprep.subr.mxu0 0.0
        %2863 = vmatpush1.msra.mxu0 0.0
        %2864 = vmatprep.subr.mxu0 0.0
        %2865 = vmatpush1.msra.mxu0 0.0
        %2866 = vmatprep.subr.mxu0 0.0
        %2867 = vmatpush1.msra.mxu0 0.0
        %2868 = vmatprep.subr.mxu0 0.0
        %2869 = vmatpush1.msra.mxu0 0.0
        %2870 = vmatprep.subr.mxu0 0.0
        %2871 = vmatpush1.msra.mxu0 0.0
        %2872 = vmatprep.subr.mxu0 0.0
        %2873 = vmatpush1.msra.mxu0 0.0
        %2874 = vmatprep.subr.mxu0 0.0
        %2875 = vmatpush1.msra.mxu0 0.0
        %2876 = vmatprep.mubr.f32.mxu0 0.0
        %2877 = vmatmul.mubr.f32.gmra.mrb[0].mxu0 %v2810
        %v2878 = vpop.f32.mrb[0].mxu0
        %v2879 = vadd.f32 0.0, %v2878
        %v2880 = vpop.f32.mrb[0].mxu0
        %v2881 = vadd.f32 0.0, %v2880
        %2882 = vdwg.mxu0
        %v2883 = vadd.f32 %v2795, %v2879
        %v2884 = vadd.f32 %v2796, %v2881
        %2885 = vrot.lane.b32.xlu0 %v393, 112
        %v2886 = vpop.permute.xlu0 %2885
        %2887 = vrot.lane.b32.xlu0 %v394, 112
        %v2888 = vpop.permute.xlu0 %2887
        %v2889 = vsel %vm1155, %v2886, %v2888
        %v2890 = vsel %vm1155, %v2888, %v2886
        %v2891 = vld [vmem:[%s5 + $0x230] sm:$0xff]
        %v2892 = vld [vmem:[%s5 + $0x238] sm:$0xff]
        %v2893 = vmul.f32 %v2889, %v2891
        %v2894 = vmul.f32 %v2890, %v2892
        %s2895 = scalar_lea.vmem %s3, 136
        %v2896 = vld [vmem:[%s2895] sm:$0xff]
        %v2898 = vsel %vm1418, %v2896, 0
        %2900 = vmatprep.subr.mxu0 %v2894
        %2901 = vmatpush1.msra.mxu0 %v2893
        %2902 = vmatprep.subr.mxu0 0.0
        %2903 = vmatpush1.msra.mxu0 0.0
        %2904 = vmatprep.subr.mxu0 0.0
        %2905 = vmatpush1.msra.mxu0 0.0
        %2906 = vmatprep.subr.mxu0 0.0
        %2907 = vmatpush1.msra.mxu0 0.0
        %2908 = vmatprep.subr.mxu0 0.0
        %2909 = vmatpush1.msra.mxu0 0.0
        %2910 = vmatprep.subr.mxu0 0.0
        %2911 = vmatpush1.msra.mxu0 0.0
        %2912 = vmatprep.subr.mxu0 0.0
        %2913 = vmatpush1.msra.mxu0 0.0
        %2914 = vmatprep.subr.mxu0 0.0
        %2915 = vmatpush1.msra.mxu0 0.0
        %2916 = vmatprep.subr.mxu0 0.0
        %2917 = vmatpush1.msra.mxu0 0.0
        %2918 = vmatprep.subr.mxu0 0.0
        %2919 = vmatpush1.msra.mxu0 0.0
        %2920 = vmatprep.subr.mxu0 0.0
        %2921 = vmatpush1.msra.mxu0 0.0
        %2922 = vmatprep.subr.mxu0 0.0
        %2923 = vmatpush1.msra.mxu0 0.0
        %2924 = vmatprep.subr.mxu0 0.0
        %2925 = vmatpush1.msra.mxu0 0.0
        %2926 = vmatprep.subr.mxu0 0.0
        %2927 = vmatpush1.msra.mxu0 0.0
        %2928 = vmatprep.subr.mxu0 0.0
        %2929 = vmatpush1.msra.mxu0 0.0
        %2930 = vmatprep.subr.mxu0 0.0
        %2931 = vmatpush1.msra.mxu0 0.0
        %2932 = vmatprep.subr.mxu0 0.0
        %2933 = vmatpush1.msra.mxu0 0.0
        %2934 = vmatprep.subr.mxu0 0.0
        %2935 = vmatpush1.msra.mxu0 0.0
        %2936 = vmatprep.subr.mxu0 0.0
        %2937 = vmatpush1.msra.mxu0 0.0
        %2938 = vmatprep.subr.mxu0 0.0
        %2939 = vmatpush1.msra.mxu0 0.0
        %2940 = vmatprep.subr.mxu0 0.0
        %2941 = vmatpush1.msra.mxu0 0.0
        %2942 = vmatprep.subr.mxu0 0.0
        %2943 = vmatpush1.msra.mxu0 0.0
        %2944 = vmatprep.subr.mxu0 0.0
        %2945 = vmatpush1.msra.mxu0 0.0
        %2946 = vmatprep.subr.mxu0 0.0
        %2947 = vmatpush1.msra.mxu0 0.0
        %2948 = vmatprep.subr.mxu0 0.0
        %2949 = vmatpush1.msra.mxu0 0.0
        %2950 = vmatprep.subr.mxu0 0.0
        %2951 = vmatpush1.msra.mxu0 0.0
        %2952 = vmatprep.subr.mxu0 0.0
        %2953 = vmatpush1.msra.mxu0 0.0
        %2954 = vmatprep.subr.mxu0 0.0
        %2955 = vmatpush1.msra.mxu0 0.0
        %2956 = vmatprep.subr.mxu0 0.0
        %2957 = vmatpush1.msra.mxu0 0.0
        %2958 = vmatprep.subr.mxu0 0.0
        %2959 = vmatpush1.msra.mxu0 0.0
        %2960 = vmatprep.subr.mxu0 0.0
        %2961 = vmatpush1.msra.mxu0 0.0
        %2962 = vmatprep.subr.mxu0 0.0
        %2963 = vmatpush1.msra.mxu0 0.0
        %2964 = vmatprep.mubr.f32.mxu0 0.0
        %2965 = vmatmul.mubr.f32.gmra.mrb[0].mxu0 %v2898
        %v2966 = vpop.f32.mrb[0].mxu0
        %v2967 = vadd.f32 0.0, %v2966
        %v2968 = vpop.f32.mrb[0].mxu0
        %v2969 = vadd.f32 0.0, %v2968
        %2970 = vdwg.mxu0
        %v2971 = vadd.f32 %v2883, %v2967
        %v2972 = vadd.f32 %v2884, %v2969
        %2973 = vrot.lane.b32.xlu0 %v393, 111
        %v2974 = vpop.permute.xlu0 %2973
        %2975 = vrot.lane.b32.xlu0 %v394, 111
        %v2976 = vpop.permute.xlu0 %2975
        %v2977 = vsel %vm1266, %v2974, %v2976
        %v2978 = vsel %vm1266, %v2976, %v2974
        %v2979 = vld [vmem:[%s5 + $0x240] sm:$0xff]
        %v2980 = vld [vmem:[%s5 + $0x248] sm:$0xff]
        %v2981 = vmul.f32 %v2977, %v2979
        %v2982 = vmul.f32 %v2978, %v2980
        %s2983 = scalar_lea.vmem %s3, 144
        %v2984 = vld [vmem:[%s2983] sm:$0xff]
        %v2986 = vsel %vm1418, %v2984, 0
        %2988 = vmatprep.subr.mxu0 %v2982
        %2989 = vmatpush1.msra.mxu0 %v2981
        %2990 = vmatprep.subr.mxu0 0.0
        %2991 = vmatpush1.msra.mxu0 0.0
        %2992 = vmatprep.subr.mxu0 0.0
        %2993 = vmatpush1.msra.mxu0 0.0
        %2994 = vmatprep.subr.mxu0 0.0
        %2995 = vmatpush1.msra.mxu0 0.0
        %2996 = vmatprep.subr.mxu0 0.0
        %2997 = vmatpush1.msra.mxu0 0.0
        %2998 = vmatprep.subr.mxu0 0.0
        %2999 = vmatpush1.msra.mxu0 0.0
        %3000 = vmatprep.subr.mxu0 0.0
        %3001 = vmatpush1.msra.mxu0 0.0
        %3002 = vmatprep.subr.mxu0 0.0
        %3003 = vmatpush1.msra.mxu0 0.0
        %3004 = vmatprep.subr.mxu0 0.0
        %3005 = vmatpush1.msra.mxu0 0.0
        %3006 = vmatprep.subr.mxu0 0.0
        %3007 = vmatpush1.msra.mxu0 0.0
        %3008 = vmatprep.subr.mxu0 0.0
        %3009 = vmatpush1.msra.mxu0 0.0
        %3010 = vmatprep.subr.mxu0 0.0
        %3011 = vmatpush1.msra.mxu0 0.0
        %3012 = vmatprep.subr.mxu0 0.0
        %3013 = vmatpush1.msra.mxu0 0.0
        %3014 = vmatprep.subr.mxu0 0.0
        %3015 = vmatpush1.msra.mxu0 0.0
        %3016 = vmatprep.subr.mxu0 0.0
        %3017 = vmatpush1.msra.mxu0 0.0
        %3018 = vmatprep.subr.mxu0 0.0
        %3019 = vmatpush1.msra.mxu0 0.0
        %3020 = vmatprep.subr.mxu0 0.0
        %3021 = vmatpush1.msra.mxu0 0.0
        %3022 = vmatprep.subr.mxu0 0.0
        %3023 = vmatpush1.msra.mxu0 0.0
        %3024 = vmatprep.subr.mxu0 0.0
        %3025 = vmatpush1.msra.mxu0 0.0
        %3026 = vmatprep.subr.mxu0 0.0
        %3027 = vmatpush1.msra.mxu0 0.0
        %3028 = vmatprep.subr.mxu0 0.0
        %3029 = vmatpush1.msra.mxu0 0.0
        %3030 = vmatprep.subr.mxu0 0.0
        %3031 = vmatpush1.msra.mxu0 0.0
        %3032 = vmatprep.subr.mxu0 0.0
        %3033 = vmatpush1.msra.mxu0 0.0
        %3034 = vmatprep.subr.mxu0 0.0
        %3035 = vmatpush1.msra.mxu0 0.0
        %3036 = vmatprep.subr.mxu0 0.0
        %3037 = vmatpush1.msra.mxu0 0.0
        %3038 = vmatprep.subr.mxu0 0.0
        %3039 = vmatpush1.msra.mxu0 0.0
        %3040 = vmatprep.subr.mxu0 0.0
        %3041 = vmatpush1.msra.mxu0 0.0
        %3042 = vmatprep.subr.mxu0 0.0
        %3043 = vmatpush1.msra.mxu0 0.0
        %3044 = vmatprep.subr.mxu0 0.0
        %3045 = vmatpush1.msra.mxu0 0.0
        %3046 = vmatprep.subr.mxu0 0.0
        %3047 = vmatpush1.msra.mxu0 0.0
        %3048 = vmatprep.subr.mxu0 0.0
        %3049 = vmatpush1.msra.mxu0 0.0
        %3050 = vmatprep.subr.mxu0 0.0
        %3051 = vmatpush1.msra.mxu0 0.0
        %3052 = vmatprep.mubr.f32.mxu0 0.0
        %3053 = vmatmul.mubr.f32.gmra.mrb[0].mxu0 %v2986
        %v3054 = vpop.f32.mrb[0].mxu0
        %v3055 = vadd.f32 0.0, %v3054
        %v3056 = vpop.f32.mrb[0].mxu0
        %v3057 = vadd.f32 0.0, %v3056
        %3058 = vdwg.mxu0
        %v3059 = vadd.f32 %v2971, %v3055
        %v3060 = vadd.f32 %v2972, %v3057
        %3061 = vrot.lane.b32.xlu0 %v393, 110
        %v3062 = vpop.permute.xlu0 %3061
        %3063 = vrot.lane.b32.xlu0 %v394, 110
        %v3064 = vpop.permute.xlu0 %3063
        %vm3065 = vcmp.lt.s32.totalorder %v406, 110
        %v3066 = vsel %vm3065, %v3062, %v3064
        %v3067 = vsel %vm3065, %v3064, %v3062
        %v3068 = vld [vmem:[%s5 + $0x250] sm:$0xff]
        %v3069 = vld [vmem:[%s5 + $0x258] sm:$0xff]
        %v3070 = vmul.f32 %v3066, %v3068
        %v3071 = vmul.f32 %v3067, %v3069
        %s3072 = scalar_lea.vmem %s3, 152
        %v3073 = vld [vmem:[%s3072] sm:$0xff]
        %v3075 = vsel %vm1418, %v3073, 0
        %3077 = vmatprep.subr.mxu0 %v3071
        %3078 = vmatpush1.msra.mxu0 %v3070
        %3079 = vmatprep.subr.mxu0 0.0
        %3080 = vmatpush1.msra.mxu0 0.0
        %3081 = vmatprep.subr.mxu0 0.0
        %3082 = vmatpush1.msra.mxu0 0.0
        %3083 = vmatprep.subr.mxu0 0.0
        %3084 = vmatpush1.msra.mxu0 0.0
        %3085 = vmatprep.subr.mxu0 0.0
        %3086 = vmatpush1.msra.mxu0 0.0
        %3087 = vmatprep.subr.mxu0 0.0
        %3088 = vmatpush1.msra.mxu0 0.0
        %3089 = vmatprep.subr.mxu0 0.0
        %3090 = vmatpush1.msra.mxu0 0.0
        %3091 = vmatprep.subr.mxu0 0.0
        %3092 = vmatpush1.msra.mxu0 0.0
        %3093 = vmatprep.subr.mxu0 0.0
        %3094 = vmatpush1.msra.mxu0 0.0
        %3095 = vmatprep.subr.mxu0 0.0
        %3096 = vmatpush1.msra.mxu0 0.0
        %3097 = vmatprep.subr.mxu0 0.0
        %3098 = vmatpush1.msra.mxu0 0.0
        %3099 = vmatprep.subr.mxu0 0.0
        %3100 = vmatpush1.msra.mxu0 0.0
        %3101 = vmatprep.subr.mxu0 0.0
        %3102 = vmatpush1.msra.mxu0 0.0
        %3103 = vmatprep.subr.mxu0 0.0
        %3104 = vmatpush1.msra.mxu0 0.0
        %3105 = vmatprep.subr.mxu0 0.0
        %3106 = vmatpush1.msra.mxu0 0.0
        %3107 = vmatprep.subr.mxu0 0.0
        %3108 = vmatpush1.msra.mxu0 0.0
        %3109 = vmatprep.subr.mxu0 0.0
        %3110 = vmatpush1.msra.mxu0 0.0
        %3111 = vmatprep.subr.mxu0 0.0
        %3112 = vmatpush1.msra.mxu0 0.0
        %3113 = vmatprep.subr.mxu0 0.0
        %3114 = vmatpush1.msra.mxu0 0.0
        %3115 = vmatprep.subr.mxu0 0.0
        %3116 = vmatpush1.msra.mxu0 0.0
        %3117 = vmatprep.subr.mxu0 0.0
        %3118 = vmatpush1.msra.mxu0 0.0
        %3119 = vmatprep.subr.mxu0 0.0
        %3120 = vmatpush1.msra.mxu0 0.0
        %3121 = vmatprep.subr.mxu0 0.0
        %3122 = vmatpush1.msra.mxu0 0.0
        %3123 = vmatprep.subr.mxu0 0.0
        %3124 = vmatpush1.msra.mxu0 0.0
        %3125 = vmatprep.subr.mxu0 0.0
        %3126 = vmatpush1.msra.mxu0 0.0
        %3127 = vmatprep.subr.mxu0 0.0
        %3128 = vmatpush1.msra.mxu0 0.0
        %3129 = vmatprep.subr.mxu0 0.0
        %3130 = vmatpush1.msra.mxu0 0.0
        %3131 = vmatprep.subr.mxu0 0.0
        %3132 = vmatpush1.msra.mxu0 0.0
        %3133 = vmatprep.subr.mxu0 0.0
        %3134 = vmatpush1.msra.mxu0 0.0
        %3135 = vmatprep.subr.mxu0 0.0
        %3136 = vmatpush1.msra.mxu0 0.0
        %3137 = vmatprep.subr.mxu0 0.0
        %3138 = vmatpush1.msra.mxu0 0.0
        %3139 = vmatprep.subr.mxu0 0.0
        %3140 = vmatpush1.msra.mxu0 0.0
        %3141 = vmatprep.mubr.f32.mxu0 0.0
        %3142 = vmatmul.mubr.f32.gmra.mrb[0].mxu0 %v3075
        %v3143 = vpop.f32.mrb[0].mxu0
        %v3144 = vadd.f32 0.0, %v3143
        %v3145 = vpop.f32.mrb[0].mxu0
        %v3146 = vadd.f32 0.0, %v3145
        %3147 = vdwg.mxu0
        %v3148 = vadd.f32 %v3059, %v3144
        %v3149 = vadd.f32 %v3060, %v3146
        %3150 = vrot.lane.b32.xlu0 %v393, 98
        %v3151 = vpop.permute.xlu0 %3150
        %3152 = vrot.lane.b32.xlu0 %v394, 98
        %v3153 = vpop.permute.xlu0 %3152
        %vm3154 = vcmp.lt.s32.totalorder %v406, 98
        %v3155 = vsel %vm3154, %v3151, %v3153
        %v3156 = vsel %vm3154, %v3153, %v3151
        %v3157 = vld [vmem:[%s5 + $0x260] sm:$0xff]
        %v3158 = vld [vmem:[%s5 + $0x268] sm:$0xff]
        %v3159 = vmul.f32 %v3155, %v3157
        %v3160 = vmul.f32 %v3156, %v3158
        %s3161 = scalar_lea.vmem %s3, 160
        %v3162 = vld [vmem:[%s3161] sm:$0xff]
        %v3164 = vsel %vm1418, %v3162, 0
        %3166 = vmatprep.subr.mxu0 %v3160
        %3167 = vmatpush1.msra.mxu0 %v3159
        %3168 = vmatprep.subr.mxu0 0.0
        %3169 = vmatpush1.msra.mxu0 0.0
        %3170 = vmatprep.subr.mxu0 0.0
        %3171 = vmatpush1.msra.mxu0 0.0
        %3172 = vmatprep.subr.mxu0 0.0
        %3173 = vmatpush1.msra.mxu0 0.0
        %3174 = vmatprep.subr.mxu0 0.0
        %3175 = vmatpush1.msra.mxu0 0.0
        %3176 = vmatprep.subr.mxu0 0.0
        %3177 = vmatpush1.msra.mxu0 0.0
        %3178 = vmatprep.subr.mxu0 0.0
        %3179 = vmatpush1.msra.mxu0 0.0
        %3180 = vmatprep.subr.mxu0 0.0
        %3181 = vmatpush1.msra.mxu0 0.0
        %3182 = vmatprep.subr.mxu0 0.0
        %3183 = vmatpush1.msra.mxu0 0.0
        %3184 = vmatprep.subr.mxu0 0.0
        %3185 = vmatpush1.msra.mxu0 0.0
        %3186 = vmatprep.subr.mxu0 0.0
        %3187 = vmatpush1.msra.mxu0 0.0
        %3188 = vmatprep.subr.mxu0 0.0
        %3189 = vmatpush1.msra.mxu0 0.0
        %3190 = vmatprep.subr.mxu0 0.0
        %3191 = vmatpush1.msra.mxu0 0.0
        %3192 = vmatprep.subr.mxu0 0.0
        %3193 = vmatpush1.msra.mxu0 0.0
        %3194 = vmatprep.subr.mxu0 0.0
        %3195 = vmatpush1.msra.mxu0 0.0
        %3196 = vmatprep.subr.mxu0 0.0
        %3197 = vmatpush1.msra.mxu0 0.0
        %3198 = vmatprep.subr.mxu0 0.0
        %3199 = vmatpush1.msra.mxu0 0.0
        %3200 = vmatprep.subr.mxu0 0.0
        %3201 = vmatpush1.msra.mxu0 0.0
        %3202 = vmatprep.subr.mxu0 0.0
        %3203 = vmatpush1.msra.mxu0 0.0
        %3204 = vmatprep.subr.mxu0 0.0
        %3205 = vmatpush1.msra.mxu0 0.0
        %3206 = vmatprep.subr.mxu0 0.0
        %3207 = vmatpush1.msra.mxu0 0.0
        %3208 = vmatprep.subr.mxu0 0.0
        %3209 = vmatpush1.msra.mxu0 0.0
        %3210 = vmatprep.subr.mxu0 0.0
        %3211 = vmatpush1.msra.mxu0 0.0
        %3212 = vmatprep.subr.mxu0 0.0
        %3213 = vmatpush1.msra.mxu0 0.0
        %3214 = vmatprep.subr.mxu0 0.0
        %3215 = vmatpush1.msra.mxu0 0.0
        %3216 = vmatprep.subr.mxu0 0.0
        %3217 = vmatpush1.msra.mxu0 0.0
        %3218 = vmatprep.subr.mxu0 0.0
        %3219 = vmatpush1.msra.mxu0 0.0
        %3220 = vmatprep.subr.mxu0 0.0
        %3221 = vmatpush1.msra.mxu0 0.0
        %3222 = vmatprep.subr.mxu0 0.0
        %3223 = vmatpush1.msra.mxu0 0.0
        %3224 = vmatprep.subr.mxu0 0.0
        %3225 = vmatpush1.msra.mxu0 0.0
        %3226 = vmatprep.subr.mxu0 0.0
        %3227 = vmatpush1.msra.mxu0 0.0
        %3228 = vmatprep.subr.mxu0 0.0
        %3229 = vmatpush1.msra.mxu0 0.0
        %3230 = vmatprep.mubr.f32.mxu0 0.0
        %3231 = vmatmul.mubr.f32.gmra.mrb[0].mxu0 %v3164
        %v3232 = vpop.f32.mrb[0].mxu0
        %v3233 = vadd.f32 0.0, %v3232
        %v3234 = vpop.f32.mrb[0].mxu0
        %v3235 = vadd.f32 0.0, %v3234
        %3236 = vdwg.mxu0
        %v3237 = vadd.f32 %v3148, %v3233
        %v3238 = vadd.f32 %v3149, %v3235
        %3239 = vrot.lane.b32.xlu0 %v393, 97
        %v3240 = vpop.permute.xlu0 %3239
        %3241 = vrot.lane.b32.xlu0 %v394, 97
        %v3242 = vpop.permute.xlu0 %3241
        %vm3243 = vcmp.lt.s32.totalorder %v406, 97
        %v3244 = vsel %vm3243, %v3240, %v3242
        %v3245 = vsel %vm3243, %v3242, %v3240
        %v3246 = vld [vmem:[%s5 + $0x270] sm:$0xff]
        %v3247 = vld [vmem:[%s5 + $0x278] sm:$0xff]
        %v3248 = vmul.f32 %v3244, %v3246
        %v3249 = vmul.f32 %v3245, %v3247
        %s3250 = scalar_lea.vmem %s3, 168
        %v3251 = vld [vmem:[%s3250] sm:$0xff]
        %v3253 = vsel %vm1418, %v3251, 0
        %3255 = vmatprep.subr.mxu0 %v3249
        %3256 = vmatpush1.msra.mxu0 %v3248
        %3257 = vmatprep.subr.mxu0 0.0
        %3258 = vmatpush1.msra.mxu0 0.0
        %3259 = vmatprep.subr.mxu0 0.0
        %3260 = vmatpush1.msra.mxu0 0.0
        %3261 = vmatprep.subr.mxu0 0.0
        %3262 = vmatpush1.msra.mxu0 0.0
        %3263 = vmatprep.subr.mxu0 0.0
        %3264 = vmatpush1.msra.mxu0 0.0
        %3265 = vmatprep.subr.mxu0 0.0
        %3266 = vmatpush1.msra.mxu0 0.0
        %3267 = vmatprep.subr.mxu0 0.0
        %3268 = vmatpush1.msra.mxu0 0.0
        %3269 = vmatprep.subr.mxu0 0.0
        %3270 = vmatpush1.msra.mxu0 0.0
        %3271 = vmatprep.subr.mxu0 0.0
        %3272 = vmatpush1.msra.mxu0 0.0
        %3273 = vmatprep.subr.mxu0 0.0
        %3274 = vmatpush1.msra.mxu0 0.0
        %3275 = vmatprep.subr.mxu0 0.0
        %3276 = vmatpush1.msra.mxu0 0.0
        %3277 = vmatprep.subr.mxu0 0.0
        %3278 = vmatpush1.msra.mxu0 0.0
        %3279 = vmatprep.subr.mxu0 0.0
        %3280 = vmatpush1.msra.mxu0 0.0
        %3281 = vmatprep.subr.mxu0 0.0
        %3282 = vmatpush1.msra.mxu0 0.0
        %3283 = vmatprep.subr.mxu0 0.0
        %3284 = vmatpush1.msra.mxu0 0.0
        %3285 = vmatprep.subr.mxu0 0.0
        %3286 = vmatpush1.msra.mxu0 0.0
        %3287 = vmatprep.subr.mxu0 0.0
        %3288 = vmatpush1.msra.mxu0 0.0
        %3289 = vmatprep.subr.mxu0 0.0
        %3290 = vmatpush1.msra.mxu0 0.0
        %3291 = vmatprep.subr.mxu0 0.0
        %3292 = vmatpush1.msra.mxu0 0.0
        %3293 = vmatprep.subr.mxu0 0.0
        %3294 = vmatpush1.msra.mxu0 0.0
        %3295 = vmatprep.subr.mxu0 0.0
        %3296 = vmatpush1.msra.mxu0 0.0
        %3297 = vmatprep.subr.mxu0 0.0
        %3298 = vmatpush1.msra.mxu0 0.0
        %3299 = vmatprep.subr.mxu0 0.0
        %3300 = vmatpush1.msra.mxu0 0.0
        %3301 = vmatprep.subr.mxu0 0.0
        %3302 = vmatpush1.msra.mxu0 0.0
        %3303 = vmatprep.subr.mxu0 0.0
        %3304 = vmatpush1.msra.mxu0 0.0
        %3305 = vmatprep.subr.mxu0 0.0
        %3306 = vmatpush1.msra.mxu0 0.0
        %3307 = vmatprep.subr.mxu0 0.0
        %3308 = vmatpush1.msra.mxu0 0.0
        %3309 = vmatprep.subr.mxu0 0.0
        %3310 = vmatpush1.msra.mxu0 0.0
        %3311 = vmatprep.subr.mxu0 0.0
        %3312 = vmatpush1.msra.mxu0 0.0
        %3313 = vmatprep.subr.mxu0 0.0
        %3314 = vmatpush1.msra.mxu0 0.0
        %3315 = vmatprep.subr.mxu0 0.0
        %3316 = vmatpush1.msra.mxu0 0.0
        %3317 = vmatprep.subr.mxu0 0.0
        %3318 = vmatpush1.msra.mxu0 0.0
        %3319 = vmatprep.mubr.f32.mxu0 0.0
        %3320 = vmatmul.mubr.f32.gmra.mrb[0].mxu0 %v3253
        %v3321 = vpop.f32.mrb[0].mxu0
        %v3322 = vadd.f32 0.0, %v3321
        %v3323 = vpop.f32.mrb[0].mxu0
        %v3324 = vadd.f32 0.0, %v3323
        %3325 = vdwg.mxu0
        %v3326 = vadd.f32 %v3237, %v3322
        %v3327 = vadd.f32 %v3238, %v3324
        %3328 = vrot.lane.b32.xlu0 %v393, 96
        %v3329 = vpop.permute.xlu0 %3328
        %3330 = vrot.lane.b32.xlu0 %v394, 96
        %v3331 = vpop.permute.xlu0 %3330
        %vm3332 = vcmp.lt.s32.totalorder %v406, 96
        %v3333 = vsel %vm3332, %v3329, %v3331
        %v3334 = vsel %vm3332, %v3331, %v3329
        %v3335 = vld [vmem:[%s5 + $0x280] sm:$0xff]
        %v3336 = vld [vmem:[%s5 + $0x288] sm:$0xff]
        %v3337 = vmul.f32 %v3333, %v3335
        %v3338 = vmul.f32 %v3334, %v3336
        %s3339 = scalar_lea.vmem %s3, 176
        %v3340 = vld [vmem:[%s3339] sm:$0xff]
        %v3342 = vsel %vm1418, %v3340, 0
        %3344 = vmatprep.subr.mxu0 %v3338
        %3345 = vmatpush1.msra.mxu0 %v3337
        %3346 = vmatprep.subr.mxu0 0.0
        %3347 = vmatpush1.msra.mxu0 0.0
        %3348 = vmatprep.subr.mxu0 0.0
        %3349 = vmatpush1.msra.mxu0 0.0
        %3350 = vmatprep.subr.mxu0 0.0
        %3351 = vmatpush1.msra.mxu0 0.0
        %3352 = vmatprep.subr.mxu0 0.0
        %3353 = vmatpush1.msra.mxu0 0.0
        %3354 = vmatprep.subr.mxu0 0.0
        %3355 = vmatpush1.msra.mxu0 0.0
        %3356 = vmatprep.subr.mxu0 0.0
        %3357 = vmatpush1.msra.mxu0 0.0
        %3358 = vmatprep.subr.mxu0 0.0
        %3359 = vmatpush1.msra.mxu0 0.0
        %3360 = vmatprep.subr.mxu0 0.0
        %3361 = vmatpush1.msra.mxu0 0.0
        %3362 = vmatprep.subr.mxu0 0.0
        %3363 = vmatpush1.msra.mxu0 0.0
        %3364 = vmatprep.subr.mxu0 0.0
        %3365 = vmatpush1.msra.mxu0 0.0
        %3366 = vmatprep.subr.mxu0 0.0
        %3367 = vmatpush1.msra.mxu0 0.0
        %3368 = vmatprep.subr.mxu0 0.0
        %3369 = vmatpush1.msra.mxu0 0.0
        %3370 = vmatprep.subr.mxu0 0.0
        %3371 = vmatpush1.msra.mxu0 0.0
        %3372 = vmatprep.subr.mxu0 0.0
        %3373 = vmatpush1.msra.mxu0 0.0
        %3374 = vmatprep.subr.mxu0 0.0
        %3375 = vmatpush1.msra.mxu0 0.0
        %3376 = vmatprep.subr.mxu0 0.0
        %3377 = vmatpush1.msra.mxu0 0.0
        %3378 = vmatprep.subr.mxu0 0.0
        %3379 = vmatpush1.msra.mxu0 0.0
        %3380 = vmatprep.subr.mxu0 0.0
        %3381 = vmatpush1.msra.mxu0 0.0
        %3382 = vmatprep.subr.mxu0 0.0
        %3383 = vmatpush1.msra.mxu0 0.0
        %3384 = vmatprep.subr.mxu0 0.0
        %3385 = vmatpush1.msra.mxu0 0.0
        %3386 = vmatprep.subr.mxu0 0.0
        %3387 = vmatpush1.msra.mxu0 0.0
        %3388 = vmatprep.subr.mxu0 0.0
        %3389 = vmatpush1.msra.mxu0 0.0
        %3390 = vmatprep.subr.mxu0 0.0
        %3391 = vmatpush1.msra.mxu0 0.0
        %3392 = vmatprep.subr.mxu0 0.0
        %3393 = vmatpush1.msra.mxu0 0.0
        %3394 = vmatprep.subr.mxu0 0.0
        %3395 = vmatpush1.msra.mxu0 0.0
        %3396 = vmatprep.subr.mxu0 0.0
        %3397 = vmatpush1.msra.mxu0 0.0
        %3398 = vmatprep.subr.mxu0 0.0
        %3399 = vmatpush1.msra.mxu0 0.0
        %3400 = vmatprep.subr.mxu0 0.0
        %3401 = vmatpush1.msra.mxu0 0.0
        %3402 = vmatprep.subr.mxu0 0.0
        %3403 = vmatpush1.msra.mxu0 0.0
        %3404 = vmatprep.subr.mxu0 0.0
        %3405 = vmatpush1.msra.mxu0 0.0
        %3406 = vmatprep.subr.mxu0 0.0
        %3407 = vmatpush1.msra.mxu0 0.0
        %3408 = vmatprep.mubr.f32.mxu0 0.0
        %3409 = vmatmul.mubr.f32.gmra.mrb[0].mxu0 %v3342
        %v3410 = vpop.f32.mrb[0].mxu0
        %v3411 = vadd.f32 0.0, %v3410
        %v3412 = vpop.f32.mrb[0].mxu0
        %v3413 = vadd.f32 0.0, %v3412
        %3414 = vdwg.mxu0
        %v3415 = vadd.f32 %v3326, %v3411
        %v3416 = vadd.f32 %v3327, %v3413
        %3417 = vrot.lane.b32.xlu0 %v393, 95
        %v3418 = vpop.permute.xlu0 %3417
        %3419 = vrot.lane.b32.xlu0 %v394, 95
        %v3420 = vpop.permute.xlu0 %3419
        %vm3421 = vcmp.lt.s32.totalorder %v406, 95
        %v3422 = vsel %vm3421, %v3418, %v3420
        %v3423 = vsel %vm3421, %v3420, %v3418
        %v3424 = vld [vmem:[%s5 + $0x290] sm:$0xff]
        %v3425 = vld [vmem:[%s5 + $0x298] sm:$0xff]
        %v3426 = vmul.f32 %v3422, %v3424
        %v3427 = vmul.f32 %v3423, %v3425
        %s3428 = scalar_lea.vmem %s3, 184
        %v3429 = vld [vmem:[%s3428] sm:$0xff]
        %v3431 = vsel %vm1418, %v3429, 0
        %3433 = vmatprep.subr.mxu0 %v3427
        %3434 = vmatpush1.msra.mxu0 %v3426
        %3435 = vmatprep.subr.mxu0 0.0
        %3436 = vmatpush1.msra.mxu0 0.0
        %3437 = vmatprep.subr.mxu0 0.0
        %3438 = vmatpush1.msra.mxu0 0.0
        %3439 = vmatprep.subr.mxu0 0.0
        %3440 = vmatpush1.msra.mxu0 0.0
        %3441 = vmatprep.subr.mxu0 0.0
        %3442 = vmatpush1.msra.mxu0 0.0
        %3443 = vmatprep.subr.mxu0 0.0
        %3444 = vmatpush1.msra.mxu0 0.0
        %3445 = vmatprep.subr.mxu0 0.0
        %3446 = vmatpush1.msra.mxu0 0.0
        %3447 = vmatprep.subr.mxu0 0.0
        %3448 = vmatpush1.msra.mxu0 0.0
        %3449 = vmatprep.subr.mxu0 0.0
        %3450 = vmatpush1.msra.mxu0 0.0
        %3451 = vmatprep.subr.mxu0 0.0
        %3452 = vmatpush1.msra.mxu0 0.0
        %3453 = vmatprep.subr.mxu0 0.0
        %3454 = vmatpush1.msra.mxu0 0.0
        %3455 = vmatprep.subr.mxu0 0.0
        %3456 = vmatpush1.msra.mxu0 0.0
        %3457 = vmatprep.subr.mxu0 0.0
        %3458 = vmatpush1.msra.mxu0 0.0
        %3459 = vmatprep.subr.mxu0 0.0
        %3460 = vmatpush1.msra.mxu0 0.0
        %3461 = vmatprep.subr.mxu0 0.0
        %3462 = vmatpush1.msra.mxu0 0.0
        %3463 = vmatprep.subr.mxu0 0.0
        %3464 = vmatpush1.msra.mxu0 0.0
        %3465 = vmatprep.subr.mxu0 0.0
        %3466 = vmatpush1.msra.mxu0 0.0
        %3467 = vmatprep.subr.mxu0 0.0
        %3468 = vmatpush1.msra.mxu0 0.0
        %3469 = vmatprep.subr.mxu0 0.0
        %3470 = vmatpush1.msra.mxu0 0.0
        %3471 = vmatprep.subr.mxu0 0.0
        %3472 = vmatpush1.msra.mxu0 0.0
        %3473 = vmatprep.subr.mxu0 0.0
        %3474 = vmatpush1.msra.mxu0 0.0
        %3475 = vmatprep.subr.mxu0 0.0
        %3476 = vmatpush1.msra.mxu0 0.0
        %3477 = vmatprep.subr.mxu0 0.0
        %3478 = vmatpush1.msra.mxu0 0.0
        %3479 = vmatprep.subr.mxu0 0.0
        %3480 = vmatpush1.msra.mxu0 0.0
        %3481 = vmatprep.subr.mxu0 0.0
        %3482 = vmatpush1.msra.mxu0 0.0
        %3483 = vmatprep.subr.mxu0 0.0
        %3484 = vmatpush1.msra.mxu0 0.0
        %3485 = vmatprep.subr.mxu0 0.0
        %3486 = vmatpush1.msra.mxu0 0.0
        %3487 = vmatprep.subr.mxu0 0.0
        %3488 = vmatpush1.msra.mxu0 0.0
        %3489 = vmatprep.subr.mxu0 0.0
        %3490 = vmatpush1.msra.mxu0 0.0
        %3491 = vmatprep.subr.mxu0 0.0
        %3492 = vmatpush1.msra.mxu0 0.0
        %3493 = vmatprep.subr.mxu0 0.0
        %3494 = vmatpush1.msra.mxu0 0.0
        %3495 = vmatprep.subr.mxu0 0.0
        %3496 = vmatpush1.msra.mxu0 0.0
        %3497 = vmatprep.mubr.f32.mxu0 0.0
        %3498 = vmatmul.mubr.f32.gmra.mrb[0].mxu0 %v3431
        %v3499 = vpop.f32.mrb[0].mxu0
        %v3500 = vadd.f32 0.0, %v3499
        %v3501 = vpop.f32.mrb[0].mxu0
        %v3502 = vadd.f32 0.0, %v3501
        %3503 = vdwg.mxu0
        %v3504 = vadd.f32 %v3415, %v3500
        %v3505 = vadd.f32 %v3416, %v3502
        %3506 = vrot.lane.b32.xlu0 %v393, 94
        %v3507 = vpop.permute.xlu0 %3506
        %3508 = vrot.lane.b32.xlu0 %v394, 94
        %v3509 = vpop.permute.xlu0 %3508
        %vm3510 = vcmp.lt.s32.totalorder %v406, 94
        %v3511 = vsel %vm3510, %v3507, %v3509
        %v3512 = vsel %vm3510, %v3509, %v3507
        %v3513 = vld [vmem:[%s5 + $0x2a0] sm:$0xff]
        %v3514 = vld [vmem:[%s5 + $0x2a8] sm:$0xff]
        %v3515 = vmul.f32 %v3511, %v3513
        %v3516 = vmul.f32 %v3512, %v3514
        %s3517 = scalar_lea.vmem %s3, 192
        %v3518 = vld [vmem:[%s3517] sm:$0xff]
        %v3520 = vsel %vm1418, %v3518, 0
        %3522 = vmatprep.subr.mxu0 %v3516
        %3523 = vmatpush1.msra.mxu0 %v3515
        %3524 = vmatprep.subr.mxu0 0.0
        %3525 = vmatpush1.msra.mxu0 0.0
        %3526 = vmatprep.subr.mxu0 0.0
        %3527 = vmatpush1.msra.mxu0 0.0
        %3528 = vmatprep.subr.mxu0 0.0
        %3529 = vmatpush1.msra.mxu0 0.0
        %3530 = vmatprep.subr.mxu0 0.0
        %3531 = vmatpush1.msra.mxu0 0.0
        %3532 = vmatprep.subr.mxu0 0.0
        %3533 = vmatpush1.msra.mxu0 0.0
        %3534 = vmatprep.subr.mxu0 0.0
        %3535 = vmatpush1.msra.mxu0 0.0
        %3536 = vmatprep.subr.mxu0 0.0
        %3537 = vmatpush1.msra.mxu0 0.0
        %3538 = vmatprep.subr.mxu0 0.0
        %3539 = vmatpush1.msra.mxu0 0.0
        %3540 = vmatprep.subr.mxu0 0.0
        %3541 = vmatpush1.msra.mxu0 0.0
        %3542 = vmatprep.subr.mxu0 0.0
        %3543 = vmatpush1.msra.mxu0 0.0
        %3544 = vmatprep.subr.mxu0 0.0
        %3545 = vmatpush1.msra.mxu0 0.0
        %3546 = vmatprep.subr.mxu0 0.0
        %3547 = vmatpush1.msra.mxu0 0.0
        %3548 = vmatprep.subr.mxu0 0.0
        %3549 = vmatpush1.msra.mxu0 0.0
        %3550 = vmatprep.subr.mxu0 0.0
        %3551 = vmatpush1.msra.mxu0 0.0
        %3552 = vmatprep.subr.mxu0 0.0
        %3553 = vmatpush1.msra.mxu0 0.0
        %3554 = vmatprep.subr.mxu0 0.0
        %3555 = vmatpush1.msra.mxu0 0.0
        %3556 = vmatprep.subr.mxu0 0.0
        %3557 = vmatpush1.msra.mxu0 0.0
        %3558 = vmatprep.subr.mxu0 0.0
        %3559 = vmatpush1.msra.mxu0 0.0
        %3560 = vmatprep.subr.mxu0 0.0
        %3561 = vmatpush1.msra.mxu0 0.0
        %3562 = vmatprep.subr.mxu0 0.0
        %3563 = vmatpush1.msra.mxu0 0.0
        %3564 = vmatprep.subr.mxu0 0.0
        %3565 = vmatpush1.msra.mxu0 0.0
        %3566 = vmatprep.subr.mxu0 0.0
        %3567 = vmatpush1.msra.mxu0 0.0
        %3568 = vmatprep.subr.mxu0 0.0
        %3569 = vmatpush1.msra.mxu0 0.0
        %3570 = vmatprep.subr.mxu0 0.0
        %3571 = vmatpush1.msra.mxu0 0.0
        %3572 = vmatprep.subr.mxu0 0.0
        %3573 = vmatpush1.msra.mxu0 0.0
        %3574 = vmatprep.subr.mxu0 0.0
        %3575 = vmatpush1.msra.mxu0 0.0
        %3576 = vmatprep.subr.mxu0 0.0
        %3577 = vmatpush1.msra.mxu0 0.0
        %3578 = vmatprep.subr.mxu0 0.0
        %3579 = vmatpush1.msra.mxu0 0.0
        %3580 = vmatprep.subr.mxu0 0.0
        %3581 = vmatpush1.msra.mxu0 0.0
        %3582 = vmatprep.subr.mxu0 0.0
        %3583 = vmatpush1.msra.mxu0 0.0
        %3584 = vmatprep.subr.mxu0 0.0
        %3585 = vmatpush1.msra.mxu0 0.0
        %3586 = vmatprep.mubr.f32.mxu0 0.0
        %3587 = vmatmul.mubr.f32.gmra.mrb[0].mxu0 %v3520
        %v3588 = vpop.f32.mrb[0].mxu0
        %v3589 = vadd.f32 0.0, %v3588
        %v3590 = vpop.f32.mrb[0].mxu0
        %v3591 = vadd.f32 0.0, %v3590
        %3592 = vdwg.mxu0
        %v3593 = vadd.f32 %v3504, %v3589
        %v3594 = vadd.f32 %v3505, %v3591
        %v3595 = vld [vmem:[%s4 + $0x30] sm:$0xff]
        %3597 = vset.pattern.permute.xlu0 0
        %3598 = vperm.xlu0 %3597, %v3595
        %v3599 = vpop.permute.xlu0 %3598
        %v3601 = vadd.f32 %v3593, %v3599
        %v3602 = vadd.f32 %v3594, %v3599
        %v3603 = vmax.f32 %v3601, 0.0
        %v3604 = vmax.f32 %v3602, 0.0
        %3605 = vst [vmem:[%s241 + $0x20] sm:$0xff] %v3603
        %3606 = vst [vmem:[%s241 + $0x28] sm:$0xff] %v3604
        %s3607 = sand.u32 %s156, 1
        %s3608 = sand.u32 %s156, 1
        %s3609 = smul.addr %s3608, 64
        %s3610 = scalar_lea.vmem [#allocation2], %s3609
        // Predicated region
        $region45: #{inception_block.1} parent=43 // pred_check
          %p3611 = pneg %p166
        $region46: #{inception_block.1} parent=43 // pred_check_branch
          %3613 = sbr.rel (%p3611) target = $region48
        $region47: #{inception_block.1} parent=43 // pred_region
          %s3614 = smul.u32 2, %s17
          %s3615 = smul.addr %s3614, 8
          %s3616 = scalar_lea.vmem %s6, %s3615
          // Predicated region
          $region49: #{inception_block.1} parent=47 // pred_check
            _
          $region50: #{inception_block.1} parent=47 // pred_check_branch
            %3618 = sbr.rel (0) target = $region52
          $region51: #{inception_block.1} parent=47 // pred_region
            // Predicated region
            $region53: #{inception_block.1} parent=51 // pred_check
              _
            $region54: #{inception_block.1} parent=51 // pred_check_branch
              %3620 = sbr.rel (0) target = $region56
            $region55: #{inception_block.1} parent=51 // pred_region
              loop: start=0, step=1, limit=1
              $region57: #{inception_block.1} parent=55 // loop_pre_header
                _
              $region58: #{inception_block.1} parent=55 // loop_header
                %s3622 = sphi 0, %s3626
                %p3623 = scmp.ge.s32.totalorder %s3622, 1
                %s3627 = sphi %s3610, %s3610
                %s3628 = sphi %s3616, %s3616
              $region59: #{inception_block.1} parent=55 // loop_header_branch
                %3625 = sbr.rel (%p3623) target = $region63
              $region60: #{inception_block.1} parent=55 // loop_body
                %v3629 = vld [vmem:[%s3627] sm:$0xff]
                %3630 = vst [vmem:[%s3628] sm:$0xff] %v3629
                %v3631 = vld [vmem:[%s3627 + $0x8] sm:$0xff]
                %3632 = vst [vmem:[%s3628 + $0x8] sm:$0xff] %v3631
                %v3633 = vld [vmem:[%s3627 + $0x10] sm:$0xff]
                %3634 = vst [vmem:[%s3628 + $0x20] sm:$0xff] %v3633
                %v3635 = vld [vmem:[%s3627 + $0x18] sm:$0xff]
                %3636 = vst [vmem:[%s3628 + $0x28] sm:$0xff] %v3635
                %v3637 = vld [vmem:[%s3627 + $0x20] sm:$0xff]
                %3638 = vst [vmem:[%s3628 + $0x40] sm:$0xff] %v3637
                %v3639 = vld [vmem:[%s3627 + $0x28] sm:$0xff]
                %3640 = vst [vmem:[%s3628 + $0x48] sm:$0xff] %v3639
                %v3641 = vld [vmem:[%s3627 + $0x30] sm:$0xff]
                %3642 = vst [vmem:[%s3628 + $0x60] sm:$0xff] %v3641
                %v3643 = vld [vmem:[%s3627 + $0x38] sm:$0xff]
                %3644 = vst [vmem:[%s3628 + $0x68] sm:$0xff] %v3643
              $region61: #{inception_block.1} parent=55 // loop_footer
                %s3626 = sadd.s32 1, %s3622
              $region62: #{inception_block.1} parent=55 // loop_footer_branch
                %3621 = sbr.rel target = $region58
              $region63: #{inception_block.1} parent=55 // loop_exit
                _
            $region56: #{inception_block.1} parent=51 // pred_fallthru
              _
            // Predicated region
            $region64: #{inception_block.1} parent=51 // pred_check
              _
            $region65: #{inception_block.1} parent=51 // pred_check_branch
              %3646 = sbr.rel target = $region67
            $region66: #{inception_block.1} parent=51 // pred_region
              _
            $region67: #{inception_block.1} parent=51 // pred_fallthru
              _
          $region52: #{inception_block.1} parent=47 // pred_fallthru
            _
          %3647 = vnop
        $region48: #{inception_block.1} parent=43 // pred_fallthru
          _
      $region44: #{inception_block.1} parent=5 // pred_fallthru
        _
      %p3648 = scmp.le.s32.totalorder 2, %s12
      // Predicated region
      $region68: #{inception_block.1} parent=5 // pred_check
        %p3649 = pneg %p3648
      $region69: #{inception_block.1} parent=5 // pred_check_branch
        %3651 = sbr.rel (%p3649) target = $region71
      $region70: #{inception_block.1} parent=5 // pred_region
        %s3652 = ssub.s32 %s12, 2
        // Predicated region
        $region72: #{inception_block.1} parent=70 // pred_check
          %p3653 = pneg %p172
        $region73: #{inception_block.1} parent=70 // pred_check_branch
          %3655 = sbr.rel (%p3653) target = $region75
        $region74: #{inception_block.1} parent=70 // pred_region
          %s3656 = sand.u32 %s157, 1
          %s3657 = sand.u32 %s157, 1
          %s3658 = smul.addr %s3657, 64
          %s3659 = scalar_lea.vmem [#allocation2], %s3658
        $region75: #{inception_block.1} parent=70 // pred_fallthru
          _
      $region71: #{inception_block.1} parent=5 // pred_fallthru
        _
    $region6: #{inception_block.1} parent=1 // loop_footer
      %s16 = sadd.s32 1, %s12
    $region7: #{inception_block.1} parent=1 // loop_footer_branch
      %11 = sbr.rel target = $region3
    $region8: #{inception_block.1} parent=1 // loop_exit
      _

</llo_original>
